<compile_context>
chip_gen: v7x
topology: tpu7x:2x2x1
jax: 0.10.0
libtpu: 0.0.40
codegen_flags: <defaults>
</compile_context>

<pallas_src>
import math
import functools
import numpy as np

import jax
import jax.numpy as jnp
from jax import lax
from jax.experimental import pallas as pl
from jax.experimental.pallas import tpu as pltpu


# ----------------------------------------------------------------------------
# Positional embedding (reproduces the reference's exact sin/cos formula)
# ----------------------------------------------------------------------------
def positional_embedding(d_model, max_len):
    assert d_model % 2 == 0, "reference formula writes pe[pos, i+1]"
    pe = np.zeros((max_len, d_model), dtype=np.float32)
    for pos in range(max_len):
        for i in range(0, d_model, 2):
            pe[pos, i] = math.sin(pos / 10000 ** (2 * i / d_model))
            pe[pos, i + 1] = math.cos(pos / 10000 ** (2 * (i + 1) / d_model))
    return jnp.asarray(pe)


# ----------------------------------------------------------------------------
# Helpers
# ----------------------------------------------------------------------------
@functools.lru_cache(maxsize=None)
def _vmem_limit_bytes():
    """Explicit scoped-VMEM limit: ~3/4 of physical (~48 MiB v7x, ~96 MiB v5e/v6e)."""
    cap = 128 * 1024 * 1024
    try:
        cap = int(pltpu.get_tpu_info().vmem_capacity_bytes)
    except Exception:
        pass
    return (cap * 3) // 4


def _pick_q_block(seq_len, max_tq=256):
    """Largest query-block size <= max_tq that divides S and is sublane aligned."""
    if seq_len <= max_tq:
        return seq_len
    for tq in range(max_tq, 7, -1):
        if seq_len % tq == 0 and tq % 8 == 0:
            return tq
    return seq_len


# ----------------------------------------------------------------------------
# Pallas kernel: one transformer encoder layer, one (batch, query-block) tile
# ----------------------------------------------------------------------------
def _encoder_layer_kernel(*refs, heads, d_k, tq, apply_final_mask):
    if apply_final_mask:
        (x_ref, maskk_ref, maskq_ref,
         wq_ref, bq_ref, wkv_ref, bkv_ref, wo_ref, bo_ref,
         gamma_ref, beta_ref, w1_ref, b1_ref, w2_ref, b2_ref, out_ref) = refs
    else:
        (x_ref, maskk_ref,
         wq_ref, bq_ref, wkv_ref, bkv_ref, wo_ref, bo_ref,
         gamma_ref, beta_ref, w1_ref, b1_ref, w2_ref, b2_ref, out_ref) = refs
        maskq_ref = None

    x = x_ref[0]                                   # (S, D) f32 full residual stream
    S, D = x.shape

    # residual / query rows for this query block (sliced in VMEM, no second DMA)
    if tq == S:
        xq = x
    else:
        q_start = pl.multiple_of(pl.program_id(1) * tq, tq)
        xq = x_ref[0, pl.ds(q_start, tq), :]       # (TQ, D)

    # additive key mask, computed ONCE (hoisted out of all per-head work)
    maskk = maskk_ref[0]                           # (1, S) in {0,1}
    mask_add = jnp.where(maskk == 0.0, jnp.float32(-1e30), jnp.float32(0.0))

    # ---- projections: bf16 MXU operands, f32 accumulation ----------------------
    scale = jnp.float32(1.0 / math.sqrt(d_k))
    q = jnp.dot(xq.astype(jnp.bfloat16), wq_ref[...],
                preferred_element_type=jnp.float32) + bq_ref[...]
    q = (q * scale).astype(jnp.bfloat16)           # fold 1/sqrt(d_k) into q
    kv = jnp.dot(x.astype(jnp.bfloat16), wkv_ref[...],
                 preferred_element_type=jnp.float32) + bkv_ref[...]
    k = kv[:, :D].astype(jnp.bfloat16)             # (S, D)
    v = kv[:, D:].astype(jnp.bfloat16)             # (S, D)

    # ---- attention: per-head static lane slices (no (H,S,dk) relayout/concat of
    # q/k/v); only one head's (TQ,S) score tile is live at a time.
    # TODO(synk): replace the full (TQ,S) scores with an online-softmax KV inner
    # loop for very long sequences.
    ctx_parts = []
    for h in range(heads):
        lo, hi = h * d_k, (h + 1) * d_k
        qh, kh, vh = q[:, lo:hi], k[:, lo:hi], v[:, lo:hi]
        s = lax.dot_general(qh, kh, (((1,), (1,)), ((), ())),
                            preferred_element_type=jnp.float32)   # (TQ, S)
        s = s + mask_add
        m = jnp.max(s, axis=-1, keepdims=True)
        e = jnp.exp(s - m)
        p = e * pl.reciprocal(jnp.sum(e, axis=-1, keepdims=True), approx=True)
        ctx_parts.append(jnp.dot(p.astype(jnp.bfloat16), vh,
                                 preferred_element_type=jnp.float32))  # (TQ, dk)

    # re-merge heads along LANES -> single deep-K (TQ,D)@(D,D) output GEMM
    ctx = jnp.concatenate(ctx_parts, axis=-1).astype(jnp.bfloat16)     # (TQ, D)
    attn = jnp.dot(ctx, wo_ref[...], preferred_element_type=jnp.float32)
    attn = attn + bo_ref[...]

    gamma = gamma_ref[...]
    beta = beta_ref[...]

    def layernorm(y):
        # one-pass variance: mean(y*y) - mu^2 (saves a full (TQ,D) VPU pass and
        # one cross-lane reduce per layernorm)
        mu = jnp.mean(y, axis=-1, keepdims=True)
        var = jnp.maximum(jnp.mean(y * y, axis=-1, keepdims=True) - mu * mu, 0.0)
        return (y - mu) * lax.rsqrt(var + 1e-5) * gamma + beta

    h1 = layernorm(attn + xq)                      # f32

    # ---- FFN: bf16 GEMMs with f32 accumulation; tanh-GELU routes through the EUP
    # TODO(synk): tile ff_hidden in chunks (accumulate w2 partials) for v7x at
    # BERT-base scale; unnecessary at these block sizes.
    f = jnp.dot(h1.astype(jnp.bfloat16), w1_ref[...],
                preferred_element_type=jnp.float32) + b1_ref[...]
    f = jax.nn.gelu(f, approximate=True)
    f = jnp.dot(f.astype(jnp.bfloat16), w2_ref[...],
                preferred_element_type=jnp.float32) + b2_ref[...]

    y = layernorm(f + h1)
    if apply_final_mask:                           # fused final `x *= mask[...,None]`
        y = y * maskq_ref[0]                       # (TQ, 1) broadcast over D
    out_ref[0] = y


# ----------------------------------------------------------------------------
# Wrapper: per-layer pallas_call over a (batch, query-block) parallel grid
# ----------------------------------------------------------------------------
_SINGLE_BUFFER_WEIGHTS = True   # flipped off once if this build rejects pl.Buffered


def _encoder_layer_call(x, maskk, maskq, layer_params, heads, apply_final_mask,
                        single_buffer_weights):
    B, S, D = x.shape
    d_k = D // heads
    tq = _pick_q_block(S)
    nq = S // tq

    weight_names = ('wq', 'bq', 'wkv', 'bkv', 'wo', 'bo',
                    'gamma', 'beta', 'w1', 'b1', 'w2', 'b2')
    weights = [layer_params[n] for n in weight_names]

    def weight_spec(arr):
        nd = arr.ndim
        idx = lambda b, qb, _nd=nd: (0,) * _nd
        if single_buffer_weights:
            # constant-index blocks: single-buffer -> halves their VMEM footprint
            return pl.BlockSpec(arr.shape, idx, pipeline_mode=pl.Buffered(1))
        return pl.BlockSpec(arr.shape, idx)

    in_specs = [pl.BlockSpec((1, S, D), lambda b, qb: (b, 0, 0)),
                pl.BlockSpec((1, 1, S), lambda b, qb: (b, 0, 0))]
    args = [x, maskk]
    if apply_final_mask:                           # maskq DMA'd only for last layer
        in_specs.append(pl.BlockSpec((1, tq, 1), lambda b, qb: (b, qb, 0)))
        args.append(maskq)
    in_specs += [weight_spec(w) for w in weights]
    args += weights

    kernel = functools.partial(_encoder_layer_kernel, heads=heads, d_k=d_k,
                               tq=tq, apply_final_mask=apply_final_mask)

    return pl.pallas_call(
        kernel,
        out_shape=jax.ShapeDtypeStruct((B, S, D), jnp.float32),
        grid=(B, nq),
        in_specs=in_specs,
        out_specs=pl.BlockSpec((1, tq, D), lambda b, qb: (b, qb, 0)),
        compiler_params=pltpu.CompilerParams(
            dimension_semantics=("parallel", "parallel"),
            vmem_limit_bytes=_vmem_limit_bytes()),
    )(*args)


def encoder_layer(x, maskk, maskq, layer_params, heads, apply_final_mask):
    global _SINGLE_BUFFER_WEIGHTS
    if _SINGLE_BUFFER_WEIGHTS:
        try:
            return _encoder_layer_call(x, maskk, maskq, layer_params, heads,
                                       apply_final_mask, True)
        except Exception:
            _SINGLE_BUFFER_WEIGHTS = False  # graceful fallback to default buffering
    return _encoder_layer_call(x, maskk, maskq, layer_params, heads,
                               apply_final_mask, False)


# ----------------------------------------------------------------------------
# Parameters (deterministic synthetic init)
# ----------------------------------------------------------------------------
def init_params(key, vocab, d_model, n_layers, heads, ff_hidden, seq_len):
    def dense(k, shape):
        return (0.02 * jax.random.normal(k, shape)).astype(jnp.float32)

    keys = jax.random.split(key, 1 + n_layers)
    token_emb = dense(keys[0], (vocab, d_model)).at[0].set(0.0)   # padding_idx=0

    layers = []
    for li in range(n_layers):
        lk = jax.random.split(keys[1 + li], 6)
        wq = dense(lk[0], (d_model, d_model))
        wk = dense(lk[1], (d_model, d_model))
        wv = dense(lk[2], (d_model, d_model))
        wo = dense(lk[3], (d_model, d_model))
        layers.append(dict(
            wq=wq.astype(jnp.bfloat16),
            bq=jnp.zeros((1, d_model), jnp.float32),
            # fused K|V weight: one (S,D)@(D,2D) GEMM for keys/values
            wkv=jnp.concatenate([wk, wv], axis=1).astype(jnp.bfloat16),
            bkv=jnp.zeros((1, 2 * d_model), jnp.float32),
            # un-split output-projection weight -> single deep-K GEMM in kernel
            wo=wo.astype(jnp.bfloat16),
            bo=jnp.zeros((1, d_model), jnp.float32),
            gamma=jnp.ones((1, d_model), jnp.float32),
            beta=jnp.zeros((1, d_model), jnp.float32),
            # TODO(synk): on v7x, optionally store w1/w2 in fp8 (bf16 activations,
            # f32 accumulation) once accuracy validation passes.
            w1=dense(lk[4], (d_model, ff_hidden)).astype(jnp.bfloat16),
            b1=jnp.zeros((1, ff_hidden), jnp.float32),
            w2=dense(lk[5], (ff_hidden, d_model)).astype(jnp.bfloat16),
            b2=jnp.zeros((1, d_model), jnp.float32),
        ))

    return dict(token_emb=token_emb,
                pe=positional_embedding(d_model, seq_len),
                layers=layers, heads=heads)


# ----------------------------------------------------------------------------
# Full BERT forward (embedding gather is glue; encoder layers are Pallas)
# ----------------------------------------------------------------------------
def bert_forward(tokens, attention_mask, params):
    B, S = tokens.shape
    # BERTEmbedding: token + positional embedding (dropout = identity).
    # TODO(synk): embedding gather stays in plain JAX (a DMA-gather kernel is not
    # worth it at these sizes); SegmentEmbedding is unused in the reference forward.
    x = jnp.take(params['token_emb'], tokens, axis=0) + params['pe'][None, :S, :]

    if attention_mask is not None:
        am = attention_mask.astype(jnp.float32)
    else:
        am = (tokens != 0).astype(jnp.float32)     # pad_token_id == 0
    maskk = am.reshape(B, 1, S)                    # key mask for attention
    maskq = am.reshape(B, S, 1)                    # final per-token scaling

    n = len(params['layers'])
    for i, layer in enumerate(params['layers']):
        last = (attention_mask is not None) and (i == n - 1)
        x = encoder_layer(x, maskk, maskq, layer, params['heads'],
                          apply_final_mask=last)
    return x


if __name__ == "__main__":
    B, S = 2, 8
    D, HEADS, N_LAYERS = 32, 4, 2
    FF_HIDDEN = 4 * D
    VOCAB = 100

    key = jax.random.PRNGKey(0)
    kp, kt = jax.random.split(key)

    params = init_params(kp, VOCAB, D, N_LAYERS, HEADS, FF_HIDDEN, S)
    tokens = jax.random.randint(kt, (B, S), 1, VOCAB, dtype=jnp.int32)
    attention_mask = jnp.array([[1, 1, 1, 1, 1, 1, 1, 1],
                                [1, 1, 1, 1, 1, 0, 0, 0]], dtype=jnp.int32)

    out = bert_forward(tokens, attention_mask, params)
    out = jax.block_until_ready(out)
    assert out.shape == (B, S, D) and out.dtype == jnp.float32
    assert bool(jnp.all(jnp.isfinite(out)))
    print("KERNEL_OK")
</pallas_src>

<mosaic_0001>
module attributes {stable_mosaic.version = 11 : i64} {
  func.func @_encoder_layer_kernel(%arg0: i32, %arg1: i32, %arg2: memref<1x8x32xf32, #tpu.memory_space<vmem>>, %arg3: memref<1x1x8xf32, #tpu.memory_space<vmem>>, %arg4: memref<32x32xbf16, #tpu.memory_space<vmem>>, %arg5: memref<1x32xf32, #tpu.memory_space<vmem>>, %arg6: memref<32x64xbf16, #tpu.memory_space<vmem>>, %arg7: memref<1x64xf32, #tpu.memory_space<vmem>>, %arg8: memref<32x32xbf16, #tpu.memory_space<vmem>>, %arg9: memref<1x32xf32, #tpu.memory_space<vmem>>, %arg10: memref<1x32xf32, #tpu.memory_space<vmem>>, %arg11: memref<1x32xf32, #tpu.memory_space<vmem>>, %arg12: memref<32x128xbf16, #tpu.memory_space<vmem>>, %arg13: memref<1x128xf32, #tpu.memory_space<vmem>>, %arg14: memref<128x32xbf16, #tpu.memory_space<vmem>>, %arg15: memref<1x32xf32, #tpu.memory_space<vmem>>, %arg16: memref<1x8x32xf32, #tpu.memory_space<vmem>>) attributes {dimension_semantics = [#tpu.dimension_semantics<parallel>, #tpu.dimension_semantics<parallel>], iteration_bounds = array<i64: 2, 1>, scalar_prefetch = 0 : i64, scratch_operands = 0 : i64, tpu.core_type = #tpu.core_type<tc>, window_params = [{transform_indices = @transform_0, window_bounds = array<i64: 1, 8, 32>}, {transform_indices = @transform_1, window_bounds = array<i64: 1, 1, 8>}, {pipeline_mode = #tpu.pipeline_mode<synchronous>, transform_indices = @transform_2, window_bounds = array<i64: 32, 32>}, {pipeline_mode = #tpu.pipeline_mode<synchronous>, transform_indices = @transform_3, window_bounds = array<i64: 1, 32>}, {pipeline_mode = #tpu.pipeline_mode<synchronous>, transform_indices = @transform_4, window_bounds = array<i64: 32, 64>}, {pipeline_mode = #tpu.pipeline_mode<synchronous>, transform_indices = @transform_5, window_bounds = array<i64: 1, 64>}, {pipeline_mode = #tpu.pipeline_mode<synchronous>, transform_indices = @transform_6, window_bounds = array<i64: 32, 32>}, {pipeline_mode = #tpu.pipeline_mode<synchronous>, transform_indices = @transform_7, window_bounds = array<i64: 1, 32>}, {pipeline_mode = #tpu.pipeline_mode<synchronous>, transform_indices = @transform_8, window_bounds = array<i64: 1, 32>}, {pipeline_mode = #tpu.pipeline_mode<synchronous>, transform_indices = @transform_9, window_bounds = array<i64: 1, 32>}, {pipeline_mode = #tpu.pipeline_mode<synchronous>, transform_indices = @transform_10, window_bounds = array<i64: 32, 128>}, {pipeline_mode = #tpu.pipeline_mode<synchronous>, transform_indices = @transform_11, window_bounds = array<i64: 1, 128>}, {pipeline_mode = #tpu.pipeline_mode<synchronous>, transform_indices = @transform_12, window_bounds = array<i64: 128, 32>}, {pipeline_mode = #tpu.pipeline_mode<synchronous>, transform_indices = @transform_13, window_bounds = array<i64: 1, 32>}, {transform_indices = @transform_14, window_bounds = array<i64: 1, 8, 32>}]} {
    %c0 = arith.constant 0 : index
    %c0_0 = arith.constant 0 : index
    %c0_1 = arith.constant 0 : index
    %0 = vector.load %arg2[%c0, %c0_0, %c0_1] : memref<1x8x32xf32, #tpu.memory_space<vmem>>, vector<1x8x32xf32>
    %1 = vector.shape_cast %0 : vector<1x8x32xf32> to vector<8x32xf32>
    %c0_2 = arith.constant 0 : index
    %c0_3 = arith.constant 0 : index
    %c0_4 = arith.constant 0 : index
    %2 = vector.load %arg3[%c0_2, %c0_3, %c0_4] : memref<1x1x8xf32, #tpu.memory_space<vmem>>, vector<1x1x8xf32>
    %3 = vector.shape_cast %2 : vector<1x1x8xf32> to vector<1x8xf32>
    %cst = arith.constant 0.000000e+00 : f32
    %4 = vector.broadcast %cst : f32 to vector<1x8xf32>
    %5 = arith.cmpf oeq, %3, %4 : vector<1x8xf32>
    %cst_5 = arith.constant -1.000000e+30 : f32
    %cst_6 = arith.constant 0.000000e+00 : f32
    %6 = vector.broadcast %cst_5 : f32 to vector<1x8xf32>
    %7 = vector.broadcast %cst_6 : f32 to vector<1x8xf32>
    %8 = arith.select %5, %6, %7 : vector<1x8xi1>, vector<1x8xf32>
    %9 = arith.truncf %1 : vector<8x32xf32> to vector<8x32xbf16>
    %c0_7 = arith.constant 0 : index
    %c0_8 = arith.constant 0 : index
    %10 = vector.load %arg4[%c0_7, %c0_8] : memref<32x32xbf16, #tpu.memory_space<vmem>>, vector<32x32xbf16>
    %cst_9 = arith.constant dense<0.000000e+00> : vector<8x32xf32>
    %11 = tpu.matmul %9, %10, %cst_9 {dimension_numbers = #tpu.dot_dimension_numbers<[1], [0], [0], [1], [0, 0, 1, 1], [], []>} : vector<8x32xbf16>, vector<32x32xbf16>, vector<8x32xf32> -> vector<8x32xf32>
    %c0_10 = arith.constant 0 : index
    %c0_11 = arith.constant 0 : index
    %12 = vector.load %arg5[%c0_10, %c0_11] : memref<1x32xf32, #tpu.memory_space<vmem>>, vector<1x32xf32>
    %13 = vector.broadcast %12 : vector<1x32xf32> to vector<8x32xf32>
    %14 = arith.addf %11, %13 : vector<8x32xf32>
    %cst_12 = arith.constant 0.353553385 : f32
    %15 = vector.broadcast %cst_12 : f32 to vector<8x32xf32>
    %16 = arith.mulf %14, %15 : vector<8x32xf32>
    %17 = arith.truncf %16 : vector<8x32xf32> to vector<8x32xbf16>
    %18 = arith.truncf %1 : vector<8x32xf32> to vector<8x32xbf16>
    %c0_13 = arith.constant 0 : index
    %c0_14 = arith.constant 0 : index
    %19 = vector.load %arg6[%c0_13, %c0_14] : memref<32x64xbf16, #tpu.memory_space<vmem>>, vector<32x64xbf16>
    %cst_15 = arith.constant dense<0.000000e+00> : vector<8x64xf32>
    %20 = tpu.matmul %18, %19, %cst_15 {dimension_numbers = #tpu.dot_dimension_numbers<[1], [0], [0], [1], [0, 0, 1, 1], [], []>} : vector<8x32xbf16>, vector<32x64xbf16>, vector<8x64xf32> -> vector<8x64xf32>
    %c0_16 = arith.constant 0 : index
    %c0_17 = arith.constant 0 : index
    %21 = vector.load %arg7[%c0_16, %c0_17] : memref<1x64xf32, #tpu.memory_space<vmem>>, vector<1x64xf32>
    %22 = vector.broadcast %21 : vector<1x64xf32> to vector<8x64xf32>
    %23 = arith.addf %20, %22 : vector<8x64xf32>
    %24 = vector.extract_strided_slice %23 {offsets = [0, 0], sizes = [8, 32], strides = [1, 1]} : vector<8x64xf32> to vector<8x32xf32>
    %25 = arith.truncf %24 : vector<8x32xf32> to vector<8x32xbf16>
    %26 = vector.extract_strided_slice %23 {offsets = [0, 32], sizes = [8, 32], strides = [1, 1]} : vector<8x64xf32> to vector<8x32xf32>
    %27 = arith.truncf %26 : vector<8x32xf32> to vector<8x32xbf16>
    %28 = vector.extract_strided_slice %17 {offsets = [0, 0], sizes = [8, 8], strides = [1, 1]} : vector<8x32xbf16> to vector<8x8xbf16>
    %29 = vector.extract_strided_slice %25 {offsets = [0, 0], sizes = [8, 8], strides = [1, 1]} : vector<8x32xbf16> to vector<8x8xbf16>
    %30 = vector.extract_strided_slice %27 {offsets = [0, 0], sizes = [8, 8], strides = [1, 1]} : vector<8x32xbf16> to vector<8x8xbf16>
    %cst_18 = arith.constant dense<0.000000e+00> : vector<8x8xf32>
    %31 = tpu.matmul %28, %29, %cst_18 {dimension_numbers = #tpu.dot_dimension_numbers<[1], [1], [0], [0], [0, 0, 1, 0], [], []>} : vector<8x8xbf16>, vector<8x8xbf16>, vector<8x8xf32> -> vector<8x8xf32>
    %32 = vector.broadcast %8 : vector<1x8xf32> to vector<8x8xf32>
    %33 = arith.addf %31, %32 : vector<8x8xf32>
    %cst_19 = arith.constant dense<0xFF800000> : vector<8xf32>
    %34 = vector.multi_reduction <maximumf>, %33, %cst_19 [1] : vector<8x8xf32> to vector<8xf32>
    %35 = vector.shape_cast %34 : vector<8xf32> to vector<8x1xf32>
    %36 = vector.broadcast %35 : vector<8x1xf32> to vector<8x8xf32>
    %37 = arith.subf %33, %36 : vector<8x8xf32>
    %38 = math.exp %37 : vector<8x8xf32>
    %cst_20 = arith.constant dense<0.000000e+00> : vector<8xf32>
    %39 = vector.multi_reduction <add>, %38, %cst_20 [1] : vector<8x8xf32> to vector<8xf32>
    %40 = vector.shape_cast %39 : vector<8xf32> to vector<8x1xf32>
    %41 = tpu.reciprocal %40 {approx = true} : vector<8x1xf32> -> vector<8x1xf32>
    %42 = vector.broadcast %41 : vector<8x1xf32> to vector<8x8xf32>
    %43 = arith.mulf %38, %42 : vector<8x8xf32>
    %44 = arith.truncf %43 : vector<8x8xf32> to vector<8x8xbf16>
    %cst_21 = arith.constant dense<0.000000e+00> : vector<8x8xf32>
    %45 = tpu.matmul %44, %30, %cst_21 {dimension_numbers = #tpu.dot_dimension_numbers<[1], [0], [0], [1], [0, 0, 1, 1], [], []>} : vector<8x8xbf16>, vector<8x8xbf16>, vector<8x8xf32> -> vector<8x8xf32>
    %46 = vector.extract_strided_slice %17 {offsets = [0, 8], sizes = [8, 8], strides = [1, 1]} : vector<8x32xbf16> to vector<8x8xbf16>
    %47 = vector.extract_strided_slice %25 {offsets = [0, 8], sizes = [8, 8], strides = [1, 1]} : vector<8x32xbf16> to vector<8x8xbf16>
    %48 = vector.extract_strided_slice %27 {offsets = [0, 8], sizes = [8, 8], strides = [1, 1]} : vector<8x32xbf16> to vector<8x8xbf16>
    %cst_22 = arith.constant dense<0.000000e+00> : vector<8x8xf32>
    %49 = tpu.matmul %46, %47, %cst_22 {dimension_numbers = #tpu.dot_dimension_numbers<[1], [1], [0], [0], [0, 0, 1, 0], [], []>} : vector<8x8xbf16>, vector<8x8xbf16>, vector<8x8xf32> -> vector<8x8xf32>
    %50 = vector.broadcast %8 : vector<1x8xf32> to vector<8x8xf32>
    %51 = arith.addf %49, %50 : vector<8x8xf32>
    %cst_23 = arith.constant dense<0xFF800000> : vector<8xf32>
    %52 = vector.multi_reduction <maximumf>, %51, %cst_23 [1] : vector<8x8xf32> to vector<8xf32>
    %53 = vector.shape_cast %52 : vector<8xf32> to vector<8x1xf32>
    %54 = vector.broadcast %53 : vector<8x1xf32> to vector<8x8xf32>
    %55 = arith.subf %51, %54 : vector<8x8xf32>
    %56 = math.exp %55 : vector<8x8xf32>
    %cst_24 = arith.constant dense<0.000000e+00> : vector<8xf32>
    %57 = vector.multi_reduction <add>, %56, %cst_24 [1] : vector<8x8xf32> to vector<8xf32>
    %58 = vector.shape_cast %57 : vector<8xf32> to vector<8x1xf32>
    %59 = tpu.reciprocal %58 {approx = true} : vector<8x1xf32> -> vector<8x1xf32>
    %60 = vector.broadcast %59 : vector<8x1xf32> to vector<8x8xf32>
    %61 = arith.mulf %56, %60 : vector<8x8xf32>
    %62 = arith.truncf %61 : vector<8x8xf32> to vector<8x8xbf16>
    %cst_25 = arith.constant dense<0.000000e+00> : vector<8x8xf32>
    %63 = tpu.matmul %62, %48, %cst_25 {dimension_numbers = #tpu.dot_dimension_numbers<[1], [0], [0], [1], [0, 0, 1, 1], [], []>} : vector<8x8xbf16>, vector<8x8xbf16>, vector<8x8xf32> -> vector<8x8xf32>
    %64 = vector.extract_strided_slice %17 {offsets = [0, 16], sizes = [8, 8], strides = [1, 1]} : vector<8x32xbf16> to vector<8x8xbf16>
    %65 = vector.extract_strided_slice %25 {offsets = [0, 16], sizes = [8, 8], strides = [1, 1]} : vector<8x32xbf16> to vector<8x8xbf16>
    %66 = vector.extract_strided_slice %27 {offsets = [0, 16], sizes = [8, 8], strides = [1, 1]} : vector<8x32xbf16> to vector<8x8xbf16>
    %cst_26 = arith.constant dense<0.000000e+00> : vector<8x8xf32>
    %67 = tpu.matmul %64, %65, %cst_26 {dimension_numbers = #tpu.dot_dimension_numbers<[1], [1], [0], [0], [0, 0, 1, 0], [], []>} : vector<8x8xbf16>, vector<8x8xbf16>, vector<8x8xf32> -> vector<8x8xf32>
    %68 = vector.broadcast %8 : vector<1x8xf32> to vector<8x8xf32>
    %69 = arith.addf %67, %68 : vector<8x8xf32>
    %cst_27 = arith.constant dense<0xFF800000> : vector<8xf32>
    %70 = vector.multi_reduction <maximumf>, %69, %cst_27 [1] : vector<8x8xf32> to vector<8xf32>
    %71 = vector.shape_cast %70 : vector<8xf32> to vector<8x1xf32>
    %72 = vector.broadcast %71 : vector<8x1xf32> to vector<8x8xf32>
    %73 = arith.subf %69, %72 : vector<8x8xf32>
    %74 = math.exp %73 : vector<8x8xf32>
    %cst_28 = arith.constant dense<0.000000e+00> : vector<8xf32>
    %75 = vector.multi_reduction <add>, %74, %cst_28 [1] : vector<8x8xf32> to vector<8xf32>
    %76 = vector.shape_cast %75 : vector<8xf32> to vector<8x1xf32>
    %77 = tpu.reciprocal %76 {approx = true} : vector<8x1xf32> -> vector<8x1xf32>
    %78 = vector.broadcast %77 : vector<8x1xf32> to vector<8x8xf32>
    %79 = arith.mulf %74, %78 : vector<8x8xf32>
    %80 = arith.truncf %79 : vector<8x8xf32> to vector<8x8xbf16>
    %cst_29 = arith.constant dense<0.000000e+00> : vector<8x8xf32>
    %81 = tpu.matmul %80, %66, %cst_29 {dimension_numbers = #tpu.dot_dimension_numbers<[1], [0], [0], [1], [0, 0, 1, 1], [], []>} : vector<8x8xbf16>, vector<8x8xbf16>, vector<8x8xf32> -> vector<8x8xf32>
    %82 = vector.extract_strided_slice %17 {offsets = [0, 24], sizes = [8, 8], strides = [1, 1]} : vector<8x32xbf16> to vector<8x8xbf16>
    %83 = vector.extract_strided_slice %25 {offsets = [0, 24], sizes = [8, 8], strides = [1, 1]} : vector<8x32xbf16> to vector<8x8xbf16>
    %84 = vector.extract_strided_slice %27 {offsets = [0, 24], sizes = [8, 8], strides = [1, 1]} : vector<8x32xbf16> to vector<8x8xbf16>
    %cst_30 = arith.constant dense<0.000000e+00> : vector<8x8xf32>
    %85 = tpu.matmul %82, %83, %cst_30 {dimension_numbers = #tpu.dot_dimension_numbers<[1], [1], [0], [0], [0, 0, 1, 0], [], []>} : vector<8x8xbf16>, vector<8x8xbf16>, vector<8x8xf32> -> vector<8x8xf32>
    %86 = vector.broadcast %8 : vector<1x8xf32> to vector<8x8xf32>
    %87 = arith.addf %85, %86 : vector<8x8xf32>
    %cst_31 = arith.constant dense<0xFF800000> : vector<8xf32>
    %88 = vector.multi_reduction <maximumf>, %87, %cst_31 [1] : vector<8x8xf32> to vector<8xf32>
    %89 = vector.shape_cast %88 : vector<8xf32> to vector<8x1xf32>
    %90 = vector.broadcast %89 : vector<8x1xf32> to vector<8x8xf32>
    %91 = arith.subf %87, %90 : vector<8x8xf32>
    %92 = math.exp %91 : vector<8x8xf32>
    %cst_32 = arith.constant dense<0.000000e+00> : vector<8xf32>
    %93 = vector.multi_reduction <add>, %92, %cst_32 [1] : vector<8x8xf32> to vector<8xf32>
    %94 = vector.shape_cast %93 : vector<8xf32> to vector<8x1xf32>
    %95 = tpu.reciprocal %94 {approx = true} : vector<8x1xf32> -> vector<8x1xf32>
    %96 = vector.broadcast %95 : vector<8x1xf32> to vector<8x8xf32>
    %97 = arith.mulf %92, %96 : vector<8x8xf32>
    %98 = arith.truncf %97 : vector<8x8xf32> to vector<8x8xbf16>
    %cst_33 = arith.constant dense<0.000000e+00> : vector<8x8xf32>
    %99 = tpu.matmul %98, %84, %cst_33 {dimension_numbers = #tpu.dot_dimension_numbers<[1], [0], [0], [1], [0, 0, 1, 1], [], []>} : vector<8x8xbf16>, vector<8x8xbf16>, vector<8x8xf32> -> vector<8x8xf32>
    %100 = tpu.concatenate %45, %63, %81, %99 in 1 : vector<8x8xf32>, vector<8x8xf32>, vector<8x8xf32>, vector<8x8xf32> -> vector<8x32xf32>
    %101 = arith.truncf %100 : vector<8x32xf32> to vector<8x32xbf16>
    %c0_34 = arith.constant 0 : index
    %c0_35 = arith.constant 0 : index
    %102 = vector.load %arg8[%c0_34, %c0_35] : memref<32x32xbf16, #tpu.memory_space<vmem>>, vector<32x32xbf16>
    %cst_36 = arith.constant dense<0.000000e+00> : vector<8x32xf32>
    %103 = tpu.matmul %101, %102, %cst_36 {dimension_numbers = #tpu.dot_dimension_numbers<[1], [0], [0], [1], [0, 0, 1, 1], [], []>} : vector<8x32xbf16>, vector<32x32xbf16>, vector<8x32xf32> -> vector<8x32xf32>
    %c0_37 = arith.constant 0 : index
    %c0_38 = arith.constant 0 : index
    %104 = vector.load %arg9[%c0_37, %c0_38] : memref<1x32xf32, #tpu.memory_space<vmem>>, vector<1x32xf32>
    %105 = vector.broadcast %104 : vector<1x32xf32> to vector<8x32xf32>
    %106 = arith.addf %103, %105 : vector<8x32xf32>
    %c0_39 = arith.constant 0 : index
    %c0_40 = arith.constant 0 : index
    %107 = vector.load %arg10[%c0_39, %c0_40] : memref<1x32xf32, #tpu.memory_space<vmem>>, vector<1x32xf32>
    %c0_41 = arith.constant 0 : index
    %c0_42 = arith.constant 0 : index
    %108 = vector.load %arg11[%c0_41, %c0_42] : memref<1x32xf32, #tpu.memory_space<vmem>>, vector<1x32xf32>
    %109 = arith.addf %106, %1 : vector<8x32xf32>
    %cst_43 = arith.constant dense<0.000000e+00> : vector<8xf32>
    %110 = vector.multi_reduction <add>, %109, %cst_43 [1] : vector<8x32xf32> to vector<8xf32>
    %111 = vector.shape_cast %110 : vector<8xf32> to vector<8x1xf32>
    %cst_44 = arith.constant 3.200000e+01 : f32
    %112 = vector.broadcast %cst_44 : f32 to vector<8x1xf32>
    %113 = arith.divf %111, %112 : vector<8x1xf32>
    %114 = arith.mulf %109, %109 : vector<8x32xf32>
    %cst_45 = arith.constant dense<0.000000e+00> : vector<8xf32>
    %115 = vector.multi_reduction <add>, %114, %cst_45 [1] : vector<8x32xf32> to vector<8xf32>
    %116 = vector.shape_cast %115 : vector<8xf32> to vector<8x1xf32>
    %cst_46 = arith.constant 3.200000e+01 : f32
    %117 = vector.broadcast %cst_46 : f32 to vector<8x1xf32>
    %118 = arith.divf %116, %117 : vector<8x1xf32>
    %119 = arith.mulf %113, %113 : vector<8x1xf32>
    %120 = arith.subf %118, %119 : vector<8x1xf32>
    %cst_47 = arith.constant 0.000000e+00 : f32
    %121 = vector.broadcast %cst_47 : f32 to vector<8x1xf32>
    %122 = arith.maximumf %120, %121 : vector<8x1xf32>
    %123 = vector.broadcast %113 : vector<8x1xf32> to vector<8x32xf32>
    %124 = arith.subf %109, %123 : vector<8x32xf32>
    %cst_48 = arith.constant 9.99999974E-6 : f32
    %125 = vector.broadcast %cst_48 : f32 to vector<8x1xf32>
    %126 = arith.addf %122, %125 : vector<8x1xf32>
    %127 = math.rsqrt %126 : vector<8x1xf32>
    %128 = vector.broadcast %127 : vector<8x1xf32> to vector<8x32xf32>
    %129 = arith.mulf %124, %128 : vector<8x32xf32>
    %130 = vector.broadcast %107 : vector<1x32xf32> to vector<8x32xf32>
    %131 = arith.mulf %129, %130 : vector<8x32xf32>
    %132 = vector.broadcast %108 : vector<1x32xf32> to vector<8x32xf32>
    %133 = arith.addf %131, %132 : vector<8x32xf32>
    %134 = arith.truncf %133 : vector<8x32xf32> to vector<8x32xbf16>
    %c0_49 = arith.constant 0 : index
    %c0_50 = arith.constant 0 : index
    %135 = vector.load %arg12[%c0_49, %c0_50] : memref<32x128xbf16, #tpu.memory_space<vmem>>, vector<32x128xbf16>
    %cst_51 = arith.constant dense<0.000000e+00> : vector<8x128xf32>
    %136 = tpu.matmul %134, %135, %cst_51 {dimension_numbers = #tpu.dot_dimension_numbers<[1], [0], [0], [1], [0, 0, 1, 1], [], []>} : vector<8x32xbf16>, vector<32x128xbf16>, vector<8x128xf32> -> vector<8x128xf32>
    %c0_52 = arith.constant 0 : index
    %c0_53 = arith.constant 0 : index
    %137 = vector.load %arg13[%c0_52, %c0_53] : memref<1x128xf32, #tpu.memory_space<vmem>>, vector<1x128xf32>
    %138 = vector.broadcast %137 : vector<1x128xf32> to vector<8x128xf32>
    %139 = arith.addf %136, %138 : vector<8x128xf32>
    %140 = arith.mulf %139, %139 : vector<8x128xf32>
    %141 = arith.mulf %139, %140 : vector<8x128xf32>
    %cst_54 = arith.constant 4.471500e-02 : f32
    %142 = vector.broadcast %cst_54 : f32 to vector<8x128xf32>
    %143 = arith.mulf %142, %141 : vector<8x128xf32>
    %144 = arith.addf %139, %143 : vector<8x128xf32>
    %cst_55 = arith.constant 0.797884583 : f32
    %145 = vector.broadcast %cst_55 : f32 to vector<8x128xf32>
    %146 = arith.mulf %145, %144 : vector<8x128xf32>
    %147 = math.tanh %146 : vector<8x128xf32>
    %cst_56 = arith.constant 1.000000e+00 : f32
    %148 = vector.broadcast %cst_56 : f32 to vector<8x128xf32>
    %149 = arith.addf %148, %147 : vector<8x128xf32>
    %cst_57 = arith.constant 5.000000e-01 : f32
    %150 = vector.broadcast %cst_57 : f32 to vector<8x128xf32>
    %151 = arith.mulf %150, %149 : vector<8x128xf32>
    %152 = arith.mulf %139, %151 : vector<8x128xf32>
    %153 = arith.truncf %152 : vector<8x128xf32> to vector<8x128xbf16>
    %c0_58 = arith.constant 0 : index
    %c0_59 = arith.constant 0 : index
    %154 = vector.load %arg14[%c0_58, %c0_59] : memref<128x32xbf16, #tpu.memory_space<vmem>>, vector<128x32xbf16>
    %cst_60 = arith.constant dense<0.000000e+00> : vector<8x32xf32>
    %155 = tpu.matmul %153, %154, %cst_60 {dimension_numbers = #tpu.dot_dimension_numbers<[1], [0], [0], [1], [0, 0, 1, 1], [], []>} : vector<8x128xbf16>, vector<128x32xbf16>, vector<8x32xf32> -> vector<8x32xf32>
    %c0_61 = arith.constant 0 : index
    %c0_62 = arith.constant 0 : index
    %156 = vector.load %arg15[%c0_61, %c0_62] : memref<1x32xf32, #tpu.memory_space<vmem>>, vector<1x32xf32>
    %157 = vector.broadcast %156 : vector<1x32xf32> to vector<8x32xf32>
    %158 = arith.addf %155, %157 : vector<8x32xf32>
    %159 = arith.addf %158, %133 : vector<8x32xf32>
    %cst_63 = arith.constant dense<0.000000e+00> : vector<8xf32>
    %160 = vector.multi_reduction <add>, %159, %cst_63 [1] : vector<8x32xf32> to vector<8xf32>
    %161 = vector.shape_cast %160 : vector<8xf32> to vector<8x1xf32>
    %cst_64 = arith.constant 3.200000e+01 : f32
    %162 = vector.broadcast %cst_64 : f32 to vector<8x1xf32>
    %163 = arith.divf %161, %162 : vector<8x1xf32>
    %164 = arith.mulf %159, %159 : vector<8x32xf32>
    %cst_65 = arith.constant dense<0.000000e+00> : vector<8xf32>
    %165 = vector.multi_reduction <add>, %164, %cst_65 [1] : vector<8x32xf32> to vector<8xf32>
    %166 = vector.shape_cast %165 : vector<8xf32> to vector<8x1xf32>
    %cst_66 = arith.constant 3.200000e+01 : f32
    %167 = vector.broadcast %cst_66 : f32 to vector<8x1xf32>
    %168 = arith.divf %166, %167 : vector<8x1xf32>
    %169 = arith.mulf %163, %163 : vector<8x1xf32>
    %170 = arith.subf %168, %169 : vector<8x1xf32>
    %cst_67 = arith.constant 0.000000e+00 : f32
    %171 = vector.broadcast %cst_67 : f32 to vector<8x1xf32>
    %172 = arith.maximumf %170, %171 : vector<8x1xf32>
    %173 = vector.broadcast %163 : vector<8x1xf32> to vector<8x32xf32>
    %174 = arith.subf %159, %173 : vector<8x32xf32>
    %cst_68 = arith.constant 9.99999974E-6 : f32
    %175 = vector.broadcast %cst_68 : f32 to vector<8x1xf32>
    %176 = arith.addf %172, %175 : vector<8x1xf32>
    %177 = math.rsqrt %176 : vector<8x1xf32>
    %178 = vector.broadcast %177 : vector<8x1xf32> to vector<8x32xf32>
    %179 = arith.mulf %174, %178 : vector<8x32xf32>
    %180 = vector.broadcast %107 : vector<1x32xf32> to vector<8x32xf32>
    %181 = arith.mulf %179, %180 : vector<8x32xf32>
    %182 = vector.broadcast %108 : vector<1x32xf32> to vector<8x32xf32>
    %183 = arith.addf %181, %182 : vector<8x32xf32>
    %c0_69 = arith.constant 0 : index
    %c0_70 = arith.constant 0 : index
    %c0_71 = arith.constant 0 : index
    %184 = vector.load %arg16[%c0_69, %c0_70, %c0_71] : memref<1x8x32xf32, #tpu.memory_space<vmem>>, vector<1x8x32xf32>
    %185 = vector.shape_cast %184 : vector<1x8x32xf32> to vector<8x32xf32>
    %186 = vector.shape_cast %183 : vector<8x32xf32> to vector<1x8x32xf32>
    tpu.vector_store %arg16[%c0_69, %c0_70, %c0_71], %186 {strides = array<i32>} : memref<1x8x32xf32, #tpu.memory_space<vmem>>, vector<1x8x32xf32>,
    return
  }
  func.func @transform_0(%arg0: i32, %arg1: i32) -> (i32, i32, i32) {
    %c0_i32 = arith.constant 0 : i32
    %c0_i32_0 = arith.constant 0 : i32
    %c0_i32_1 = arith.constant 0 : i32
    return %arg0, %c0_i32, %c0_i32_0 : i32, i32, i32
  }
  func.func @transform_1(%arg0: i32, %arg1: i32) -> (i32, i32, i32) {
    %c0_i32 = arith.constant 0 : i32
    %c0_i32_0 = arith.constant 0 : i32
    %c0_i32_1 = arith.constant 0 : i32
    return %arg0, %c0_i32, %c0_i32_0 : i32, i32, i32
  }
  func.func @transform_2(%arg0: i32, %arg1: i32) -> (i32, i32) {
    %c0_i32 = arith.constant 0 : i32
    %c0_i32_0 = arith.constant 0 : i32
    %c0_i32_1 = arith.constant 0 : i32
    return %c0_i32, %c0_i32_0 : i32, i32
  }
  func.func @transform_3(%arg0: i32, %arg1: i32) -> (i32, i32) {
    %c0_i32 = arith.constant 0 : i32
    %c0_i32_0 = arith.constant 0 : i32
    %c0_i32_1 = arith.constant 0 : i32
    return %c0_i32, %c0_i32_0 : i32, i32
  }
  func.func @transform_4(%arg0: i32, %arg1: i32) -> (i32, i32) {
    %c0_i32 = arith.constant 0 : i32
    %c0_i32_0 = arith.constant 0 : i32
    %c0_i32_1 = arith.constant 0 : i32
    return %c0_i32, %c0_i32_0 : i32, i32
  }
  func.func @transform_5(%arg0: i32, %arg1: i32) -> (i32, i32) {
    %c0_i32 = arith.constant 0 : i32
    %c0_i32_0 = arith.constant 0 : i32
    %c0_i32_1 = arith.constant 0 : i32
    return %c0_i32, %c0_i32_0 : i32, i32
  }
  func.func @transform_6(%arg0: i32, %arg1: i32) -> (i32, i32) {
    %c0_i32 = arith.constant 0 : i32
    %c0_i32_0 = arith.constant 0 : i32
    %c0_i32_1 = arith.constant 0 : i32
    return %c0_i32, %c0_i32_0 : i32, i32
  }
  func.func @transform_7(%arg0: i32, %arg1: i32) -> (i32, i32) {
    %c0_i32 = arith.constant 0 : i32
    %c0_i32_0 = arith.constant 0 : i32
    %c0_i32_1 = arith.constant 0 : i32
    return %c0_i32, %c0_i32_0 : i32, i32
  }
  func.func @transform_8(%arg0: i32, %arg1: i32) -> (i32, i32) {
    %c0_i32 = arith.constant 0 : i32
    %c0_i32_0 = arith.constant 0 : i32
    %c0_i32_1 = arith.constant 0 : i32
    return %c0_i32, %c0_i32_0 : i32, i32
  }
  func.func @transform_9(%arg0: i32, %arg1: i32) -> (i32, i32) {
    %c0_i32 = arith.constant 0 : i32
    %c0_i32_0 = arith.constant 0 : i32
    %c0_i32_1 = arith.constant 0 : i32
    return %c0_i32, %c0_i32_0 : i32, i32
  }
  func.func @transform_10(%arg0: i32, %arg1: i32) -> (i32, i32) {
    %c0_i32 = arith.constant 0 : i32
    %c0_i32_0 = arith.constant 0 : i32
    %c0_i32_1 = arith.constant 0 : i32
    return %c0_i32, %c0_i32_0 : i32, i32
  }
  func.func @transform_11(%arg0: i32, %arg1: i32) -> (i32, i32) {
    %c0_i32 = arith.constant 0 : i32
    %c0_i32_0 = arith.constant 0 : i32
    %c0_i32_1 = arith.constant 0 : i32
    return %c0_i32, %c0_i32_0 : i32, i32
  }
  func.func @transform_12(%arg0: i32, %arg1: i32) -> (i32, i32) {
    %c0_i32 = arith.constant 0 : i32
    %c0_i32_0 = arith.constant 0 : i32
    %c0_i32_1 = arith.constant 0 : i32
    return %c0_i32, %c0_i32_0 : i32, i32
  }
  func.func @transform_13(%arg0: i32, %arg1: i32) -> (i32, i32) {
    %c0_i32 = arith.constant 0 : i32
    %c0_i32_0 = arith.constant 0 : i32
    %c0_i32_1 = arith.constant 0 : i32
    return %c0_i32, %c0_i32_0 : i32, i32
  }
  func.func @transform_14(%arg0: i32, %arg1: i32) -> (i32, i32, i32) {
    %c0_i32 = arith.constant 0 : i32
    %c0_i32_0 = arith.constant 0 : i32
    return %arg0, %arg1, %c0_i32 : i32, i32, i32
  }
}

module attributes {stable_mosaic.version = 11 : i64} {
  func.func @_encoder_layer_kernel(%arg0: i32, %arg1: i32, %arg2: memref<1x8x32xf32, #tpu.memory_space<vmem>>, %arg3: memref<1x1x8xf32, #tpu.memory_space<vmem>>, %arg4: memref<32x32xbf16, #tpu.memory_space<vmem>>, %arg5: memref<1x32xf32, #tpu.memory_space<vmem>>, %arg6: memref<32x64xbf16, #tpu.memory_space<vmem>>, %arg7: memref<1x64xf32, #tpu.memory_space<vmem>>, %arg8: memref<32x32xbf16, #tpu.memory_space<vmem>>, %arg9: memref<1x32xf32, #tpu.memory_space<vmem>>, %arg10: memref<1x32xf32, #tpu.memory_space<vmem>>, %arg11: memref<1x32xf32, #tpu.memory_space<vmem>>, %arg12: memref<32x128xbf16, #tpu.memory_space<vmem>>, %arg13: memref<1x128xf32, #tpu.memory_space<vmem>>, %arg14: memref<128x32xbf16, #tpu.memory_space<vmem>>, %arg15: memref<1x32xf32, #tpu.memory_space<vmem>>, %arg16: memref<1x8x32xf32, #tpu.memory_space<vmem>>) attributes {dimension_semantics = [#tpu.dimension_semantics<parallel>, #tpu.dimension_semantics<parallel>], iteration_bounds = array<i64: 2, 1>, scalar_prefetch = 0 : i64, scratch_operands = 0 : i64, tpu.core_type = #tpu.core_type<tc>, window_params = [{transform_indices = @transform_0, window_bounds = array<i64: 1, 8, 32>}, {transform_indices = @transform_1, window_bounds = array<i64: 1, 1, 8>}, {pipeline_mode = #tpu.pipeline_mode<synchronous>, transform_indices = @transform_2, window_bounds = array<i64: 32, 32>}, {pipeline_mode = #tpu.pipeline_mode<synchronous>, transform_indices = @transform_3, window_bounds = array<i64: 1, 32>}, {pipeline_mode = #tpu.pipeline_mode<synchronous>, transform_indices = @transform_4, window_bounds = array<i64: 32, 64>}, {pipeline_mode = #tpu.pipeline_mode<synchronous>, transform_indices = @transform_5, window_bounds = array<i64: 1, 64>}, {pipeline_mode = #tpu.pipeline_mode<synchronous>, transform_indices = @transform_6, window_bounds = array<i64: 32, 32>}, {pipeline_mode = #tpu.pipeline_mode<synchronous>, transform_indices = @transform_7, window_bounds = array<i64: 1, 32>}, {pipeline_mode = #tpu.pipeline_mode<synchronous>, transform_indices = @transform_8, window_bounds = array<i64: 1, 32>}, {pipeline_mode = #tpu.pipeline_mode<synchronous>, transform_indices = @transform_9, window_bounds = array<i64: 1, 32>}, {pipeline_mode = #tpu.pipeline_mode<synchronous>, transform_indices = @transform_10, window_bounds = array<i64: 32, 128>}, {pipeline_mode = #tpu.pipeline_mode<synchronous>, transform_indices = @transform_11, window_bounds = array<i64: 1, 128>}, {pipeline_mode = #tpu.pipeline_mode<synchronous>, transform_indices = @transform_12, window_bounds = array<i64: 128, 32>}, {pipeline_mode = #tpu.pipeline_mode<synchronous>, transform_indices = @transform_13, window_bounds = array<i64: 1, 32>}, {transform_indices = @transform_14, window_bounds = array<i64: 1, 8, 32>}]} {
    %c0 = arith.constant 0 : index
    %c0_0 = arith.constant 0 : index
    %c0_1 = arith.constant 0 : index
    %0 = vector.load %arg2[%c0, %c0_0, %c0_1] : memref<1x8x32xf32, #tpu.memory_space<vmem>>, vector<1x8x32xf32>
    %1 = vector.shape_cast %0 : vector<1x8x32xf32> to vector<8x32xf32>
    %c0_2 = arith.constant 0 : index
    %c0_3 = arith.constant 0 : index
    %c0_4 = arith.constant 0 : index
    %2 = vector.load %arg3[%c0_2, %c0_3, %c0_4] : memref<1x1x8xf32, #tpu.memory_space<vmem>>, vector<1x1x8xf32>
    %3 = vector.shape_cast %2 : vector<1x1x8xf32> to vector<1x8xf32>
    %cst = arith.constant 0.000000e+00 : f32
    %4 = vector.broadcast %cst : f32 to vector<1x8xf32>
    %5 = arith.cmpf oeq, %3, %4 : vector<1x8xf32>
    %cst_5 = arith.constant -1.000000e+30 : f32
    %cst_6 = arith.constant 0.000000e+00 : f32
    %6 = vector.broadcast %cst_5 : f32 to vector<1x8xf32>
    %7 = vector.broadcast %cst_6 : f32 to vector<1x8xf32>
    %8 = arith.select %5, %6, %7 : vector<1x8xi1>, vector<1x8xf32>
    %9 = arith.truncf %1 : vector<8x32xf32> to vector<8x32xbf16>
    %c0_7 = arith.constant 0 : index
    %c0_8 = arith.constant 0 : index
    %10 = vector.load %arg4[%c0_7, %c0_8] : memref<32x32xbf16, #tpu.memory_space<vmem>>, vector<32x32xbf16>
    %cst_9 = arith.constant dense<0.000000e+00> : vector<8x32xf32>
    %11 = tpu.matmul %9, %10, %cst_9 {dimension_numbers = #tpu.dot_dimension_numbers<[1], [0], [0], [1], [0, 0, 1, 1], [], []>} : vector<8x32xbf16>, vector<32x32xbf16>, vector<8x32xf32> -> vector<8x32xf32>
    %c0_10 = arith.constant 0 : index
    %c0_11 = arith.constant 0 : index
    %12 = vector.load %arg5[%c0_10, %c0_11] : memref<1x32xf32, #tpu.memory_space<vmem>>, vector<1x32xf32>
    %13 = vector.broadcast %12 : vector<1x32xf32> to vector<8x32xf32>
    %14 = arith.addf %11, %13 : vector<8x32xf32>
    %cst_12 = arith.constant 0.353553385 : f32
    %15 = vector.broadcast %cst_12 : f32 to vector<8x32xf32>
    %16 = arith.mulf %14, %15 : vector<8x32xf32>
    %17 = arith.truncf %16 : vector<8x32xf32> to vector<8x32xbf16>
    %18 = arith.truncf %1 : vector<8x32xf32> to vector<8x32xbf16>
    %c0_13 = arith.constant 0 : index
    %c0_14 = arith.constant 0 : index
    %19 = vector.load %arg6[%c0_13, %c0_14] : memref<32x64xbf16, #tpu.memory_space<vmem>>, vector<32x64xbf16>
    %cst_15 = arith.constant dense<0.000000e+00> : vector<8x64xf32>
    %20 = tpu.matmul %18, %19, %cst_15 {dimension_numbers = #tpu.dot_dimension_numbers<[1], [0], [0], [1], [0, 0, 1, 1], [], []>} : vector<8x32xbf16>, vector<32x64xbf16>, vector<8x64xf32> -> vector<8x64xf32>
    %c0_16 = arith.constant 0 : index
    %c0_17 = arith.constant 0 : index
    %21 = vector.load %arg7[%c0_16, %c0_17] : memref<1x64xf32, #tpu.memory_space<vmem>>, vector<1x64xf32>
    %22 = vector.broadcast %21 : vector<1x64xf32> to vector<8x64xf32>
    %23 = arith.addf %20, %22 : vector<8x64xf32>
    %24 = vector.extract_strided_slice %23 {offsets = [0, 0], sizes = [8, 32], strides = [1, 1]} : vector<8x64xf32> to vector<8x32xf32>
    %25 = arith.truncf %24 : vector<8x32xf32> to vector<8x32xbf16>
    %26 = vector.extract_strided_slice %23 {offsets = [0, 32], sizes = [8, 32], strides = [1, 1]} : vector<8x64xf32> to vector<8x32xf32>
    %27 = arith.truncf %26 : vector<8x32xf32> to vector<8x32xbf16>
    %28 = vector.extract_strided_slice %17 {offsets = [0, 0], sizes = [8, 8], strides = [1, 1]} : vector<8x32xbf16> to vector<8x8xbf16>
    %29 = vector.extract_strided_slice %25 {offsets = [0, 0], sizes = [8, 8], strides = [1, 1]} : vector<8x32xbf16> to vector<8x8xbf16>
    %30 = vector.extract_strided_slice %27 {offsets = [0, 0], sizes = [8, 8], strides = [1, 1]} : vector<8x32xbf16> to vector<8x8xbf16>
    %cst_18 = arith.constant dense<0.000000e+00> : vector<8x8xf32>
    %31 = tpu.matmul %28, %29, %cst_18 {dimension_numbers = #tpu.dot_dimension_numbers<[1], [1], [0], [0], [0, 0, 1, 0], [], []>} : vector<8x8xbf16>, vector<8x8xbf16>, vector<8x8xf32> -> vector<8x8xf32>
    %32 = vector.broadcast %8 : vector<1x8xf32> to vector<8x8xf32>
    %33 = arith.addf %31, %32 : vector<8x8xf32>
    %cst_19 = arith.constant dense<0xFF800000> : vector<8xf32>
    %34 = vector.multi_reduction <maximumf>, %33, %cst_19 [1] : vector<8x8xf32> to vector<8xf32>
    %35 = vector.shape_cast %34 : vector<8xf32> to vector<8x1xf32>
    %36 = vector.broadcast %35 : vector<8x1xf32> to vector<8x8xf32>
    %37 = arith.subf %33, %36 : vector<8x8xf32>
    %38 = math.exp %37 : vector<8x8xf32>
    %cst_20 = arith.constant dense<0.000000e+00> : vector<8xf32>
    %39 = vector.multi_reduction <add>, %38, %cst_20 [1] : vector<8x8xf32> to vector<8xf32>
    %40 = vector.shape_cast %39 : vector<8xf32> to vector<8x1xf32>
    %41 = tpu.reciprocal %40 {approx = true} : vector<8x1xf32> -> vector<8x1xf32>
    %42 = vector.broadcast %41 : vector<8x1xf32> to vector<8x8xf32>
    %43 = arith.mulf %38, %42 : vector<8x8xf32>
    %44 = arith.truncf %43 : vector<8x8xf32> to vector<8x8xbf16>
    %cst_21 = arith.constant dense<0.000000e+00> : vector<8x8xf32>
    %45 = tpu.matmul %44, %30, %cst_21 {dimension_numbers = #tpu.dot_dimension_numbers<[1], [0], [0], [1], [0, 0, 1, 1], [], []>} : vector<8x8xbf16>, vector<8x8xbf16>, vector<8x8xf32> -> vector<8x8xf32>
    %46 = vector.extract_strided_slice %17 {offsets = [0, 8], sizes = [8, 8], strides = [1, 1]} : vector<8x32xbf16> to vector<8x8xbf16>
    %47 = vector.extract_strided_slice %25 {offsets = [0, 8], sizes = [8, 8], strides = [1, 1]} : vector<8x32xbf16> to vector<8x8xbf16>
    %48 = vector.extract_strided_slice %27 {offsets = [0, 8], sizes = [8, 8], strides = [1, 1]} : vector<8x32xbf16> to vector<8x8xbf16>
    %cst_22 = arith.constant dense<0.000000e+00> : vector<8x8xf32>
    %49 = tpu.matmul %46, %47, %cst_22 {dimension_numbers = #tpu.dot_dimension_numbers<[1], [1], [0], [0], [0, 0, 1, 0], [], []>} : vector<8x8xbf16>, vector<8x8xbf16>, vector<8x8xf32> -> vector<8x8xf32>
    %50 = vector.broadcast %8 : vector<1x8xf32> to vector<8x8xf32>
    %51 = arith.addf %49, %50 : vector<8x8xf32>
    %cst_23 = arith.constant dense<0xFF800000> : vector<8xf32>
    %52 = vector.multi_reduction <maximumf>, %51, %cst_23 [1] : vector<8x8xf32> to vector<8xf32>
    %53 = vector.shape_cast %52 : vector<8xf32> to vector<8x1xf32>
    %54 = vector.broadcast %53 : vector<8x1xf32> to vector<8x8xf32>
    %55 = arith.subf %51, %54 : vector<8x8xf32>
    %56 = math.exp %55 : vector<8x8xf32>
    %cst_24 = arith.constant dense<0.000000e+00> : vector<8xf32>
    %57 = vector.multi_reduction <add>, %56, %cst_24 [1] : vector<8x8xf32> to vector<8xf32>
    %58 = vector.shape_cast %57 : vector<8xf32> to vector<8x1xf32>
    %59 = tpu.reciprocal %58 {approx = true} : vector<8x1xf32> -> vector<8x1xf32>
    %60 = vector.broadcast %59 : vector<8x1xf32> to vector<8x8xf32>
    %61 = arith.mulf %56, %60 : vector<8x8xf32>
    %62 = arith.truncf %61 : vector<8x8xf32> to vector<8x8xbf16>
    %cst_25 = arith.constant dense<0.000000e+00> : vector<8x8xf32>
    %63 = tpu.matmul %62, %48, %cst_25 {dimension_numbers = #tpu.dot_dimension_numbers<[1], [0], [0], [1], [0, 0, 1, 1], [], []>} : vector<8x8xbf16>, vector<8x8xbf16>, vector<8x8xf32> -> vector<8x8xf32>
    %64 = vector.extract_strided_slice %17 {offsets = [0, 16], sizes = [8, 8], strides = [1, 1]} : vector<8x32xbf16> to vector<8x8xbf16>
    %65 = vector.extract_strided_slice %25 {offsets = [0, 16], sizes = [8, 8], strides = [1, 1]} : vector<8x32xbf16> to vector<8x8xbf16>
    %66 = vector.extract_strided_slice %27 {offsets = [0, 16], sizes = [8, 8], strides = [1, 1]} : vector<8x32xbf16> to vector<8x8xbf16>
    %cst_26 = arith.constant dense<0.000000e+00> : vector<8x8xf32>
    %67 = tpu.matmul %64, %65, %cst_26 {dimension_numbers = #tpu.dot_dimension_numbers<[1], [1], [0], [0], [0, 0, 1, 0], [], []>} : vector<8x8xbf16>, vector<8x8xbf16>, vector<8x8xf32> -> vector<8x8xf32>
    %68 = vector.broadcast %8 : vector<1x8xf32> to vector<8x8xf32>
    %69 = arith.addf %67, %68 : vector<8x8xf32>
    %cst_27 = arith.constant dense<0xFF800000> : vector<8xf32>
    %70 = vector.multi_reduction <maximumf>, %69, %cst_27 [1] : vector<8x8xf32> to vector<8xf32>
    %71 = vector.shape_cast %70 : vector<8xf32> to vector<8x1xf32>
    %72 = vector.broadcast %71 : vector<8x1xf32> to vector<8x8xf32>
    %73 = arith.subf %69, %72 : vector<8x8xf32>
    %74 = math.exp %73 : vector<8x8xf32>
    %cst_28 = arith.constant dense<0.000000e+00> : vector<8xf32>
    %75 = vector.multi_reduction <add>, %74, %cst_28 [1] : vector<8x8xf32> to vector<8xf32>
    %76 = vector.shape_cast %75 : vector<8xf32> to vector<8x1xf32>
    %77 = tpu.reciprocal %76 {approx = true} : vector<8x1xf32> -> vector<8x1xf32>
    %78 = vector.broadcast %77 : vector<8x1xf32> to vector<8x8xf32>
    %79 = arith.mulf %74, %78 : vector<8x8xf32>
    %80 = arith.truncf %79 : vector<8x8xf32> to vector<8x8xbf16>
    %cst_29 = arith.constant dense<0.000000e+00> : vector<8x8xf32>
    %81 = tpu.matmul %80, %66, %cst_29 {dimension_numbers = #tpu.dot_dimension_numbers<[1], [0], [0], [1], [0, 0, 1, 1], [], []>} : vector<8x8xbf16>, vector<8x8xbf16>, vector<8x8xf32> -> vector<8x8xf32>
    %82 = vector.extract_strided_slice %17 {offsets = [0, 24], sizes = [8, 8], strides = [1, 1]} : vector<8x32xbf16> to vector<8x8xbf16>
    %83 = vector.extract_strided_slice %25 {offsets = [0, 24], sizes = [8, 8], strides = [1, 1]} : vector<8x32xbf16> to vector<8x8xbf16>
    %84 = vector.extract_strided_slice %27 {offsets = [0, 24], sizes = [8, 8], strides = [1, 1]} : vector<8x32xbf16> to vector<8x8xbf16>
    %cst_30 = arith.constant dense<0.000000e+00> : vector<8x8xf32>
    %85 = tpu.matmul %82, %83, %cst_30 {dimension_numbers = #tpu.dot_dimension_numbers<[1], [1], [0], [0], [0, 0, 1, 0], [], []>} : vector<8x8xbf16>, vector<8x8xbf16>, vector<8x8xf32> -> vector<8x8xf32>
    %86 = vector.broadcast %8 : vector<1x8xf32> to vector<8x8xf32>
    %87 = arith.addf %85, %86 : vector<8x8xf32>
    %cst_31 = arith.constant dense<0xFF800000> : vector<8xf32>
    %88 = vector.multi_reduction <maximumf>, %87, %cst_31 [1] : vector<8x8xf32> to vector<8xf32>
    %89 = vector.shape_cast %88 : vector<8xf32> to vector<8x1xf32>
    %90 = vector.broadcast %89 : vector<8x1xf32> to vector<8x8xf32>
    %91 = arith.subf %87, %90 : vector<8x8xf32>
    %92 = math.exp %91 : vector<8x8xf32>
    %cst_32 = arith.constant dense<0.000000e+00> : vector<8xf32>
    %93 = vector.multi_reduction <add>, %92, %cst_32 [1] : vector<8x8xf32> to vector<8xf32>
    %94 = vector.shape_cast %93 : vector<8xf32> to vector<8x1xf32>
    %95 = tpu.reciprocal %94 {approx = true} : vector<8x1xf32> -> vector<8x1xf32>
    %96 = vector.broadcast %95 : vector<8x1xf32> to vector<8x8xf32>
    %97 = arith.mulf %92, %96 : vector<8x8xf32>
    %98 = arith.truncf %97 : vector<8x8xf32> to vector<8x8xbf16>
    %cst_33 = arith.constant dense<0.000000e+00> : vector<8x8xf32>
    %99 = tpu.matmul %98, %84, %cst_33 {dimension_numbers = #tpu.dot_dimension_numbers<[1], [0], [0], [1], [0, 0, 1, 1], [], []>} : vector<8x8xbf16>, vector<8x8xbf16>, vector<8x8xf32> -> vector<8x8xf32>
    %100 = tpu.concatenate %45, %63, %81, %99 in 1 : vector<8x8xf32>, vector<8x8xf32>, vector<8x8xf32>, vector<8x8xf32> -> vector<8x32xf32>
    %101 = arith.truncf %100 : vector<8x32xf32> to vector<8x32xbf16>
    %c0_34 = arith.constant 0 : index
    %c0_35 = arith.constant 0 : index
    %102 = vector.load %arg8[%c0_34, %c0_35] : memref<32x32xbf16, #tpu.memory_space<vmem>>, vector<32x32xbf16>
    %cst_36 = arith.constant dense<0.000000e+00> : vector<8x32xf32>
    %103 = tpu.matmul %101, %102, %cst_36 {dimension_numbers = #tpu.dot_dimension_numbers<[1], [0], [0], [1], [0, 0, 1, 1], [], []>} : vector<8x32xbf16>, vector<32x32xbf16>, vector<8x32xf32> -> vector<8x32xf32>
    %c0_37 = arith.constant 0 : index
    %c0_38 = arith.constant 0 : index
    %104 = vector.load %arg9[%c0_37, %c0_38] : memref<1x32xf32, #tpu.memory_space<vmem>>, vector<1x32xf32>
    %105 = vector.broadcast %104 : vector<1x32xf32> to vector<8x32xf32>
    %106 = arith.addf %103, %105 : vector<8x32xf32>
    %c0_39 = arith.constant 0 : index
    %c0_40 = arith.constant 0 : index
    %107 = vector.load %arg10[%c0_39, %c0_40] : memref<1x32xf32, #tpu.memory_space<vmem>>, vector<1x32xf32>
    %c0_41 = arith.constant 0 : index
    %c0_42 = arith.constant 0 : index
    %108 = vector.load %arg11[%c0_41, %c0_42] : memref<1x32xf32, #tpu.memory_space<vmem>>, vector<1x32xf32>
    %109 = arith.addf %106, %1 : vector<8x32xf32>
    %cst_43 = arith.constant dense<0.000000e+00> : vector<8xf32>
    %110 = vector.multi_reduction <add>, %109, %cst_43 [1] : vector<8x32xf32> to vector<8xf32>
    %111 = vector.shape_cast %110 : vector<8xf32> to vector<8x1xf32>
    %cst_44 = arith.constant 3.200000e+01 : f32
    %112 = vector.broadcast %cst_44 : f32 to vector<8x1xf32>
    %113 = arith.divf %111, %112 : vector<8x1xf32>
    %114 = arith.mulf %109, %109 : vector<8x32xf32>
    %cst_45 = arith.constant dense<0.000000e+00> : vector<8xf32>
    %115 = vector.multi_reduction <add>, %114, %cst_45 [1] : vector<8x32xf32> to vector<8xf32>
    %116 = vector.shape_cast %115 : vector<8xf32> to vector<8x1xf32>
    %cst_46 = arith.constant 3.200000e+01 : f32
    %117 = vector.broadcast %cst_46 : f32 to vector<8x1xf32>
    %118 = arith.divf %116, %117 : vector<8x1xf32>
    %119 = arith.mulf %113, %113 : vector<8x1xf32>
    %120 = arith.subf %118, %119 : vector<8x1xf32>
    %cst_47 = arith.constant 0.000000e+00 : f32
    %121 = vector.broadcast %cst_47 : f32 to vector<8x1xf32>
    %122 = arith.maximumf %120, %121 : vector<8x1xf32>
    %123 = vector.broadcast %113 : vector<8x1xf32> to vector<8x32xf32>
    %124 = arith.subf %109, %123 : vector<8x32xf32>
    %cst_48 = arith.constant 9.99999974E-6 : f32
    %125 = vector.broadcast %cst_48 : f32 to vector<8x1xf32>
    %126 = arith.addf %122, %125 : vector<8x1xf32>
    %127 = math.rsqrt %126 : vector<8x1xf32>
    %128 = vector.broadcast %127 : vector<8x1xf32> to vector<8x32xf32>
    %129 = arith.mulf %124, %128 : vector<8x32xf32>
    %130 = vector.broadcast %107 : vector<1x32xf32> to vector<8x32xf32>
    %131 = arith.mulf %129, %130 : vector<8x32xf32>
    %132 = vector.broadcast %108 : vector<1x32xf32> to vector<8x32xf32>
    %133 = arith.addf %131, %132 : vector<8x32xf32>
    %134 = arith.truncf %133 : vector<8x32xf32> to vector<8x32xbf16>
    %c0_49 = arith.constant 0 : index
    %c0_50 = arith.constant 0 : index
    %135 = vector.load %arg12[%c0_49, %c0_50] : memref<32x128xbf16, #tpu.memory_space<vmem>>, vector<32x128xbf16>
    %cst_51 = arith.constant dense<0.000000e+00> : vector<8x128xf32>
    %136 = tpu.matmul %134, %135, %cst_51 {dimension_numbers = #tpu.dot_dimension_numbers<[1], [0], [0], [1], [0, 0, 1, 1], [], []>} : vector<8x32xbf16>, vector<32x128xbf16>, vector<8x128xf32> -> vector<8x128xf32>
    %c0_52 = arith.constant 0 : index
    %c0_53 = arith.constant 0 : index
    %137 = vector.load %arg13[%c0_52, %c0_53] : memref<1x128xf32, #tpu.memory_space<vmem>>, vector<1x128xf32>
    %138 = vector.broadcast %137 : vector<1x128xf32> to vector<8x128xf32>
    %139 = arith.addf %136, %138 : vector<8x128xf32>
    %140 = arith.mulf %139, %139 : vector<8x128xf32>
    %141 = arith.mulf %139, %140 : vector<8x128xf32>
    %cst_54 = arith.constant 4.471500e-02 : f32
    %142 = vector.broadcast %cst_54 : f32 to vector<8x128xf32>
    %143 = arith.mulf %142, %141 : vector<8x128xf32>
    %144 = arith.addf %139, %143 : vector<8x128xf32>
    %cst_55 = arith.constant 0.797884583 : f32
    %145 = vector.broadcast %cst_55 : f32 to vector<8x128xf32>
    %146 = arith.mulf %145, %144 : vector<8x128xf32>
    %147 = math.tanh %146 : vector<8x128xf32>
    %cst_56 = arith.constant 1.000000e+00 : f32
    %148 = vector.broadcast %cst_56 : f32 to vector<8x128xf32>
    %149 = arith.addf %148, %147 : vector<8x128xf32>
    %cst_57 = arith.constant 5.000000e-01 : f32
    %150 = vector.broadcast %cst_57 : f32 to vector<8x128xf32>
    %151 = arith.mulf %150, %149 : vector<8x128xf32>
    %152 = arith.mulf %139, %151 : vector<8x128xf32>
    %153 = arith.truncf %152 : vector<8x128xf32> to vector<8x128xbf16>
    %c0_58 = arith.constant 0 : index
    %c0_59 = arith.constant 0 : index
    %154 = vector.load %arg14[%c0_58, %c0_59] : memref<128x32xbf16, #tpu.memory_space<vmem>>, vector<128x32xbf16>
    %cst_60 = arith.constant dense<0.000000e+00> : vector<8x32xf32>
    %155 = tpu.matmul %153, %154, %cst_60 {dimension_numbers = #tpu.dot_dimension_numbers<[1], [0], [0], [1], [0, 0, 1, 1], [], []>} : vector<8x128xbf16>, vector<128x32xbf16>, vector<8x32xf32> -> vector<8x32xf32>
    %c0_61 = arith.constant 0 : index
    %c0_62 = arith.constant 0 : index
    %156 = vector.load %arg15[%c0_61, %c0_62] : memref<1x32xf32, #tpu.memory_space<vmem>>, vector<1x32xf32>
    %157 = vector.broadcast %156 : vector<1x32xf32> to vector<8x32xf32>
    %158 = arith.addf %155, %157 : vector<8x32xf32>
    %159 = arith.addf %158, %133 : vector<8x32xf32>
    %cst_63 = arith.constant dense<0.000000e+00> : vector<8xf32>
    %160 = vector.multi_reduction <add>, %159, %cst_63 [1] : vector<8x32xf32> to vector<8xf32>
    %161 = vector.shape_cast %160 : vector<8xf32> to vector<8x1xf32>
    %cst_64 = arith.constant 3.200000e+01 : f32
    %162 = vector.broadcast %cst_64 : f32 to vector<8x1xf32>
    %163 = arith.divf %161, %162 : vector<8x1xf32>
    %164 = arith.mulf %159, %159 : vector<8x32xf32>
    %cst_65 = arith.constant dense<0.000000e+00> : vector<8xf32>
    %165 = vector.multi_reduction <add>, %164, %cst_65 [1] : vector<8x32xf32> to vector<8xf32>
    %166 = vector.shape_cast %165 : vector<8xf32> to vector<8x1xf32>
    %cst_66 = arith.constant 3.200000e+01 : f32
    %167 = vector.broadcast %cst_66 : f32 to vector<8x1xf32>
    %168 = arith.divf %166, %167 : vector<8x1xf32>
    %169 = arith.mulf %163, %163 : vector<8x1xf32>
    %170 = arith.subf %168, %169 : vector<8x1xf32>
    %cst_67 = arith.constant 0.000000e+00 : f32
    %171 = vector.broadcast %cst_67 : f32 to vector<8x1xf32>
    %172 = arith.maximumf %170, %171 : vector<8x1xf32>
    %173 = vector.broadcast %163 : vector<8x1xf32> to vector<8x32xf32>
    %174 = arith.subf %159, %173 : vector<8x32xf32>
    %cst_68 = arith.constant 9.99999974E-6 : f32
    %175 = vector.broadcast %cst_68 : f32 to vector<8x1xf32>
    %176 = arith.addf %172, %175 : vector<8x1xf32>
    %177 = math.rsqrt %176 : vector<8x1xf32>
    %178 = vector.broadcast %177 : vector<8x1xf32> to vector<8x32xf32>
    %179 = arith.mulf %174, %178 : vector<8x32xf32>
    %180 = vector.broadcast %107 : vector<1x32xf32> to vector<8x32xf32>
    %181 = arith.mulf %179, %180 : vector<8x32xf32>
    %182 = vector.broadcast %108 : vector<1x32xf32> to vector<8x32xf32>
    %183 = arith.addf %181, %182 : vector<8x32xf32>
    %c0_69 = arith.constant 0 : index
    %c0_70 = arith.constant 0 : index
    %c0_71 = arith.constant 0 : index
    %184 = vector.load %arg16[%c0_69, %c0_70, %c0_71] : memref<1x8x32xf32, #tpu.memory_space<vmem>>, vector<1x8x32xf32>
    %185 = vector.shape_cast %184 : vector<1x8x32xf32> to vector<8x32xf32>
    %186 = vector.shape_cast %183 : vector<8x32xf32> to vector<1x8x32xf32>
    tpu.vector_store %arg16[%c0_69, %c0_70, %c0_71], %186 {strides = array<i32>} : memref<1x8x32xf32, #tpu.memory_space<vmem>>, vector<1x8x32xf32>,
    return
  }
  func.func @transform_0(%arg0: i32, %arg1: i32) -> (i32, i32, i32) {
    %c0_i32 = arith.constant 0 : i32
    %c0_i32_0 = arith.constant 0 : i32
    %c0_i32_1 = arith.constant 0 : i32
    return %arg0, %c0_i32, %c0_i32_0 : i32, i32, i32
  }
  func.func @transform_1(%arg0: i32, %arg1: i32) -> (i32, i32, i32) {
    %c0_i32 = arith.constant 0 : i32
    %c0_i32_0 = arith.constant 0 : i32
    %c0_i32_1 = arith.constant 0 : i32
    return %arg0, %c0_i32, %c0_i32_0 : i32, i32, i32
  }
  func.func @transform_2(%arg0: i32, %arg1: i32) -> (i32, i32) {
    %c0_i32 = arith.constant 0 : i32
    %c0_i32_0 = arith.constant 0 : i32
    %c0_i32_1 = arith.constant 0 : i32
    return %c0_i32, %c0_i32_0 : i32, i32
  }
  func.func @transform_3(%arg0: i32, %arg1: i32) -> (i32, i32) {
    %c0_i32 = arith.constant 0 : i32
    %c0_i32_0 = arith.constant 0 : i32
    %c0_i32_1 = arith.constant 0 : i32
    return %c0_i32, %c0_i32_0 : i32, i32
  }
  func.func @transform_4(%arg0: i32, %arg1: i32) -> (i32, i32) {
    %c0_i32 = arith.constant 0 : i32
    %c0_i32_0 = arith.constant 0 : i32
    %c0_i32_1 = arith.constant 0 : i32
    return %c0_i32, %c0_i32_0 : i32, i32
  }
  func.func @transform_5(%arg0: i32, %arg1: i32) -> (i32, i32) {
    %c0_i32 = arith.constant 0 : i32
    %c0_i32_0 = arith.constant 0 : i32
    %c0_i32_1 = arith.constant 0 : i32
    return %c0_i32, %c0_i32_0 : i32, i32
  }
  func.func @transform_6(%arg0: i32, %arg1: i32) -> (i32, i32) {
    %c0_i32 = arith.constant 0 : i32
    %c0_i32_0 = arith.constant 0 : i32
    %c0_i32_1 = arith.constant 0 : i32
    return %c0_i32, %c0_i32_0 : i32, i32
  }
  func.func @transform_7(%arg0: i32, %arg1: i32) -> (i32, i32) {
    %c0_i32 = arith.constant 0 : i32
    %c0_i32_0 = arith.constant 0 : i32
    %c0_i32_1 = arith.constant 0 : i32
    return %c0_i32, %c0_i32_0 : i32, i32
  }
  func.func @transform_8(%arg0: i32, %arg1: i32) -> (i32, i32) {
    %c0_i32 = arith.constant 0 : i32
    %c0_i32_0 = arith.constant 0 : i32
    %c0_i32_1 = arith.constant 0 : i32
    return %c0_i32, %c0_i32_0 : i32, i32
  }
  func.func @transform_9(%arg0: i32, %arg1: i32) -> (i32, i32) {
    %c0_i32 = arith.constant 0 : i32
    %c0_i32_0 = arith.constant 0 : i32
    %c0_i32_1 = arith.constant 0 : i32
    return %c0_i32, %c0_i32_0 : i32, i32
  }
  func.func @transform_10(%arg0: i32, %arg1: i32) -> (i32, i32) {
    %c0_i32 = arith.constant 0 : i32
    %c0_i32_0 = arith.constant 0 : i32
    %c0_i32_1 = arith.constant 0 : i32
    return %c0_i32, %c0_i32_0 : i32, i32
  }
  func.func @transform_11(%arg0: i32, %arg1: i32) -> (i32, i32) {
    %c0_i32 = arith.constant 0 : i32
    %c0_i32_0 = arith.constant 0 : i32
    %c0_i32_1 = arith.constant 0 : i32
    return %c0_i32, %c0_i32_0 : i32, i32
  }
  func.func @transform_12(%arg0: i32, %arg1: i32) -> (i32, i32) {
    %c0_i32 = arith.constant 0 : i32
    %c0_i32_0 = arith.constant 0 : i32
    %c0_i32_1 = arith.constant 0 : i32
    return %c0_i32, %c0_i32_0 : i32, i32
  }
  func.func @transform_13(%arg0: i32, %arg1: i32) -> (i32, i32) {
    %c0_i32 = arith.constant 0 : i32
    %c0_i32_0 = arith.constant 0 : i32
    %c0_i32_1 = arith.constant 0 : i32
    return %c0_i32, %c0_i32_0 : i32, i32
  }
  func.func @transform_14(%arg0: i32, %arg1: i32) -> (i32, i32, i32) {
    %c0_i32 = arith.constant 0 : i32
    %c0_i32_0 = arith.constant 0 : i32
    return %arg0, %arg1, %c0_i32 : i32, i32, i32
  }
}

</mosaic_0001>

<llo_original>
// kernel: tpu_custom_call.1
$region0: #{tpu_custom_call.1}
  #allocation0 [shape = 'u32[]', space=smem, size = 0x4, offset = 0x4, fixed_abs, tag = 'smem constant byte address 0x4 - core index']
  #allocation1 [shape = 'u32[144,128]{1,0:T(1,128)}', space=vmem, size = 0x12000, scoped, tag = 'internal scratch']
  %s0 = inlined_call_operand.hbm [shape: f32[2,8,32], index: 0, kind: input, shape index: {}]
  %s1 = inlined_call_operand.hbm [shape: f32[2,1,8], index: 1, kind: input, shape index: {}]
  %s2 = inlined_call_operand.hbm [shape: bf16[32,32], index: 2, kind: input, shape index: {}]
  %s3 = inlined_call_operand.hbm [shape: f32[1,32], index: 3, kind: input, shape index: {}]
  %s4 = inlined_call_operand.hbm [shape: bf16[32,64], index: 4, kind: input, shape index: {}]
  %s5 = inlined_call_operand.hbm [shape: f32[1,64], index: 5, kind: input, shape index: {}]
  %s6 = inlined_call_operand.hbm [shape: bf16[32,32], index: 6, kind: input, shape index: {}]
  %s7 = inlined_call_operand.hbm [shape: f32[1,32], index: 7, kind: input, shape index: {}]
  %s8 = inlined_call_operand.hbm [shape: f32[1,32], index: 8, kind: input, shape index: {}]
  %s9 = inlined_call_operand.hbm [shape: f32[1,32], index: 9, kind: input, shape index: {}]
  %s10 = inlined_call_operand.hbm [shape: bf16[32,128], index: 10, kind: input, shape index: {}]
  %s11 = inlined_call_operand.hbm [shape: f32[1,128], index: 11, kind: input, shape index: {}]
  %s12 = inlined_call_operand.hbm [shape: bf16[128,32], index: 12, kind: input, shape index: {}]
  %s13 = inlined_call_operand.hbm [shape: f32[1,32], index: 13, kind: input, shape index: {}]
  %s14 = inlined_call_operand.hbm [shape: f32[2,8,32], index: 14, kind: output, shape index: {}]
  %s15 = sld [smem:[#allocation0]]
  $region145: #{tpu_custom_call.1} parent=0
    _
  %s17 = ssub.s32 1, %s15
  %s18 = scalar_select 0, %s17, %s15
  $region1: #{tpu_custom_call.1} parent=0
    #allocation2 [shape = 'u8[8192]{0}', space=vmem, size = 0x2000, scoped, tag = 'input window, operand 0']
    #allocation3 [shape = 's32[2]{0}', space=sflag, size = 0x8, scoped, tag = 'scoped memory for tpu_custom_call.1']
    #allocation4 [shape = 's32[2]{0}', space=sflag, size = 0x8, scoped, tag = 'scoped memory for tpu_custom_call.1']
    #allocation5 [shape = 'u8[1024]{0}', space=vmem, size = 0x400, scoped, tag = 'input window, operand 1']
    #allocation6 [shape = 's32[2]{0}', space=sflag, size = 0x8, scoped, tag = 'scoped memory for tpu_custom_call.1']
    #allocation7 [shape = 'u8[8192]{0}', space=vmem, size = 0x2000, scoped, tag = 'input window, operand 2, single buffered']
    #allocation8 [shape = 'u8[512]{0}', space=vmem, size = 0x400, scoped, tag = 'input window, operand 3, single buffered']
    #allocation9 [shape = 's32[1]{0}', space=sflag, size = 0x4, scoped, tag = 'scoped memory for tpu_custom_call.1']
    #allocation10 [shape = 'u8[8192]{0}', space=vmem, size = 0x2000, scoped, tag = 'input window, operand 4, single buffered']
    #allocation11 [shape = 'u8[512]{0}', space=vmem, size = 0x400, scoped, tag = 'input window, operand 5, single buffered']
    #allocation12 [shape = 's32[1]{0}', space=sflag, size = 0x4, scoped, tag = 'scoped memory for tpu_custom_call.1']
    #allocation13 [shape = 'u8[8192]{0}', space=vmem, size = 0x2000, scoped, tag = 'input window, operand 6, single buffered']
    #allocation14 [shape = 'u8[512]{0}', space=vmem, size = 0x400, scoped, tag = 'input window, operand 7, single buffered']
    #allocation15 [shape = 's32[1]{0}', space=sflag, size = 0x4, scoped, tag = 'scoped memory for tpu_custom_call.1']
    #allocation16 [shape = 'u8[512]{0}', space=vmem, size = 0x400, scoped, tag = 'input window, operand 8, single buffered']
    #allocation17 [shape = 'u8[512]{0}', space=vmem, size = 0x400, scoped, tag = 'input window, operand 9, single buffered']
    #allocation18 [shape = 's32[1]{0}', space=sflag, size = 0x4, scoped, tag = 'scoped memory for tpu_custom_call.1']
    #allocation19 [shape = 'u8[8192]{0}', space=vmem, size = 0x2000, scoped, tag = 'input window, operand 10, single buffered']
    #allocation20 [shape = 'u8[512]{0}', space=vmem, size = 0x400, scoped, tag = 'input window, operand 11, single buffered']
    #allocation21 [shape = 's32[1]{0}', space=sflag, size = 0x4, scoped, tag = 'scoped memory for tpu_custom_call.1']
    #allocation22 [shape = 'u8[32768]{0}', space=vmem, size = 0x8000, scoped, tag = 'input window, operand 12, single buffered']
    #allocation23 [shape = 'u8[512]{0}', space=vmem, size = 0x400, scoped, tag = 'input window, operand 13, single buffered']
    #allocation24 [shape = 's32[1]{0}', space=sflag, size = 0x4, scoped, tag = 'scoped memory for tpu_custom_call.1']
    #allocation25 [shape = 'u8[8192]{0}', space=vmem, size = 0x2000, scoped, tag = 'output window, operand 0']
    %19 = vsyncpa [#allocation3], 0
    %s20 = scalar_lea.sflag [#allocation3], 1
    %21 = vsyncpa %s20, 0
    %22 = vsyncpa [#allocation6], 0
    %s23 = scalar_lea.sflag [#allocation6], 1
    %24 = vsyncpa %s23, 0
    %25 = vsyncpa [#allocation9], 0
    %26 = vsyncpa [#allocation12], 0
    %27 = vsyncpa [#allocation15], 0
    %28 = vsyncpa [#allocation18], 0
    %29 = vsyncpa [#allocation21], 0
    %30 = vsyncpa [#allocation24], 0
    %31 = vsyncpa [#allocation4], 0
    %s32 = scalar_lea.sflag [#allocation4], 1
    %33 = vsyncpa %s32, 0
    loop: start=0, step=1, limit=4
    $region2: #{tpu_custom_call.1} parent=1 // loop_pre_header
      _
    $region3: #{tpu_custom_call.1} parent=1 // loop_header
      %s35 = sphi 0, %s39
      %p36 = scmp.ge.s32.totalorder %s35, 4
      %s42 = sphi 0, %s54
      %s43 = sphi 0, %s50
      %s44 = sphi 0, %s42
      %s45 = sphi 0, %s43
      %s46 = sphi 0, %s44
      %s47 = sphi 0, %s45
      %s57 = sphi 0, %s59
      %s60 = sphi 0, %s57
      %s61 = sphi 0, %s60
      %s77 = sphi 0, %s61
      %s83 = sphi 0, %s85
      %s86 = sphi 0, %s83
      %s87 = sphi 0, %s86
      %s103 = sphi 0, %s87
      %s107 = sphi 0, %s107
      %s109 = sphi 0, %s107
      %s110 = sphi 0, %s109
      %s124 = sphi 0, %s110
      %s128 = sphi 0, %s128
      %s130 = sphi 0, %s128
      %s131 = sphi 0, %s130
      %s145 = sphi 0, %s131
      %s149 = sphi 0, %s149
      %s151 = sphi 0, %s149
      %s152 = sphi 0, %s151
      %s166 = sphi 0, %s152
      %s170 = sphi 0, %s170
      %s172 = sphi 0, %s170
      %s173 = sphi 0, %s172
      %s187 = sphi 0, %s173
      %s191 = sphi 0, %s191
      %s193 = sphi 0, %s191
      %s194 = sphi 0, %s193
      %s208 = sphi 0, %s194
      %s212 = sphi 0, %s212
      %s214 = sphi 0, %s212
      %s215 = sphi 0, %s214
      %s229 = sphi 0, %s215
      %s233 = sphi 0, %s233
      %s235 = sphi 0, %s233
      %s236 = sphi 0, %s235
      %s250 = sphi 0, %s236
      %s254 = sphi 0, %s254
      %s256 = sphi 0, %s254
      %s257 = sphi 0, %s256
      %s271 = sphi 0, %s257
      %s275 = sphi 0, %s275
      %s277 = sphi 0, %s275
      %s278 = sphi 0, %s277
      %s292 = sphi 0, %s278
      %s296 = sphi 0, %s296
      %s298 = sphi 0, %s296
      %s299 = sphi 0, %s298
      %s313 = sphi 0, %s299
      %s317 = sphi 0, %s317
      %s319 = sphi 0, %s317
      %s320 = sphi 0, %s319
      %s334 = sphi 0, %s320
      %s338 = sphi 0, %s338
      %s340 = sphi 0, %s338
      %s341 = sphi 0, %s340
      %s355 = sphi 0, %s341
      %s363 = sphi 0, %s365
      %s366 = sphi 0, %s363
      %s367 = sphi 0, %s366
      %s383 = sphi 0, %s367
    $region4: #{tpu_custom_call.1} parent=1 // loop_header_branch
      %38 = sbr.rel (%p36) target = $region8
    $region5: #{tpu_custom_call.1} parent=1 // loop_body
      %s40 = ssub.s32 %s35, 1
      %s41 = ssub.s32 %s35, 2
      %s48 = sadd.s32 1, %s43
      %p49 = scmp.ge.s32.totalorder %s48, 1
      %s50 = scalar_select %p49, 0, %s48
      %s51 = sadd.s32 1, %s42
      %s52 = scalar_select %p49, %s51, %s42
      %p53 = scmp.ge.s32.totalorder %s52, 2
      %s54 = scalar_select %p53, 0, %s52
      %s55 = ssub.s32 %s42, %s54
      %p56 = scmp.eq.s32.totalorder %s55, 0
      %s58 = sadd.s32 %s57, 1
      %s59 = scalar_select %p56, %s57, %s58
      %p62 = pneg %p56
      %p63 = scmp.eq.s32.totalorder %s35, 1
      %p64 = por %p62, %p63
      %p65 = scmp.ne.s32.totalorder %s57, %s60
      %p66 = scmp.eq.s32.totalorder %s35, 0
      %p67 = por %p65, %p66
      %p68 = scmp.ne.s32.totalorder %s57, %s60
      %p69 = scmp.eq.s32.totalorder %s40, 1
      %p70 = por %p68, %p69
      %p71 = scmp.ne.s32.totalorder %s60, %s61
      %p72 = scmp.eq.s32.totalorder %s40, 0
      %p73 = por %p71, %p72
      %p74 = scmp.ne.s32.totalorder %s60, %s61
      %p75 = scmp.eq.s32.totalorder %s41, 1
      %p76 = por %p74, %p75
      %p78 = scmp.ne.s32.totalorder %s61, %s77
      %p79 = scmp.eq.s32.totalorder %s41, 0
      %p80 = por %p78, %p79
      %s81 = ssub.s32 %s42, %s54
      %p82 = scmp.eq.s32.totalorder %s81, 0
      %s84 = sadd.s32 %s83, 1
      %s85 = scalar_select %p82, %s83, %s84
      %p88 = pneg %p82
      %p89 = scmp.eq.s32.totalorder %s35, 1
      %p90 = por %p88, %p89
      %p91 = scmp.ne.s32.totalorder %s83, %s86
      %p92 = scmp.eq.s32.totalorder %s35, 0
      %p93 = por %p91, %p92
      %p94 = scmp.ne.s32.totalorder %s83, %s86
      %p95 = scmp.eq.s32.totalorder %s40, 1
      %p96 = por %p94, %p95
      %p97 = scmp.ne.s32.totalorder %s86, %s87
      %p98 = scmp.eq.s32.totalorder %s40, 0
      %p99 = por %p97, %p98
      %p100 = scmp.ne.s32.totalorder %s86, %s87
      %p101 = scmp.eq.s32.totalorder %s41, 1
      %p102 = por %p100, %p101
      %p104 = scmp.ne.s32.totalorder %s87, %s103
      %p105 = scmp.eq.s32.totalorder %s41, 0
      %p106 = por %p104, %p105
      %s108 = sadd.s32 %s107, 1
      %p111 = scmp.eq.s32.totalorder %s35, 1
      %p112 = scmp.ne.s32.totalorder %s107, %s109
      %p113 = scmp.eq.s32.totalorder %s35, 0
      %p114 = por %p112, %p113
      %p115 = scmp.ne.s32.totalorder %s107, %s109
      %p116 = scmp.eq.s32.totalorder %s40, 1
      %p117 = por %p115, %p116
      %p118 = scmp.ne.s32.totalorder %s109, %s110
      %p119 = scmp.eq.s32.totalorder %s40, 0
      %p120 = por %p118, %p119
      %p121 = scmp.ne.s32.totalorder %s109, %s110
      %p122 = scmp.eq.s32.totalorder %s41, 1
      %p123 = por %p121, %p122
      %p125 = scmp.ne.s32.totalorder %s110, %s124
      %p126 = scmp.eq.s32.totalorder %s41, 0
      %p127 = por %p125, %p126
      %s129 = sadd.s32 %s128, 1
      %p132 = scmp.eq.s32.totalorder %s35, 1
      %p133 = scmp.ne.s32.totalorder %s128, %s130
      %p134 = scmp.eq.s32.totalorder %s35, 0
      %p135 = por %p133, %p134
      %p136 = scmp.ne.s32.totalorder %s128, %s130
      %p137 = scmp.eq.s32.totalorder %s40, 1
      %p138 = por %p136, %p137
      %p139 = scmp.ne.s32.totalorder %s130, %s131
      %p140 = scmp.eq.s32.totalorder %s40, 0
      %p141 = por %p139, %p140
      %p142 = scmp.ne.s32.totalorder %s130, %s131
      %p143 = scmp.eq.s32.totalorder %s41, 1
      %p144 = por %p142, %p143
      %p146 = scmp.ne.s32.totalorder %s131, %s145
      %p147 = scmp.eq.s32.totalorder %s41, 0
      %p148 = por %p146, %p147
      %s150 = sadd.s32 %s149, 1
      %p153 = scmp.eq.s32.totalorder %s35, 1
      %p154 = scmp.ne.s32.totalorder %s149, %s151
      %p155 = scmp.eq.s32.totalorder %s35, 0
      %p156 = por %p154, %p155
      %p157 = scmp.ne.s32.totalorder %s149, %s151
      %p158 = scmp.eq.s32.totalorder %s40, 1
      %p159 = por %p157, %p158
      %p160 = scmp.ne.s32.totalorder %s151, %s152
      %p161 = scmp.eq.s32.totalorder %s40, 0
      %p162 = por %p160, %p161
      %p163 = scmp.ne.s32.totalorder %s151, %s152
      %p164 = scmp.eq.s32.totalorder %s41, 1
      %p165 = por %p163, %p164
      %p167 = scmp.ne.s32.totalorder %s152, %s166
      %p168 = scmp.eq.s32.totalorder %s41, 0
      %p169 = por %p167, %p168
      %s171 = sadd.s32 %s170, 1
      %p174 = scmp.eq.s32.totalorder %s35, 1
      %p175 = scmp.ne.s32.totalorder %s170, %s172
      %p176 = scmp.eq.s32.totalorder %s35, 0
      %p177 = por %p175, %p176
      %p178 = scmp.ne.s32.totalorder %s170, %s172
      %p179 = scmp.eq.s32.totalorder %s40, 1
      %p180 = por %p178, %p179
      %p181 = scmp.ne.s32.totalorder %s172, %s173
      %p182 = scmp.eq.s32.totalorder %s40, 0
      %p183 = por %p181, %p182
      %p184 = scmp.ne.s32.totalorder %s172, %s173
      %p185 = scmp.eq.s32.totalorder %s41, 1
      %p186 = por %p184, %p185
      %p188 = scmp.ne.s32.totalorder %s173, %s187
      %p189 = scmp.eq.s32.totalorder %s41, 0
      %p190 = por %p188, %p189
      %s192 = sadd.s32 %s191, 1
      %p195 = scmp.eq.s32.totalorder %s35, 1
      %p196 = scmp.ne.s32.totalorder %s191, %s193
      %p197 = scmp.eq.s32.totalorder %s35, 0
      %p198 = por %p196, %p197
      %p199 = scmp.ne.s32.totalorder %s191, %s193
      %p200 = scmp.eq.s32.totalorder %s40, 1
      %p201 = por %p199, %p200
      %p202 = scmp.ne.s32.totalorder %s193, %s194
      %p203 = scmp.eq.s32.totalorder %s40, 0
      %p204 = por %p202, %p203
      %p205 = scmp.ne.s32.totalorder %s193, %s194
      %p206 = scmp.eq.s32.totalorder %s41, 1
      %p207 = por %p205, %p206
      %p209 = scmp.ne.s32.totalorder %s194, %s208
      %p210 = scmp.eq.s32.totalorder %s41, 0
      %p211 = por %p209, %p210
      %s213 = sadd.s32 %s212, 1
      %p216 = scmp.eq.s32.totalorder %s35, 1
      %p217 = scmp.ne.s32.totalorder %s212, %s214
      %p218 = scmp.eq.s32.totalorder %s35, 0
      %p219 = por %p217, %p218
      %p220 = scmp.ne.s32.totalorder %s212, %s214
      %p221 = scmp.eq.s32.totalorder %s40, 1
      %p222 = por %p220, %p221
      %p223 = scmp.ne.s32.totalorder %s214, %s215
      %p224 = scmp.eq.s32.totalorder %s40, 0
      %p225 = por %p223, %p224
      %p226 = scmp.ne.s32.totalorder %s214, %s215
      %p227 = scmp.eq.s32.totalorder %s41, 1
      %p228 = por %p226, %p227
      %p230 = scmp.ne.s32.totalorder %s215, %s229
      %p231 = scmp.eq.s32.totalorder %s41, 0
      %p232 = por %p230, %p231
      %s234 = sadd.s32 %s233, 1
      %p237 = scmp.eq.s32.totalorder %s35, 1
      %p238 = scmp.ne.s32.totalorder %s233, %s235
      %p239 = scmp.eq.s32.totalorder %s35, 0
      %p240 = por %p238, %p239
      %p241 = scmp.ne.s32.totalorder %s233, %s235
      %p242 = scmp.eq.s32.totalorder %s40, 1
      %p243 = por %p241, %p242
      %p244 = scmp.ne.s32.totalorder %s235, %s236
      %p245 = scmp.eq.s32.totalorder %s40, 0
      %p246 = por %p244, %p245
      %p247 = scmp.ne.s32.totalorder %s235, %s236
      %p248 = scmp.eq.s32.totalorder %s41, 1
      %p249 = por %p247, %p248
      %p251 = scmp.ne.s32.totalorder %s236, %s250
      %p252 = scmp.eq.s32.totalorder %s41, 0
      %p253 = por %p251, %p252
      %s255 = sadd.s32 %s254, 1
      %p258 = scmp.eq.s32.totalorder %s35, 1
      %p259 = scmp.ne.s32.totalorder %s254, %s256
      %p260 = scmp.eq.s32.totalorder %s35, 0
      %p261 = por %p259, %p260
      %p262 = scmp.ne.s32.totalorder %s254, %s256
      %p263 = scmp.eq.s32.totalorder %s40, 1
      %p264 = por %p262, %p263
      %p265 = scmp.ne.s32.totalorder %s256, %s257
      %p266 = scmp.eq.s32.totalorder %s40, 0
      %p267 = por %p265, %p266
      %p268 = scmp.ne.s32.totalorder %s256, %s257
      %p269 = scmp.eq.s32.totalorder %s41, 1
      %p270 = por %p268, %p269
      %p272 = scmp.ne.s32.totalorder %s257, %s271
      %p273 = scmp.eq.s32.totalorder %s41, 0
      %p274 = por %p272, %p273
      %s276 = sadd.s32 %s275, 1
      %p279 = scmp.eq.s32.totalorder %s35, 1
      %p280 = scmp.ne.s32.totalorder %s275, %s277
      %p281 = scmp.eq.s32.totalorder %s35, 0
      %p282 = por %p280, %p281
      %p283 = scmp.ne.s32.totalorder %s275, %s277
      %p284 = scmp.eq.s32.totalorder %s40, 1
      %p285 = por %p283, %p284
      %p286 = scmp.ne.s32.totalorder %s277, %s278
      %p287 = scmp.eq.s32.totalorder %s40, 0
      %p288 = por %p286, %p287
      %p289 = scmp.ne.s32.totalorder %s277, %s278
      %p290 = scmp.eq.s32.totalorder %s41, 1
      %p291 = por %p289, %p290
      %p293 = scmp.ne.s32.totalorder %s278, %s292
      %p294 = scmp.eq.s32.totalorder %s41, 0
      %p295 = por %p293, %p294
      %s297 = sadd.s32 %s296, 1
      %p300 = scmp.eq.s32.totalorder %s35, 1
      %p301 = scmp.ne.s32.totalorder %s296, %s298
      %p302 = scmp.eq.s32.totalorder %s35, 0
      %p303 = por %p301, %p302
      %p304 = scmp.ne.s32.totalorder %s296, %s298
      %p305 = scmp.eq.s32.totalorder %s40, 1
      %p306 = por %p304, %p305
      %p307 = scmp.ne.s32.totalorder %s298, %s299
      %p308 = scmp.eq.s32.totalorder %s40, 0
      %p309 = por %p307, %p308
      %p310 = scmp.ne.s32.totalorder %s298, %s299
      %p311 = scmp.eq.s32.totalorder %s41, 1
      %p312 = por %p310, %p311
      %p314 = scmp.ne.s32.totalorder %s299, %s313
      %p315 = scmp.eq.s32.totalorder %s41, 0
      %p316 = por %p314, %p315
      %s318 = sadd.s32 %s317, 1
      %p321 = scmp.eq.s32.totalorder %s35, 1
      %p322 = scmp.ne.s32.totalorder %s317, %s319
      %p323 = scmp.eq.s32.totalorder %s35, 0
      %p324 = por %p322, %p323
      %p325 = scmp.ne.s32.totalorder %s317, %s319
      %p326 = scmp.eq.s32.totalorder %s40, 1
      %p327 = por %p325, %p326
      %p328 = scmp.ne.s32.totalorder %s319, %s320
      %p329 = scmp.eq.s32.totalorder %s40, 0
      %p330 = por %p328, %p329
      %p331 = scmp.ne.s32.totalorder %s319, %s320
      %p332 = scmp.eq.s32.totalorder %s41, 1
      %p333 = por %p331, %p332
      %p335 = scmp.ne.s32.totalorder %s320, %s334
      %p336 = scmp.eq.s32.totalorder %s41, 0
      %p337 = por %p335, %p336
      %s339 = sadd.s32 %s338, 1
      %p342 = scmp.eq.s32.totalorder %s35, 1
      %p343 = scmp.ne.s32.totalorder %s338, %s340
      %p344 = scmp.eq.s32.totalorder %s35, 0
      %p345 = por %p343, %p344
      %p346 = scmp.ne.s32.totalorder %s338, %s340
      %p347 = scmp.eq.s32.totalorder %s40, 1
      %p348 = por %p346, %p347
      %p349 = scmp.ne.s32.totalorder %s340, %s341
      %p350 = scmp.eq.s32.totalorder %s40, 0
      %p351 = por %p349, %p350
      %p352 = scmp.ne.s32.totalorder %s340, %s341
      %p353 = scmp.eq.s32.totalorder %s41, 1
      %p354 = por %p352, %p353
      %p356 = scmp.ne.s32.totalorder %s341, %s355
      %p357 = scmp.eq.s32.totalorder %s41, 0
      %p358 = por %p356, %p357
      %s359 = ssub.s32 %s42, %s54
      %s360 = ssub.s32 %s43, %s50
      %s361 = sor.u32 %s359, %s360
      %p362 = scmp.eq.s32.totalorder %s361, 0
      %s364 = sadd.s32 %s363, 1
      %s365 = scalar_select %p362, %s363, %s364
      %p368 = pneg %p362
      %p369 = scmp.eq.s32.totalorder %s35, 1
      %p370 = por %p368, %p369
      %p371 = scmp.ne.s32.totalorder %s363, %s366
      %p372 = scmp.eq.s32.totalorder %s35, 0
      %p373 = por %p371, %p372
      %p374 = scmp.ne.s32.totalorder %s363, %s366
      %p375 = scmp.eq.s32.totalorder %s40, 1
      %p376 = por %p374, %p375
      %p377 = scmp.ne.s32.totalorder %s366, %s367
      %p378 = scmp.eq.s32.totalorder %s40, 0
      %p379 = por %p377, %p378
      %p380 = scmp.ne.s32.totalorder %s366, %s367
      %p381 = scmp.eq.s32.totalorder %s41, 1
      %p382 = por %p380, %p381
      %p384 = scmp.ne.s32.totalorder %s367, %s383
      %p385 = scmp.eq.s32.totalorder %s41, 0
      %p386 = por %p384, %p385
      %p387 = scmp.le.s32.totalorder 1, %s35
      %p388 = scmp.lt.s32.totalorder %s35, 3
      %p389 = pnand %p387, %p388
      %p390 = pneg %p389
      // Predicated region
      $region9: #{tpu_custom_call.1} parent=5 // pred_check
        _
      $region10: #{tpu_custom_call.1} parent=5 // pred_check_branch
        %392 = sbr.rel (%p389) target = $region12
      $region11: #{tpu_custom_call.1} parent=5 // pred_region
        %s393 = ssub.s32 %s35, 1
        // Predicated region
        $region13: #{tpu_custom_call.1} parent=11 // pred_check
          %p394 = pneg %p120
        $region14: #{tpu_custom_call.1} parent=11 // pred_check_branch
          %396 = sbr.rel (%p394) target = $region16
        $region15: #{tpu_custom_call.1} parent=11 // pred_region
          %s398 = ssub.s32 256, 256
          %399 = vsyncadd [#allocation6], %s398
          %s400 = sshll.u32 [#allocation7], 4
          %s401 = int_to_ptr.vmem [resolvable:$true] %s400
          %406 = dma.hbm_to_vmem [thread:$0]  %s2, 256, %s401, [#allocation6], 64, 64, 4
        $region16: #{tpu_custom_call.1} parent=11 // pred_fallthru
          _
        // Predicated region
        $region17: #{tpu_custom_call.1} parent=11 // pred_check
          %p407 = pneg %p141
        $region18: #{tpu_custom_call.1} parent=11 // pred_check_branch
          %409 = sbr.rel (%p407) target = $region20
        $region19: #{tpu_custom_call.1} parent=11 // pred_region
          %s411 = ssub.s32 16, 16
          %412 = vsyncadd [#allocation9], %s411
          %s414 = sshll.u32 [#allocation8], 4
          %s415 = int_to_ptr.vmem [resolvable:$true] %s414
          %417 = dma.hbm_to_vmem [thread:$0]  %s3, 16, %s415, [#allocation9]
        $region20: #{tpu_custom_call.1} parent=11 // pred_fallthru
          _
        // Predicated region
        $region21: #{tpu_custom_call.1} parent=11 // pred_check
          %p418 = pneg %p162
        $region22: #{tpu_custom_call.1} parent=11 // pred_check_branch
          %420 = sbr.rel (%p418) target = $region24
        $region23: #{tpu_custom_call.1} parent=11 // pred_region
          %s422 = ssub.s32 256, 256
          %423 = vsyncadd [#allocation9], %s422
          %s424 = sshll.u32 [#allocation10], 4
          %s425 = int_to_ptr.vmem [resolvable:$true] %s424
          %430 = dma.hbm_to_vmem [thread:$0]  %s4, 256, %s425, [#allocation9], 64, 64, 4
        $region24: #{tpu_custom_call.1} parent=11 // pred_fallthru
          _
        // Predicated region
        $region25: #{tpu_custom_call.1} parent=11 // pred_check
          %p431 = pneg %p183
        $region26: #{tpu_custom_call.1} parent=11 // pred_check_branch
          %433 = sbr.rel (%p431) target = $region28
        $region27: #{tpu_custom_call.1} parent=11 // pred_region
          %s435 = ssub.s32 16, 16
          %436 = vsyncadd [#allocation12], %s435
          %s438 = sshll.u32 [#allocation11], 4
          %s439 = int_to_ptr.vmem [resolvable:$true] %s438
          %441 = dma.hbm_to_vmem [thread:$0]  %s5, 16, %s439, [#allocation12]
        $region28: #{tpu_custom_call.1} parent=11 // pred_fallthru
          _
        // Predicated region
        $region29: #{tpu_custom_call.1} parent=11 // pred_check
          %p442 = pneg %p204
        $region30: #{tpu_custom_call.1} parent=11 // pred_check_branch
          %444 = sbr.rel (%p442) target = $region32
        $region31: #{tpu_custom_call.1} parent=11 // pred_region
          %s446 = ssub.s32 256, 256
          %447 = vsyncadd [#allocation12], %s446
          %s448 = sshll.u32 [#allocation13], 4
          %s449 = int_to_ptr.vmem [resolvable:$true] %s448
          %454 = dma.hbm_to_vmem [thread:$0]  %s6, 256, %s449, [#allocation12], 64, 64, 4
        $region32: #{tpu_custom_call.1} parent=11 // pred_fallthru
          _
        // Predicated region
        $region33: #{tpu_custom_call.1} parent=11 // pred_check
          %p455 = pneg %p225
        $region34: #{tpu_custom_call.1} parent=11 // pred_check_branch
          %457 = sbr.rel (%p455) target = $region36
        $region35: #{tpu_custom_call.1} parent=11 // pred_region
          %s459 = ssub.s32 16, 16
          %460 = vsyncadd [#allocation15], %s459
          %s462 = sshll.u32 [#allocation14], 4
          %s463 = int_to_ptr.vmem [resolvable:$true] %s462
          %465 = dma.hbm_to_vmem [thread:$0]  %s7, 16, %s463, [#allocation15]
        $region36: #{tpu_custom_call.1} parent=11 // pred_fallthru
          _
        // Predicated region
        $region37: #{tpu_custom_call.1} parent=11 // pred_check
          %p466 = pneg %p246
        $region38: #{tpu_custom_call.1} parent=11 // pred_check_branch
          %468 = sbr.rel (%p466) target = $region40
        $region39: #{tpu_custom_call.1} parent=11 // pred_region
          %s470 = ssub.s32 16, 16
          %471 = vsyncadd [#allocation15], %s470
          %s473 = sshll.u32 [#allocation16], 4
          %s474 = int_to_ptr.vmem [resolvable:$true] %s473
          %476 = dma.hbm_to_vmem [thread:$0]  %s8, 16, %s474, [#allocation15]
        $region40: #{tpu_custom_call.1} parent=11 // pred_fallthru
          _
        // Predicated region
        $region41: #{tpu_custom_call.1} parent=11 // pred_check
          %p477 = pneg %p267
        $region42: #{tpu_custom_call.1} parent=11 // pred_check_branch
          %479 = sbr.rel (%p477) target = $region44
        $region43: #{tpu_custom_call.1} parent=11 // pred_region
          %s481 = ssub.s32 16, 16
          %482 = vsyncadd [#allocation18], %s481
          %s484 = sshll.u32 [#allocation17], 4
          %s485 = int_to_ptr.vmem [resolvable:$true] %s484
          %487 = dma.hbm_to_vmem [thread:$0]  %s9, 16, %s485, [#allocation18]
        $region44: #{tpu_custom_call.1} parent=11 // pred_fallthru
          _
        // Predicated region
        $region45: #{tpu_custom_call.1} parent=11 // pred_check
          %p488 = pneg %p288
        $region46: #{tpu_custom_call.1} parent=11 // pred_check_branch
          %490 = sbr.rel (%p488) target = $region48
        $region47: #{tpu_custom_call.1} parent=11 // pred_region
          %s492 = ssub.s32 256, 256
          %493 = vsyncadd [#allocation18], %s492
          %s494 = sshll.u32 [#allocation19], 4
          %s495 = int_to_ptr.vmem [resolvable:$true] %s494
          %500 = dma.hbm_to_vmem [thread:$0]  %s10, 256, %s495, [#allocation18], 64, 64, 4
        $region48: #{tpu_custom_call.1} parent=11 // pred_fallthru
          _
        // Predicated region
        $region49: #{tpu_custom_call.1} parent=11 // pred_check
          %p501 = pneg %p309
        $region50: #{tpu_custom_call.1} parent=11 // pred_check_branch
          %503 = sbr.rel (%p501) target = $region52
        $region51: #{tpu_custom_call.1} parent=11 // pred_region
          %s505 = ssub.s32 16, 16
          %506 = vsyncadd [#allocation21], %s505
          %s508 = sshll.u32 [#allocation20], 4
          %s509 = int_to_ptr.vmem [resolvable:$true] %s508
          %511 = dma.hbm_to_vmem [thread:$0]  %s11, 16, %s509, [#allocation21]
        $region52: #{tpu_custom_call.1} parent=11 // pred_fallthru
          _
        // Predicated region
        $region53: #{tpu_custom_call.1} parent=11 // pred_check
          %p512 = pneg %p330
        $region54: #{tpu_custom_call.1} parent=11 // pred_check_branch
          %514 = sbr.rel (%p512) target = $region56
        $region55: #{tpu_custom_call.1} parent=11 // pred_region
          %s516 = ssub.s32 1024, 1024
          %517 = vsyncadd [#allocation21], %s516
          %s518 = sshll.u32 [#allocation22], 4
          %s519 = int_to_ptr.vmem [resolvable:$true] %s518
          %524 = dma.hbm_to_vmem [thread:$0]  %s12, 1024, %s519, [#allocation21], 64, 64, 4
        $region56: #{tpu_custom_call.1} parent=11 // pred_fallthru
          _
        // Predicated region
        $region57: #{tpu_custom_call.1} parent=11 // pred_check
          %p525 = pneg %p351
        $region58: #{tpu_custom_call.1} parent=11 // pred_check_branch
          %527 = sbr.rel (%p525) target = $region60
        $region59: #{tpu_custom_call.1} parent=11 // pred_region
          %s529 = ssub.s32 16, 16
          %530 = vsyncadd [#allocation24], %s529
          %s532 = sshll.u32 [#allocation23], 4
          %s533 = int_to_ptr.vmem [resolvable:$true] %s532
          %535 = dma.hbm_to_vmem [thread:$0]  %s13, 16, %s533, [#allocation24]
        $region60: #{tpu_custom_call.1} parent=11 // pred_fallthru
          _
      $region12: #{tpu_custom_call.1} parent=5 // pred_fallthru
        _
      %p536 = scmp.lt.s32.totalorder %s35, 2
      // Predicated region
      $region61: #{tpu_custom_call.1} parent=5 // pred_check
        %p537 = pneg %p536
      $region62: #{tpu_custom_call.1} parent=5 // pred_check_branch
        %539 = sbr.rel (%p537) target = $region64
      $region63: #{tpu_custom_call.1} parent=5 // pred_region
        // Predicated region
        $region65: #{tpu_custom_call.1} parent=63 // pred_check
          %p540 = pneg %p67
        $region66: #{tpu_custom_call.1} parent=63 // pred_check_branch
          %542 = sbr.rel (%p540) target = $region68
        $region67: #{tpu_custom_call.1} parent=63 // pred_region
          %s543 = sand.u32 %s57, 1
          %s544 = scalar_lea.sflag [#allocation3], %s543
          %s545 = sand.u32 %s57, 1
          %s546 = smul.addr %s545, 8
          %s547 = scalar_lea.vmem [#allocation2], %s546
          %s549 = ssub.s32 128, 128
          %550 = vsyncadd %s544, %s549
          %s551 = smul.addr %s42, 128
          %s552 = scalar_lea.hbm %s0, %s551
          %s554 = sshll.u32 %s547, 4
          %s555 = int_to_ptr.vmem [resolvable:$true] %s554
          %557 = dma.hbm_to_vmem [thread:$0]  %s552, 128, %s555, %s544
        $region68: #{tpu_custom_call.1} parent=63 // pred_fallthru
          _
        // Predicated region
        $region69: #{tpu_custom_call.1} parent=63 // pred_check
          %p558 = pneg %p93
        $region70: #{tpu_custom_call.1} parent=63 // pred_check_branch
          %560 = sbr.rel (%p558) target = $region72
        $region71: #{tpu_custom_call.1} parent=63 // pred_region
          %s561 = sand.u32 %s35, 1
          %s562 = scalar_lea.sflag [#allocation6], %s561
          %s563 = sand.u32 %s83, 1
          %s564 = scalar_lea.vmem [#allocation5], %s563
          %s566 = ssub.s32 16, 16
          %567 = vsyncadd %s562, %s566
          %s568 = smul.addr %s42, 16
          %s569 = scalar_lea.hbm %s1, %s568
          %s571 = sshll.u32 %s564, 4
          %s572 = int_to_ptr.vmem [resolvable:$true] %s571
          %574 = dma.hbm_to_vmem [thread:$0]  %s569, 16, %s572, %s562
        $region72: #{tpu_custom_call.1} parent=63 // pred_fallthru
          _
      $region64: #{tpu_custom_call.1} parent=5 // pred_fallthru
        _
      %p575 = scmp.le.s32.totalorder 1, %s35
      %p576 = scmp.lt.s32.totalorder %s35, 3
      %p577 = pnand %p575, %p576
      %p578 = pneg %p577
      // Predicated region
      $region73: #{tpu_custom_call.1} parent=5 // pred_check
        _
      $region74: #{tpu_custom_call.1} parent=5 // pred_check_branch
        %580 = sbr.rel (%p577) target = $region76
      $region75: #{tpu_custom_call.1} parent=5 // pred_region
        %s581 = ssub.s32 %s35, 1
        %s582 = sand.u32 %s60, 1
        %s583 = scalar_lea.sflag [#allocation3], %s582
        %s584 = sand.u32 %s60, 1
        %s585 = smul.addr %s584, 8
        %s586 = scalar_lea.vmem [#allocation2], %s585
        // Predicated region
        $region77: #{tpu_custom_call.1} parent=75 // pred_check
          %p587 = pneg %p73
        $region78: #{tpu_custom_call.1} parent=75 // pred_check_branch
          %589 = sbr.rel (%p587) target = $region80
        $region79: #{tpu_custom_call.1} parent=75 // pred_region
          %590 = dma.done %s583, 128
        $region80: #{tpu_custom_call.1} parent=75 // pred_fallthru
          _
        %s591 = sand.u32 %s40, 1
        %s592 = scalar_lea.sflag [#allocation6], %s591
        %s593 = sand.u32 %s86, 1
        %s594 = scalar_lea.vmem [#allocation5], %s593
        // Predicated region
        $region81: #{tpu_custom_call.1} parent=75 // pred_check
          %p595 = pneg %p99
        $region82: #{tpu_custom_call.1} parent=75 // pred_check_branch
          %597 = sbr.rel (%p595) target = $region84
        $region83: #{tpu_custom_call.1} parent=75 // pred_region
          %598 = dma.done %s592, 16
        $region84: #{tpu_custom_call.1} parent=75 // pred_fallthru
          _
        // Predicated region
        $region85: #{tpu_custom_call.1} parent=75 // pred_check
          %p599 = pneg %p120
        $region86: #{tpu_custom_call.1} parent=75 // pred_check_branch
          %601 = sbr.rel (%p599) target = $region88
        $region87: #{tpu_custom_call.1} parent=75 // pred_region
          %602 = dma.done [#allocation6], 256
        $region88: #{tpu_custom_call.1} parent=75 // pred_fallthru
          _
        // Predicated region
        $region89: #{tpu_custom_call.1} parent=75 // pred_check
          %p603 = pneg %p141
        $region90: #{tpu_custom_call.1} parent=75 // pred_check_branch
          %605 = sbr.rel (%p603) target = $region92
        $region91: #{tpu_custom_call.1} parent=75 // pred_region
          %606 = dma.done [#allocation9], 16
        $region92: #{tpu_custom_call.1} parent=75 // pred_fallthru
          _
        // Predicated region
        $region93: #{tpu_custom_call.1} parent=75 // pred_check
          %p607 = pneg %p162
        $region94: #{tpu_custom_call.1} parent=75 // pred_check_branch
          %609 = sbr.rel (%p607) target = $region96
        $region95: #{tpu_custom_call.1} parent=75 // pred_region
          %610 = dma.done [#allocation9], 256
        $region96: #{tpu_custom_call.1} parent=75 // pred_fallthru
          _
        // Predicated region
        $region97: #{tpu_custom_call.1} parent=75 // pred_check
          %p611 = pneg %p183
        $region98: #{tpu_custom_call.1} parent=75 // pred_check_branch
          %613 = sbr.rel (%p611) target = $region100
        $region99: #{tpu_custom_call.1} parent=75 // pred_region
          %614 = dma.done [#allocation12], 16
        $region100: #{tpu_custom_call.1} parent=75 // pred_fallthru
          _
        // Predicated region
        $region101: #{tpu_custom_call.1} parent=75 // pred_check
          %p615 = pneg %p204
        $region102: #{tpu_custom_call.1} parent=75 // pred_check_branch
          %617 = sbr.rel (%p615) target = $region104
        $region103: #{tpu_custom_call.1} parent=75 // pred_region
          %618 = dma.done [#allocation12], 256
        $region104: #{tpu_custom_call.1} parent=75 // pred_fallthru
          _
        // Predicated region
        $region105: #{tpu_custom_call.1} parent=75 // pred_check
          %p619 = pneg %p225
        $region106: #{tpu_custom_call.1} parent=75 // pred_check_branch
          %621 = sbr.rel (%p619) target = $region108
        $region107: #{tpu_custom_call.1} parent=75 // pred_region
          %622 = dma.done [#allocation15], 16
        $region108: #{tpu_custom_call.1} parent=75 // pred_fallthru
          _
        // Predicated region
        $region109: #{tpu_custom_call.1} parent=75 // pred_check
          %p623 = pneg %p246
        $region110: #{tpu_custom_call.1} parent=75 // pred_check_branch
          %625 = sbr.rel (%p623) target = $region112
        $region111: #{tpu_custom_call.1} parent=75 // pred_region
          %626 = dma.done [#allocation15], 16
        $region112: #{tpu_custom_call.1} parent=75 // pred_fallthru
          _
        // Predicated region
        $region113: #{tpu_custom_call.1} parent=75 // pred_check
          %p627 = pneg %p267
        $region114: #{tpu_custom_call.1} parent=75 // pred_check_branch
          %629 = sbr.rel (%p627) target = $region116
        $region115: #{tpu_custom_call.1} parent=75 // pred_region
          %630 = dma.done [#allocation18], 16
        $region116: #{tpu_custom_call.1} parent=75 // pred_fallthru
          _
        // Predicated region
        $region117: #{tpu_custom_call.1} parent=75 // pred_check
          %p631 = pneg %p288
        $region118: #{tpu_custom_call.1} parent=75 // pred_check_branch
          %633 = sbr.rel (%p631) target = $region120
        $region119: #{tpu_custom_call.1} parent=75 // pred_region
          %634 = dma.done [#allocation18], 256
        $region120: #{tpu_custom_call.1} parent=75 // pred_fallthru
          _
        // Predicated region
        $region121: #{tpu_custom_call.1} parent=75 // pred_check
          %p635 = pneg %p309
        $region122: #{tpu_custom_call.1} parent=75 // pred_check_branch
          %637 = sbr.rel (%p635) target = $region124
        $region123: #{tpu_custom_call.1} parent=75 // pred_region
          %638 = dma.done [#allocation21], 16
        $region124: #{tpu_custom_call.1} parent=75 // pred_fallthru
          _
        // Predicated region
        $region125: #{tpu_custom_call.1} parent=75 // pred_check
          %p639 = pneg %p330
        $region126: #{tpu_custom_call.1} parent=75 // pred_check_branch
          %641 = sbr.rel (%p639) target = $region128
        $region127: #{tpu_custom_call.1} parent=75 // pred_region
          %642 = dma.done [#allocation21], 1024
        $region128: #{tpu_custom_call.1} parent=75 // pred_fallthru
          _
        // Predicated region
        $region129: #{tpu_custom_call.1} parent=75 // pred_check
          %p643 = pneg %p351
        $region130: #{tpu_custom_call.1} parent=75 // pred_check_branch
          %645 = sbr.rel (%p643) target = $region132
        $region131: #{tpu_custom_call.1} parent=75 // pred_region
          %646 = dma.done [#allocation24], 16
        $region132: #{tpu_custom_call.1} parent=75 // pred_fallthru
          _
        %s647 = sand.u32 %s60, 1
        %s648 = scalar_lea.sflag [#allocation3], %s647
        %s649 = sand.u32 %s60, 1
        %s650 = smul.addr %s649, 8
        %s651 = scalar_lea.vmem [#allocation2], %s650
        %p652 = pneg %p73
        %p653 = pneg %p70
        %s654 = sand.u32 %s40, 1
        %s655 = scalar_lea.sflag [#allocation6], %s654
        %s656 = sand.u32 %s86, 1
        %s657 = scalar_lea.vmem [#allocation5], %s656
        %p658 = pneg %p99
        %p659 = pneg %p96
        %p660 = pneg %p120
        %p661 = pneg %p117
        %p662 = pneg %p141
        %p663 = pneg %p138
        %p664 = pneg %p162
        %p665 = pneg %p159
        %p666 = pneg %p183
        %p667 = pneg %p180
        %p668 = pneg %p204
        %p669 = pneg %p201
        %p670 = pneg %p225
        %p671 = pneg %p222
        %p672 = pneg %p246
        %p673 = pneg %p243
        %p674 = pneg %p267
        %p675 = pneg %p264
        %p676 = pneg %p288
        %p677 = pneg %p285
        %p678 = pneg %p309
        %p679 = pneg %p306
        %p680 = pneg %p330
        %p681 = pneg %p327
        %p682 = pneg %p351
        %p683 = pneg %p348
        %p684 = pneg %p379
        %p685 = pneg %p376
        %s686 = sand.u32 %s366, 1
        %s687 = scalar_lea.sflag [#allocation4], %s686
        %s688 = sand.u32 %s366, 1
        %s689 = smul.addr %s688, 8
        %s690 = scalar_lea.vmem [#allocation25], %s689
        %v692 = vld [vmem:[%s586] sm:$0xff]
        %v693 = vld [vmem:[%s594] sm:$0x1]
        %vm694 = vcmp.eq.f32.partialorder %v693, 0.0
        %v695 = vsel %vm694, -1e+30, 0.0
        %v696 = vpack.c.bf16 %v692, %v692
        %v697 = vld [vmem:[#allocation7] sm:$0xf]
        %v698 = vld [vmem:[#allocation7 + $0x4] sm:$0xf]
        %v699 = vld [vmem:[#allocation7 + $0x8] sm:$0xf]
        %v700 = vld [vmem:[#allocation7 + $0xc] sm:$0xf]
        %v701 = vld [vmem:[#allocation8] sm:$0x1]
        %v703 = vlaneseq
        %v704 = vshrl.u32 %v703, 7
        %v705 = vsub.s32 0, %v704
        %v706 = vrot.slane %v701, %v705
        %v712 = vunpack.c.l.b16 %v697
        %v713 = vunpack.c.l.b16 %v698
        %v714 = vunpack.c.l.b16 %v699
        %v715 = vunpack.c.l.b16 %v700
        %v716 = vpack.c.b16 %v713, %v712
        %v717 = vpack.c.b16 %v715, %v714
        %vm720 = vcmask 261120
        %v722 = vsel %vm720, %v696, 0
        %724 = vmatprep.subr.bf16.mxu0 0
        %725 = vmatpush1.bf16.msra.mxu0 %v716
        %726 = vmatprep.subr.bf16.mxu0 0
        %727 = vmatpush1.bf16.msra.mxu0 %v717
        %728 = vmatprep.subr.bf16.mxu0 0
        %729 = vmatpush1.bf16.msra.mxu0 0
        %730 = vmatprep.subr.bf16.mxu0 0
        %731 = vmatpush1.bf16.msra.mxu0 0
        %732 = vmatprep.subr.bf16.mxu0 0
        %733 = vmatpush1.bf16.msra.mxu0 0
        %734 = vmatprep.subr.bf16.mxu0 0
        %735 = vmatpush1.bf16.msra.mxu0 0
        %736 = vmatprep.subr.bf16.mxu0 0
        %737 = vmatpush1.bf16.msra.mxu0 0
        %738 = vmatprep.subr.bf16.mxu0 0
        %739 = vmatpush1.bf16.msra.mxu0 0
        %740 = vmatprep.subr.bf16.mxu0 0
        %741 = vmatpush1.bf16.msra.mxu0 0
        %742 = vmatprep.subr.bf16.mxu0 0
        %743 = vmatpush1.bf16.msra.mxu0 0
        %744 = vmatprep.subr.bf16.mxu0 0
        %745 = vmatpush1.bf16.msra.mxu0 0
        %746 = vmatprep.subr.bf16.mxu0 0
        %747 = vmatpush1.bf16.msra.mxu0 0
        %748 = vmatprep.subr.bf16.mxu0 0
        %749 = vmatpush1.bf16.msra.mxu0 0
        %750 = vmatprep.subr.bf16.mxu0 0
        %751 = vmatpush1.bf16.msra.mxu0 0
        %752 = vmatprep.subr.bf16.mxu0 0
        %753 = vmatpush1.bf16.msra.mxu0 0
        %754 = vmatprep.subr.bf16.mxu0 0
        %755 = vmatpush1.bf16.msra.mxu0 0
        %756 = vmatprep.mubr.bf16.mxu0 0
        %757 = vmatmul.mubr.bf16.gmra.mrb[0].mxu0 %v722
        %v758 = vpop.f32.mrb[0].mxu0
        %v759 = vadd.f32 %v706, %v758
        %v760 = vpop.f32.mrb[0].mxu0
        %v761 = vpop.f32.mrb[0].mxu0
        %v762 = vpop.f32.mrb[0].mxu0
        %763 = vdwg.mxu0
        %v764 = vmul.f32 %v759, 0.35355338
        %v765 = vpack.c.bf16 %v764, %v764
        %v766 = vld [vmem:[#allocation10] sm:$0xf]
        %v767 = vld [vmem:[#allocation10 + $0x4] sm:$0xf]
        %v768 = vld [vmem:[#allocation10 + $0x8] sm:$0xf]
        %v769 = vld [vmem:[#allocation10 + $0xc] sm:$0xf]
        %v770 = vld [vmem:[#allocation11] sm:$0x1]
        %v772 = vlaneseq
        %v773 = vshrl.u32 %v772, 7
        %v774 = vsub.s32 0, %v773
        %v775 = vrot.slane %v770, %v774
        %v781 = vunpack.c.l.b16 %v766
        %v782 = vunpack.c.l.b16 %v767
        %v783 = vunpack.c.l.b16 %v768
        %v784 = vunpack.c.l.b16 %v769
        %v785 = vpack.c.b16 %v782, %v781
        %v786 = vpack.c.b16 %v784, %v783
        %789 = vmatprep.subr.bf16.mxu0 0
        %790 = vmatpush1.bf16.msra.mxu0 %v785
        %791 = vmatprep.subr.bf16.mxu0 0
        %792 = vmatpush1.bf16.msra.mxu0 %v786
        %793 = vmatprep.subr.bf16.mxu0 0
        %794 = vmatpush1.bf16.msra.mxu0 0
        %795 = vmatprep.subr.bf16.mxu0 0
        %796 = vmatpush1.bf16.msra.mxu0 0
        %797 = vmatprep.subr.bf16.mxu0 0
        %798 = vmatpush1.bf16.msra.mxu0 0
        %799 = vmatprep.subr.bf16.mxu0 0
        %800 = vmatpush1.bf16.msra.mxu0 0
        %801 = vmatprep.subr.bf16.mxu0 0
        %802 = vmatpush1.bf16.msra.mxu0 0
        %803 = vmatprep.subr.bf16.mxu0 0
        %804 = vmatpush1.bf16.msra.mxu0 0
        %805 = vmatprep.subr.bf16.mxu0 0
        %806 = vmatpush1.bf16.msra.mxu0 0
        %807 = vmatprep.subr.bf16.mxu0 0
        %808 = vmatpush1.bf16.msra.mxu0 0
        %809 = vmatprep.subr.bf16.mxu0 0
        %810 = vmatpush1.bf16.msra.mxu0 0
        %811 = vmatprep.subr.bf16.mxu0 0
        %812 = vmatpush1.bf16.msra.mxu0 0
        %813 = vmatprep.subr.bf16.mxu0 0
        %814 = vmatpush1.bf16.msra.mxu0 0
        %815 = vmatprep.subr.bf16.mxu0 0
        %816 = vmatpush1.bf16.msra.mxu0 0
        %817 = vmatprep.subr.bf16.mxu0 0
        %818 = vmatpush1.bf16.msra.mxu0 0
        %819 = vmatprep.subr.bf16.mxu0 0
        %820 = vmatpush1.bf16.msra.mxu0 0
        %821 = vmatprep.mubr.bf16.mxu0 0
        %822 = vmatmul.mubr.bf16.gmra.mrb[0].mxu0 %v722
        %v823 = vpop.f32.mrb[0].mxu0
        %v824 = vadd.f32 %v775, %v823
        %v825 = vpop.f32.mrb[0].mxu0
        %v826 = vpop.f32.mrb[0].mxu0
        %v827 = vpop.f32.mrb[0].mxu0
        %828 = vdwg.mxu0
        %v829 = vpack.c.bf16 %v824, %v824
        %v831 = vlaneseq
        %v832 = vshrl.u32 %v831, 7
        %v833 = vsub.s32 0, %v832
        %v834 = vrot.slane %v695, %v833
        %vm836 = vcmask 64512
        %v838 = vsel %vm836, %v765, 0
        %v841 = vsel %vm836, %v829, 0
        %843 = vmatprep.subr.bf16.mxu0 0
        %844 = vmatpush1.bf16.xpose.msra.mxu0 %v841
        %845 = vmatprep.subr.bf16.mxu0 0
        %846 = vmatpush1.bf16.xpose.msra.mxu0 0
        %847 = vmatprep.subr.bf16.mxu0 0
        %848 = vmatpush1.bf16.xpose.msra.mxu0 0
        %849 = vmatprep.subr.bf16.mxu0 0
        %850 = vmatpush1.bf16.xpose.msra.mxu0 0
        %851 = vmatprep.subr.bf16.mxu0 0
        %852 = vmatpush1.bf16.xpose.msra.mxu0 0
        %853 = vmatprep.subr.bf16.mxu0 0
        %854 = vmatpush1.bf16.xpose.msra.mxu0 0
        %855 = vmatprep.subr.bf16.mxu0 0
        %856 = vmatpush1.bf16.xpose.msra.mxu0 0
        %857 = vmatprep.subr.bf16.mxu0 0
        %858 = vmatpush1.bf16.xpose.msra.mxu0 0
        %859 = vmatprep.subr.bf16.mxu0 0
        %860 = vmatpush1.bf16.xpose.msra.mxu0 0
        %861 = vmatprep.subr.bf16.mxu0 0
        %862 = vmatpush1.bf16.xpose.msra.mxu0 0
        %863 = vmatprep.subr.bf16.mxu0 0
        %864 = vmatpush1.bf16.xpose.msra.mxu0 0
        %865 = vmatprep.subr.bf16.mxu0 0
        %866 = vmatpush1.bf16.xpose.msra.mxu0 0
        %867 = vmatprep.subr.bf16.mxu0 0
        %868 = vmatpush1.bf16.xpose.msra.mxu0 0
        %869 = vmatprep.subr.bf16.mxu0 0
        %870 = vmatpush1.bf16.xpose.msra.mxu0 0
        %871 = vmatprep.subr.bf16.mxu0 0
        %872 = vmatpush1.bf16.xpose.msra.mxu0 0
        %873 = vmatprep.subr.bf16.mxu0 0
        %874 = vmatpush1.bf16.xpose.msra.mxu0 0
        %875 = vmatprep.mubr.bf16.mxu0 0
        %876 = vmatmul.mubr.bf16.gmra.mrb[0].mxu0 %v838
        %v877 = vpop.f32.mrb[0].mxu0
        %v878 = vadd.f32 %v834, %v877
        %v879 = vpop.f32.mrb[0].mxu0
        %v880 = vpop.f32.mrb[0].mxu0
        %v881 = vpop.f32.mrb[0].mxu0
        %882 = vdwg.mxu0
        %v883 = vsel %vm836, %v878, -inf
        %884 = vmax.xlane.f32.xlu0 %v883
        %v885 = vpop.xlane.xlu0 %884
        %v886 = vsub.f32 %v878, %v885
        %v887 = vmul.f32 %v886, 1.442695
        %v888 = vpow.pop %v887
        %v889 = vsel %vm836, %v888, 0.0
        %890 = vadd.xlane.f32.xlu0 %v889
        %v891 = vpop.xlane.xlu0 %890
        %v892 = vrcp.pop %v891
        %v893 = vmul.f32 %v888, %v892
        %v894 = vpack.c.bf16 %v893, %v893
        %896 = vrot.lane.b32.xlu0 %v829, 96
        %v897 = vpop.permute.xlu0 %896
        %v899 = vsel %vm836, %v894, 0
        %vm901 = vcmask 1043456
        %v903 = vsel %vm901, %v897, 0
        %905 = vmatprep.subr.bf16.mxu0 0
        %906 = vmatpush1.bf16.msra.mxu0 %v903
        %907 = vmatprep.subr.bf16.mxu0 0
        %908 = vmatpush1.bf16.msra.mxu0 0
        %909 = vmatprep.subr.bf16.mxu0 0
        %910 = vmatpush1.bf16.msra.mxu0 0
        %911 = vmatprep.subr.bf16.mxu0 0
        %912 = vmatpush1.bf16.msra.mxu0 0
        %913 = vmatprep.subr.bf16.mxu0 0
        %914 = vmatpush1.bf16.msra.mxu0 0
        %915 = vmatprep.subr.bf16.mxu0 0
        %916 = vmatpush1.bf16.msra.mxu0 0
        %917 = vmatprep.subr.bf16.mxu0 0
        %918 = vmatpush1.bf16.msra.mxu0 0
        %919 = vmatprep.subr.bf16.mxu0 0
        %920 = vmatpush1.bf16.msra.mxu0 0
        %921 = vmatprep.subr.bf16.mxu0 0
        %922 = vmatpush1.bf16.msra.mxu0 0
        %923 = vmatprep.subr.bf16.mxu0 0
        %924 = vmatpush1.bf16.msra.mxu0 0
        %925 = vmatprep.subr.bf16.mxu0 0
        %926 = vmatpush1.bf16.msra.mxu0 0
        %927 = vmatprep.subr.bf16.mxu0 0
        %928 = vmatpush1.bf16.msra.mxu0 0
        %929 = vmatprep.subr.bf16.mxu0 0
        %930 = vmatpush1.bf16.msra.mxu0 0
        %931 = vmatprep.subr.bf16.mxu0 0
        %932 = vmatpush1.bf16.msra.mxu0 0
        %933 = vmatprep.subr.bf16.mxu0 0
        %934 = vmatpush1.bf16.msra.mxu0 0
        %935 = vmatprep.subr.bf16.mxu0 0
        %936 = vmatpush1.bf16.msra.mxu0 0
        %937 = vmatprep.mubr.bf16.mxu0 0
        %938 = vmatmul.mubr.bf16.gmra.mrb[0].mxu0 %v899
        %v939 = vpop.f32.mrb[0].mxu0
        %v940 = vadd.f32 0.0, %v939
        %v941 = vpop.f32.mrb[0].mxu0
        %v942 = vpop.f32.mrb[0].mxu0
        %v943 = vpop.f32.mrb[0].mxu0
        %944 = vdwg.mxu0
        %946 = vrot.lane.b32.xlu0 %v765, 120
        %v947 = vpop.permute.xlu0 %946
        %948 = vrot.lane.b32.xlu0 %v829, 120
        %v949 = vpop.permute.xlu0 %948
        %v951 = vsel %vm836, %v947, 0
        %v954 = vsel %vm836, %v949, 0
        %956 = vmatprep.subr.bf16.mxu0 0
        %957 = vmatpush1.bf16.xpose.msra.mxu0 %v954
        %958 = vmatprep.subr.bf16.mxu0 0
        %959 = vmatpush1.bf16.xpose.msra.mxu0 0
        %960 = vmatprep.subr.bf16.mxu0 0
        %961 = vmatpush1.bf16.xpose.msra.mxu0 0
        %962 = vmatprep.subr.bf16.mxu0 0
        %963 = vmatpush1.bf16.xpose.msra.mxu0 0
        %964 = vmatprep.subr.bf16.mxu0 0
        %965 = vmatpush1.bf16.xpose.msra.mxu0 0
        %966 = vmatprep.subr.bf16.mxu0 0
        %967 = vmatpush1.bf16.xpose.msra.mxu0 0
        %968 = vmatprep.subr.bf16.mxu0 0
        %969 = vmatpush1.bf16.xpose.msra.mxu0 0
        %970 = vmatprep.subr.bf16.mxu0 0
        %971 = vmatpush1.bf16.xpose.msra.mxu0 0
        %972 = vmatprep.subr.bf16.mxu0 0
        %973 = vmatpush1.bf16.xpose.msra.mxu0 0
        %974 = vmatprep.subr.bf16.mxu0 0
        %975 = vmatpush1.bf16.xpose.msra.mxu0 0
        %976 = vmatprep.subr.bf16.mxu0 0
        %977 = vmatpush1.bf16.xpose.msra.mxu0 0
        %978 = vmatprep.subr.bf16.mxu0 0
        %979 = vmatpush1.bf16.xpose.msra.mxu0 0
        %980 = vmatprep.subr.bf16.mxu0 0
        %981 = vmatpush1.bf16.xpose.msra.mxu0 0
        %982 = vmatprep.subr.bf16.mxu0 0
        %983 = vmatpush1.bf16.xpose.msra.mxu0 0
        %984 = vmatprep.subr.bf16.mxu0 0
        %985 = vmatpush1.bf16.xpose.msra.mxu0 0
        %986 = vmatprep.subr.bf16.mxu0 0
        %987 = vmatpush1.bf16.xpose.msra.mxu0 0
        %988 = vmatprep.mubr.bf16.mxu0 0
        %989 = vmatmul.mubr.bf16.gmra.mrb[0].mxu0 %v951
        %v990 = vpop.f32.mrb[0].mxu0
        %v991 = vadd.f32 %v834, %v990
        %v992 = vpop.f32.mrb[0].mxu0
        %v993 = vpop.f32.mrb[0].mxu0
        %v994 = vpop.f32.mrb[0].mxu0
        %995 = vdwg.mxu0
        %v996 = vsel %vm836, %v991, -inf
        %997 = vmax.xlane.f32.xlu0 %v996
        %v998 = vpop.xlane.xlu0 %997
        %v999 = vsub.f32 %v991, %v998
        %v1000 = vmul.f32 %v999, 1.442695
        %v1001 = vpow.pop %v1000
        %v1002 = vsel %vm836, %v1001, 0.0
        %1003 = vadd.xlane.f32.xlu0 %v1002
        %v1004 = vpop.xlane.xlu0 %1003
        %v1005 = vrcp.pop %v1004
        %v1006 = vmul.f32 %v1001, %v1005
        %v1007 = vpack.c.bf16 %v1006, %v1006
        %1008 = vrot.lane.b32.xlu0 %v829, 88
        %v1009 = vpop.permute.xlu0 %1008
        %v1011 = vsel %vm836, %v1007, 0
        %v1014 = vsel %vm901, %v1009, 0
        %1016 = vmatprep.subr.bf16.mxu0 0
        %1017 = vmatpush1.bf16.msra.mxu0 %v1014
        %1018 = vmatprep.subr.bf16.mxu0 0
        %1019 = vmatpush1.bf16.msra.mxu0 0
        %1020 = vmatprep.subr.bf16.mxu0 0
        %1021 = vmatpush1.bf16.msra.mxu0 0
        %1022 = vmatprep.subr.bf16.mxu0 0
        %1023 = vmatpush1.bf16.msra.mxu0 0
        %1024 = vmatprep.subr.bf16.mxu0 0
        %1025 = vmatpush1.bf16.msra.mxu0 0
        %1026 = vmatprep.subr.bf16.mxu0 0
        %1027 = vmatpush1.bf16.msra.mxu0 0
        %1028 = vmatprep.subr.bf16.mxu0 0
        %1029 = vmatpush1.bf16.msra.mxu0 0
        %1030 = vmatprep.subr.bf16.mxu0 0
        %1031 = vmatpush1.bf16.msra.mxu0 0
        %1032 = vmatprep.subr.bf16.mxu0 0
        %1033 = vmatpush1.bf16.msra.mxu0 0
        %1034 = vmatprep.subr.bf16.mxu0 0
        %1035 = vmatpush1.bf16.msra.mxu0 0
        %1036 = vmatprep.subr.bf16.mxu0 0
        %1037 = vmatpush1.bf16.msra.mxu0 0
        %1038 = vmatprep.subr.bf16.mxu0 0
        %1039 = vmatpush1.bf16.msra.mxu0 0
        %1040 = vmatprep.subr.bf16.mxu0 0
        %1041 = vmatpush1.bf16.msra.mxu0 0
        %1042 = vmatprep.subr.bf16.mxu0 0
        %1043 = vmatpush1.bf16.msra.mxu0 0
        %1044 = vmatprep.subr.bf16.mxu0 0
        %1045 = vmatpush1.bf16.msra.mxu0 0
        %1046 = vmatprep.subr.bf16.mxu0 0
        %1047 = vmatpush1.bf16.msra.mxu0 0
        %1048 = vmatprep.mubr.bf16.mxu0 0
        %1049 = vmatmul.mubr.bf16.gmra.mrb[0].mxu0 %v1011
        %v1050 = vpop.f32.mrb[0].mxu0
        %v1051 = vadd.f32 0.0, %v1050
        %v1052 = vpop.f32.mrb[0].mxu0
        %v1053 = vpop.f32.mrb[0].mxu0
        %v1054 = vpop.f32.mrb[0].mxu0
        %1055 = vdwg.mxu0
        %1056 = vrot.lane.b32.xlu0 %v765, 112
        %v1057 = vpop.permute.xlu0 %1056
        %1058 = vrot.lane.b32.xlu0 %v829, 112
        %v1059 = vpop.permute.xlu0 %1058
        %v1061 = vsel %vm836, %v1057, 0
        %v1064 = vsel %vm836, %v1059, 0
        %1066 = vmatprep.subr.bf16.mxu0 0
        %1067 = vmatpush1.bf16.xpose.msra.mxu0 %v1064
        %1068 = vmatprep.subr.bf16.mxu0 0
        %1069 = vmatpush1.bf16.xpose.msra.mxu0 0
        %1070 = vmatprep.subr.bf16.mxu0 0
        %1071 = vmatpush1.bf16.xpose.msra.mxu0 0
        %1072 = vmatprep.subr.bf16.mxu0 0
        %1073 = vmatpush1.bf16.xpose.msra.mxu0 0
        %1074 = vmatprep.subr.bf16.mxu0 0
        %1075 = vmatpush1.bf16.xpose.msra.mxu0 0
        %1076 = vmatprep.subr.bf16.mxu0 0
        %1077 = vmatpush1.bf16.xpose.msra.mxu0 0
        %1078 = vmatprep.subr.bf16.mxu0 0
        %1079 = vmatpush1.bf16.xpose.msra.mxu0 0
        %1080 = vmatprep.subr.bf16.mxu0 0
        %1081 = vmatpush1.bf16.xpose.msra.mxu0 0
        %1082 = vmatprep.subr.bf16.mxu0 0
        %1083 = vmatpush1.bf16.xpose.msra.mxu0 0
        %1084 = vmatprep.subr.bf16.mxu0 0
        %1085 = vmatpush1.bf16.xpose.msra.mxu0 0
        %1086 = vmatprep.subr.bf16.mxu0 0
        %1087 = vmatpush1.bf16.xpose.msra.mxu0 0
        %1088 = vmatprep.subr.bf16.mxu0 0
        %1089 = vmatpush1.bf16.xpose.msra.mxu0 0
        %1090 = vmatprep.subr.bf16.mxu0 0
        %1091 = vmatpush1.bf16.xpose.msra.mxu0 0
        %1092 = vmatprep.subr.bf16.mxu0 0
        %1093 = vmatpush1.bf16.xpose.msra.mxu0 0
        %1094 = vmatprep.subr.bf16.mxu0 0
        %1095 = vmatpush1.bf16.xpose.msra.mxu0 0
        %1096 = vmatprep.subr.bf16.mxu0 0
        %1097 = vmatpush1.bf16.xpose.msra.mxu0 0
        %1098 = vmatprep.mubr.bf16.mxu0 0
        %1099 = vmatmul.mubr.bf16.gmra.mrb[0].mxu0 %v1061
        %v1100 = vpop.f32.mrb[0].mxu0
        %v1101 = vadd.f32 %v834, %v1100
        %v1102 = vpop.f32.mrb[0].mxu0
        %v1103 = vpop.f32.mrb[0].mxu0
        %v1104 = vpop.f32.mrb[0].mxu0
        %1105 = vdwg.mxu0
        %v1106 = vsel %vm836, %v1101, -inf
        %1107 = vmax.xlane.f32.xlu0 %v1106
        %v1108 = vpop.xlane.xlu0 %1107
        %v1109 = vsub.f32 %v1101, %v1108
        %v1110 = vmul.f32 %v1109, 1.442695
        %v1111 = vpow.pop %v1110
        %v1112 = vsel %vm836, %v1111, 0.0
        %1113 = vadd.xlane.f32.xlu0 %v1112
        %v1114 = vpop.xlane.xlu0 %1113
        %v1115 = vrcp.pop %v1114
        %v1116 = vmul.f32 %v1111, %v1115
        %v1117 = vpack.c.bf16 %v1116, %v1116
        %1118 = vrot.lane.b32.xlu0 %v829, 80
        %v1119 = vpop.permute.xlu0 %1118
        %v1121 = vsel %vm836, %v1117, 0
        %v1124 = vsel %vm901, %v1119, 0
        %1126 = vmatprep.subr.bf16.mxu0 0
        %1127 = vmatpush1.bf16.msra.mxu0 %v1124
        %1128 = vmatprep.subr.bf16.mxu0 0
        %1129 = vmatpush1.bf16.msra.mxu0 0
        %1130 = vmatprep.subr.bf16.mxu0 0
        %1131 = vmatpush1.bf16.msra.mxu0 0
        %1132 = vmatprep.subr.bf16.mxu0 0
        %1133 = vmatpush1.bf16.msra.mxu0 0
        %1134 = vmatprep.subr.bf16.mxu0 0
        %1135 = vmatpush1.bf16.msra.mxu0 0
        %1136 = vmatprep.subr.bf16.mxu0 0
        %1137 = vmatpush1.bf16.msra.mxu0 0
        %1138 = vmatprep.subr.bf16.mxu0 0
        %1139 = vmatpush1.bf16.msra.mxu0 0
        %1140 = vmatprep.subr.bf16.mxu0 0
        %1141 = vmatpush1.bf16.msra.mxu0 0
        %1142 = vmatprep.subr.bf16.mxu0 0
        %1143 = vmatpush1.bf16.msra.mxu0 0
        %1144 = vmatprep.subr.bf16.mxu0 0
        %1145 = vmatpush1.bf16.msra.mxu0 0
        %1146 = vmatprep.subr.bf16.mxu0 0
        %1147 = vmatpush1.bf16.msra.mxu0 0
        %1148 = vmatprep.subr.bf16.mxu0 0
        %1149 = vmatpush1.bf16.msra.mxu0 0
        %1150 = vmatprep.subr.bf16.mxu0 0
        %1151 = vmatpush1.bf16.msra.mxu0 0
        %1152 = vmatprep.subr.bf16.mxu0 0
        %1153 = vmatpush1.bf16.msra.mxu0 0
        %1154 = vmatprep.subr.bf16.mxu0 0
        %1155 = vmatpush1.bf16.msra.mxu0 0
        %1156 = vmatprep.subr.bf16.mxu0 0
        %1157 = vmatpush1.bf16.msra.mxu0 0
        %1158 = vmatprep.mubr.bf16.mxu0 0
        %1159 = vmatmul.mubr.bf16.gmra.mrb[0].mxu0 %v1121
        %v1160 = vpop.f32.mrb[0].mxu0
        %v1161 = vadd.f32 0.0, %v1160
        %v1162 = vpop.f32.mrb[0].mxu0
        %v1163 = vpop.f32.mrb[0].mxu0
        %v1164 = vpop.f32.mrb[0].mxu0
        %1165 = vdwg.mxu0
        %1166 = vrot.lane.b32.xlu0 %v765, 104
        %v1167 = vpop.permute.xlu0 %1166
        %1168 = vrot.lane.b32.xlu0 %v829, 104
        %v1169 = vpop.permute.xlu0 %1168
        %v1171 = vsel %vm836, %v1167, 0
        %v1174 = vsel %vm836, %v1169, 0
        %1176 = vmatprep.subr.bf16.mxu0 0
        %1177 = vmatpush1.bf16.xpose.msra.mxu0 %v1174
        %1178 = vmatprep.subr.bf16.mxu0 0
        %1179 = vmatpush1.bf16.xpose.msra.mxu0 0
        %1180 = vmatprep.subr.bf16.mxu0 0
        %1181 = vmatpush1.bf16.xpose.msra.mxu0 0
        %1182 = vmatprep.subr.bf16.mxu0 0
        %1183 = vmatpush1.bf16.xpose.msra.mxu0 0
        %1184 = vmatprep.subr.bf16.mxu0 0
        %1185 = vmatpush1.bf16.xpose.msra.mxu0 0
        %1186 = vmatprep.subr.bf16.mxu0 0
        %1187 = vmatpush1.bf16.xpose.msra.mxu0 0
        %1188 = vmatprep.subr.bf16.mxu0 0
        %1189 = vmatpush1.bf16.xpose.msra.mxu0 0
        %1190 = vmatprep.subr.bf16.mxu0 0
        %1191 = vmatpush1.bf16.xpose.msra.mxu0 0
        %1192 = vmatprep.subr.bf16.mxu0 0
        %1193 = vmatpush1.bf16.xpose.msra.mxu0 0
        %1194 = vmatprep.subr.bf16.mxu0 0
        %1195 = vmatpush1.bf16.xpose.msra.mxu0 0
        %1196 = vmatprep.subr.bf16.mxu0 0
        %1197 = vmatpush1.bf16.xpose.msra.mxu0 0
        %1198 = vmatprep.subr.bf16.mxu0 0
        %1199 = vmatpush1.bf16.xpose.msra.mxu0 0
        %1200 = vmatprep.subr.bf16.mxu0 0
        %1201 = vmatpush1.bf16.xpose.msra.mxu0 0
        %1202 = vmatprep.subr.bf16.mxu0 0
        %1203 = vmatpush1.bf16.xpose.msra.mxu0 0
        %1204 = vmatprep.subr.bf16.mxu0 0
        %1205 = vmatpush1.bf16.xpose.msra.mxu0 0
        %1206 = vmatprep.subr.bf16.mxu0 0
        %1207 = vmatpush1.bf16.xpose.msra.mxu0 0
        %1208 = vmatprep.mubr.bf16.mxu0 0
        %1209 = vmatmul.mubr.bf16.gmra.mrb[0].mxu0 %v1171
        %v1210 = vpop.f32.mrb[0].mxu0
        %v1211 = vadd.f32 %v834, %v1210
        %v1212 = vpop.f32.mrb[0].mxu0
        %v1213 = vpop.f32.mrb[0].mxu0
        %v1214 = vpop.f32.mrb[0].mxu0
        %1215 = vdwg.mxu0
        %v1216 = vsel %vm836, %v1211, -inf
        %1217 = vmax.xlane.f32.xlu0 %v1216
        %v1218 = vpop.xlane.xlu0 %1217
        %v1219 = vsub.f32 %v1211, %v1218
        %v1220 = vmul.f32 %v1219, 1.442695
        %v1221 = vpow.pop %v1220
        %v1222 = vsel %vm836, %v1221, 0.0
        %1223 = vadd.xlane.f32.xlu0 %v1222
        %v1224 = vpop.xlane.xlu0 %1223
        %v1225 = vrcp.pop %v1224
        %v1226 = vmul.f32 %v1221, %v1225
        %v1227 = vpack.c.bf16 %v1226, %v1226
        %1228 = vrot.lane.b32.xlu0 %v829, 72
        %v1229 = vpop.permute.xlu0 %1228
        %v1231 = vsel %vm836, %v1227, 0
        %v1234 = vsel %vm901, %v1229, 0
        %1236 = vmatprep.subr.bf16.mxu0 0
        %1237 = vmatpush1.bf16.msra.mxu0 %v1234
        %1238 = vmatprep.subr.bf16.mxu0 0
        %1239 = vmatpush1.bf16.msra.mxu0 0
        %1240 = vmatprep.subr.bf16.mxu0 0
        %1241 = vmatpush1.bf16.msra.mxu0 0
        %1242 = vmatprep.subr.bf16.mxu0 0
        %1243 = vmatpush1.bf16.msra.mxu0 0
        %1244 = vmatprep.subr.bf16.mxu0 0
        %1245 = vmatpush1.bf16.msra.mxu0 0
        %1246 = vmatprep.subr.bf16.mxu0 0
        %1247 = vmatpush1.bf16.msra.mxu0 0
        %1248 = vmatprep.subr.bf16.mxu0 0
        %1249 = vmatpush1.bf16.msra.mxu0 0
        %1250 = vmatprep.subr.bf16.mxu0 0
        %1251 = vmatpush1.bf16.msra.mxu0 0
        %1252 = vmatprep.subr.bf16.mxu0 0
        %1253 = vmatpush1.bf16.msra.mxu0 0
        %1254 = vmatprep.subr.bf16.mxu0 0
        %1255 = vmatpush1.bf16.msra.mxu0 0
        %1256 = vmatprep.subr.bf16.mxu0 0
        %1257 = vmatpush1.bf16.msra.mxu0 0
        %1258 = vmatprep.subr.bf16.mxu0 0
        %1259 = vmatpush1.bf16.msra.mxu0 0
        %1260 = vmatprep.subr.bf16.mxu0 0
        %1261 = vmatpush1.bf16.msra.mxu0 0
        %1262 = vmatprep.subr.bf16.mxu0 0
        %1263 = vmatpush1.bf16.msra.mxu0 0
        %1264 = vmatprep.subr.bf16.mxu0 0
        %1265 = vmatpush1.bf16.msra.mxu0 0
        %1266 = vmatprep.subr.bf16.mxu0 0
        %1267 = vmatpush1.bf16.msra.mxu0 0
        %1268 = vmatprep.mubr.bf16.mxu0 0
        %1269 = vmatmul.mubr.bf16.gmra.mrb[0].mxu0 %v1231
        %v1270 = vpop.f32.mrb[0].mxu0
        %v1271 = vadd.f32 0.0, %v1270
        %v1272 = vpop.f32.mrb[0].mxu0
        %v1273 = vpop.f32.mrb[0].mxu0
        %v1274 = vpop.f32.mrb[0].mxu0
        %1275 = vdwg.mxu0
        %1277 = vrot.lane.b32.xlu0 %v1051, 8
        %v1278 = vpop.permute.xlu0 %1277
        %1281 = vrot.lane.b32.xlu0 %v1161, 16
        %v1282 = vpop.permute.xlu0 %1281
        %1285 = vrot.lane.b32.xlu0 %v1271, 24
        %v1286 = vpop.permute.xlu0 %1285
        %v1288 = vsel %vm836, %v940, %v1278
        %vm1289 = vcmask 130048
        %v1290 = vsel %vm1289, %v1288, %v1282
        %vm1291 = vcmask 195584
        %v1292 = vsel %vm1291, %v1290, %v1286
        %v1293 = vpack.c.bf16 %v1292, %v1292
        %v1294 = vld [vmem:[#allocation13] sm:$0xf]
        %v1295 = vld [vmem:[#allocation13 + $0x4] sm:$0xf]
        %v1296 = vld [vmem:[#allocation13 + $0x8] sm:$0xf]
        %v1297 = vld [vmem:[#allocation13 + $0xc] sm:$0xf]
        %v1298 = vld [vmem:[#allocation14] sm:$0x1]
        %v1300 = vlaneseq
        %v1301 = vshrl.u32 %v1300, 7
        %v1302 = vsub.s32 0, %v1301
        %v1303 = vrot.slane %v1298, %v1302
        %v1309 = vunpack.c.l.b16 %v1294
        %v1310 = vunpack.c.l.b16 %v1295
        %v1311 = vunpack.c.l.b16 %v1296
        %v1312 = vunpack.c.l.b16 %v1297
        %v1313 = vpack.c.b16 %v1310, %v1309
        %v1314 = vpack.c.b16 %v1312, %v1311
        %v1318 = vsel %vm720, %v1293, 0
        %1320 = vmatprep.subr.bf16.mxu0 0
        %1321 = vmatpush1.bf16.msra.mxu0 %v1313
        %1322 = vmatprep.subr.bf16.mxu0 0
        %1323 = vmatpush1.bf16.msra.mxu0 %v1314
        %1324 = vmatprep.subr.bf16.mxu0 0
        %1325 = vmatpush1.bf16.msra.mxu0 0
        %1326 = vmatprep.subr.bf16.mxu0 0
        %1327 = vmatpush1.bf16.msra.mxu0 0
        %1328 = vmatprep.subr.bf16.mxu0 0
        %1329 = vmatpush1.bf16.msra.mxu0 0
        %1330 = vmatprep.subr.bf16.mxu0 0
        %1331 = vmatpush1.bf16.msra.mxu0 0
        %1332 = vmatprep.subr.bf16.mxu0 0
        %1333 = vmatpush1.bf16.msra.mxu0 0
        %1334 = vmatprep.subr.bf16.mxu0 0
        %1335 = vmatpush1.bf16.msra.mxu0 0
        %1336 = vmatprep.subr.bf16.mxu0 0
        %1337 = vmatpush1.bf16.msra.mxu0 0
        %1338 = vmatprep.subr.bf16.mxu0 0
        %1339 = vmatpush1.bf16.msra.mxu0 0
        %1340 = vmatprep.subr.bf16.mxu0 0
        %1341 = vmatpush1.bf16.msra.mxu0 0
        %1342 = vmatprep.subr.bf16.mxu0 0
        %1343 = vmatpush1.bf16.msra.mxu0 0
        %1344 = vmatprep.subr.bf16.mxu0 0
        %1345 = vmatpush1.bf16.msra.mxu0 0
        %1346 = vmatprep.subr.bf16.mxu0 0
        %1347 = vmatpush1.bf16.msra.mxu0 0
        %1348 = vmatprep.subr.bf16.mxu0 0
        %1349 = vmatpush1.bf16.msra.mxu0 0
        %1350 = vmatprep.subr.bf16.mxu0 0
        %1351 = vmatpush1.bf16.msra.mxu0 0
        %1352 = vmatprep.mubr.bf16.mxu0 0
        %1353 = vmatmul.mubr.bf16.gmra.mrb[0].mxu0 %v1318
        %v1354 = vpop.f32.mrb[0].mxu0
        %v1355 = vadd.f32 %v1303, %v1354
        %v1356 = vpop.f32.mrb[0].mxu0
        %v1357 = vpop.f32.mrb[0].mxu0
        %v1358 = vpop.f32.mrb[0].mxu0
        %1359 = vdwg.mxu0
        %v1360 = vld [vmem:[#allocation16] sm:$0x1]
        %v1361 = vld [vmem:[#allocation17] sm:$0x1]
        %v1362 = vadd.f32 %v1355, %v692
        %v1363 = vsel %vm720, %v1362, 0.0
        %1364 = vadd.xlane.f32.xlu0 %v1363
        %v1365 = vpop.xlane.xlu0 %1364
        %v1366 = vrcp.pop 32.0
        %v1367 = vmul.f32 %v1365, %v1366
        %v1368 = vmul.f32 %v1362, %v1362
        %v1369 = vsel %vm720, %v1368, 0.0
        %1370 = vadd.xlane.f32.xlu0 %v1369
        %v1371 = vpop.xlane.xlu0 %1370
        %v1372 = vmul.f32 %v1371, %v1366
        %v1373 = vmul.f32 %v1367, %v1367
        %v1374 = vsub.f32 %v1372, %v1373
        %v1375 = vmax.f32 %v1374, 0.0
        %v1376 = vsub.f32 %v1362, %v1367
        %v1377 = vadd.f32 %v1375, 1e-05
        %v1378 = vrsqrt.pop %v1377
        %v1379 = vmul.f32 %v1376, %v1378
        %v1381 = vlaneseq
        %v1382 = vshrl.u32 %v1381, 7
        %v1383 = vsub.s32 0, %v1382
        %v1384 = vrot.slane %v1360, %v1383
        %v1386 = vmul.f32 %v1379, %v1384
        %v1388 = vlaneseq
        %v1389 = vshrl.u32 %v1388, 7
        %v1390 = vsub.s32 0, %v1389
        %v1391 = vrot.slane %v1361, %v1390
        %v1393 = vadd.f32 %v1386, %v1391
        %v1394 = vpack.c.bf16 %v1393, %v1393
        %v1395 = vld [vmem:[#allocation19] sm:$0xf]
        %v1396 = vld [vmem:[#allocation19 + $0x4] sm:$0xf]
        %v1397 = vld [vmem:[#allocation19 + $0x8] sm:$0xf]
        %v1398 = vld [vmem:[#allocation19 + $0xc] sm:$0xf]
        %v1399 = vld [vmem:[#allocation20] sm:$0x1]
        %v1401 = vlaneseq
        %v1402 = vshrl.u32 %v1401, 7
        %v1403 = vsub.s32 0, %v1402
        %v1404 = vrot.slane %v1399, %v1403
        %v1410 = vunpack.c.l.b16 %v1395
        %v1411 = vunpack.c.l.b16 %v1396
        %v1412 = vunpack.c.l.b16 %v1397
        %v1413 = vunpack.c.l.b16 %v1398
        %v1414 = vpack.c.b16 %v1411, %v1410
        %v1415 = vpack.c.b16 %v1413, %v1412
        %v1419 = vsel %vm720, %v1394, 0
        %1421 = vmatprep.subr.bf16.mxu0 0
        %1422 = vmatpush1.bf16.msra.mxu0 %v1414
        %1423 = vmatprep.subr.bf16.mxu0 0
        %1424 = vmatpush1.bf16.msra.mxu0 %v1415
        %1425 = vmatprep.subr.bf16.mxu0 0
        %1426 = vmatpush1.bf16.msra.mxu0 0
        %1427 = vmatprep.subr.bf16.mxu0 0
        %1428 = vmatpush1.bf16.msra.mxu0 0
        %1429 = vmatprep.subr.bf16.mxu0 0
        %1430 = vmatpush1.bf16.msra.mxu0 0
        %1431 = vmatprep.subr.bf16.mxu0 0
        %1432 = vmatpush1.bf16.msra.mxu0 0
        %1433 = vmatprep.subr.bf16.mxu0 0
        %1434 = vmatpush1.bf16.msra.mxu0 0
        %1435 = vmatprep.subr.bf16.mxu0 0
        %1436 = vmatpush1.bf16.msra.mxu0 0
        %1437 = vmatprep.subr.bf16.mxu0 0
        %1438 = vmatpush1.bf16.msra.mxu0 0
        %1439 = vmatprep.subr.bf16.mxu0 0
        %1440 = vmatpush1.bf16.msra.mxu0 0
        %1441 = vmatprep.subr.bf16.mxu0 0
        %1442 = vmatpush1.bf16.msra.mxu0 0
        %1443 = vmatprep.subr.bf16.mxu0 0
        %1444 = vmatpush1.bf16.msra.mxu0 0
        %1445 = vmatprep.subr.bf16.mxu0 0
        %1446 = vmatpush1.bf16.msra.mxu0 0
        %1447 = vmatprep.subr.bf16.mxu0 0
        %1448 = vmatpush1.bf16.msra.mxu0 0
        %1449 = vmatprep.subr.bf16.mxu0 0
        %1450 = vmatpush1.bf16.msra.mxu0 0
        %1451 = vmatprep.subr.bf16.mxu0 0
        %1452 = vmatpush1.bf16.msra.mxu0 0
        %1453 = vmatprep.mubr.bf16.mxu0 0
        %1454 = vmatmul.mubr.bf16.gmra.mrb[0].mxu0 %v1419
        %v1455 = vpop.f32.mrb[0].mxu0
        %v1456 = vadd.f32 %v1404, %v1455
        %v1457 = vpop.f32.mrb[0].mxu0
        %v1458 = vpop.f32.mrb[0].mxu0
        %v1459 = vpop.f32.mrb[0].mxu0
        %1460 = vdwg.mxu0
        %v1461 = vmul.f32 %v1456, %v1456
        %v1462 = vmul.f32 %v1456, %v1461
        %v1463 = vmul.f32 %v1462, 0.044715
        %v1464 = vadd.f32 %v1456, %v1463
        %v1465 = vmul.f32 %v1464, 0.7978846
        %v1466 = vtanh.pop %v1465
        %v1467 = vadd.f32 %v1466, 1.0
        %v1468 = vmul.f32 %v1467, 0.5
        %v1469 = vmul.f32 %v1456, %v1468
        %v1470 = vpack.c.bf16 %v1469, %v1469
        %v1471 = vld [vmem:[#allocation22] sm:$0xf]
        %v1472 = vld [vmem:[#allocation22 + $0x4] sm:$0xf]
        %v1473 = vld [vmem:[#allocation22 + $0x8] sm:$0xf]
        %v1474 = vld [vmem:[#allocation22 + $0xc] sm:$0xf]
        %v1475 = vld [vmem:[#allocation22 + $0x10] sm:$0xf]
        %v1476 = vld [vmem:[#allocation22 + $0x14] sm:$0xf]
        %v1477 = vld [vmem:[#allocation22 + $0x18] sm:$0xf]
        %v1478 = vld [vmem:[#allocation22 + $0x1c] sm:$0xf]
        %v1479 = vld [vmem:[#allocation22 + $0x20] sm:$0xf]
        %v1480 = vld [vmem:[#allocation22 + $0x24] sm:$0xf]
        %v1481 = vld [vmem:[#allocation22 + $0x28] sm:$0xf]
        %v1482 = vld [vmem:[#allocation22 + $0x2c] sm:$0xf]
        %v1483 = vld [vmem:[#allocation22 + $0x30] sm:$0xf]
        %v1484 = vld [vmem:[#allocation22 + $0x34] sm:$0xf]
        %v1485 = vld [vmem:[#allocation22 + $0x38] sm:$0xf]
        %v1486 = vld [vmem:[#allocation22 + $0x3c] sm:$0xf]
        %v1487 = vld [vmem:[#allocation23] sm:$0x1]
        %v1489 = vlaneseq
        %v1490 = vshrl.u32 %v1489, 7
        %v1491 = vsub.s32 0, %v1490
        %v1492 = vrot.slane %v1487, %v1491
        %v1510 = vunpack.c.l.b16 %v1471
        %v1511 = vunpack.c.l.b16 %v1472
        %v1512 = vunpack.c.l.b16 %v1473
        %v1513 = vunpack.c.l.b16 %v1474
        %v1514 = vunpack.c.l.b16 %v1475
        %v1515 = vunpack.c.l.b16 %v1476
        %v1516 = vunpack.c.l.b16 %v1477
        %v1517 = vunpack.c.l.b16 %v1478
        %v1518 = vunpack.c.l.b16 %v1479
        %v1519 = vunpack.c.l.b16 %v1480
        %v1520 = vunpack.c.l.b16 %v1481
        %v1521 = vunpack.c.l.b16 %v1482
        %v1522 = vunpack.c.l.b16 %v1483
        %v1523 = vunpack.c.l.b16 %v1484
        %v1524 = vunpack.c.l.b16 %v1485
        %v1525 = vunpack.c.l.b16 %v1486
        %v1526 = vpack.c.b16 %v1511, %v1510
        %v1527 = vpack.c.b16 %v1513, %v1512
        %v1528 = vpack.c.b16 %v1515, %v1514
        %v1529 = vpack.c.b16 %v1517, %v1516
        %v1530 = vpack.c.b16 %v1519, %v1518
        %v1531 = vpack.c.b16 %v1521, %v1520
        %v1532 = vpack.c.b16 %v1523, %v1522
        %v1533 = vpack.c.b16 %v1525, %v1524
        %1542 = vmatprep.subr.bf16.mxu0 0
        %1543 = vmatpush1.bf16.msra.mxu0 %v1526
        %1544 = vmatprep.subr.bf16.mxu0 0
        %1545 = vmatpush1.bf16.msra.mxu0 %v1527
        %1546 = vmatprep.subr.bf16.mxu0 0
        %1547 = vmatpush1.bf16.msra.mxu0 %v1528
        %1548 = vmatprep.subr.bf16.mxu0 0
        %1549 = vmatpush1.bf16.msra.mxu0 %v1529
        %1550 = vmatprep.subr.bf16.mxu0 0
        %1551 = vmatpush1.bf16.msra.mxu0 %v1530
        %1552 = vmatprep.subr.bf16.mxu0 0
        %1553 = vmatpush1.bf16.msra.mxu0 %v1531
        %1554 = vmatprep.subr.bf16.mxu0 0
        %1555 = vmatpush1.bf16.msra.mxu0 %v1532
        %1556 = vmatprep.subr.bf16.mxu0 0
        %1557 = vmatpush1.bf16.msra.mxu0 %v1533
        %1558 = vmatprep.subr.bf16.mxu0 0
        %1559 = vmatpush1.bf16.msra.mxu0 0
        %1560 = vmatprep.subr.bf16.mxu0 0
        %1561 = vmatpush1.bf16.msra.mxu0 0
        %1562 = vmatprep.subr.bf16.mxu0 0
        %1563 = vmatpush1.bf16.msra.mxu0 0
        %1564 = vmatprep.subr.bf16.mxu0 0
        %1565 = vmatpush1.bf16.msra.mxu0 0
        %1566 = vmatprep.subr.bf16.mxu0 0
        %1567 = vmatpush1.bf16.msra.mxu0 0
        %1568 = vmatprep.subr.bf16.mxu0 0
        %1569 = vmatpush1.bf16.msra.mxu0 0
        %1570 = vmatprep.subr.bf16.mxu0 0
        %1571 = vmatpush1.bf16.msra.mxu0 0
        %1572 = vmatprep.subr.bf16.mxu0 0
        %1573 = vmatpush1.bf16.msra.mxu0 0
        %1574 = vmatprep.mubr.bf16.mxu0 0
        %1575 = vmatmul.mubr.bf16.gmra.mrb[0].mxu0 %v1470
        %v1576 = vpop.f32.mrb[0].mxu0
        %v1577 = vadd.f32 %v1492, %v1576
        %v1578 = vpop.f32.mrb[0].mxu0
        %v1579 = vpop.f32.mrb[0].mxu0
        %v1580 = vpop.f32.mrb[0].mxu0
        %1581 = vdwg.mxu0
        %v1582 = vadd.f32 %v1577, %v1393
        %v1583 = vsel %vm720, %v1582, 0.0
        %1584 = vadd.xlane.f32.xlu0 %v1583
        %v1585 = vpop.xlane.xlu0 %1584
        %v1586 = vmul.f32 %v1585, %v1366
        %v1587 = vmul.f32 %v1582, %v1582
        %v1588 = vsel %vm720, %v1587, 0.0
        %1589 = vadd.xlane.f32.xlu0 %v1588
        %v1590 = vpop.xlane.xlu0 %1589
        %v1591 = vmul.f32 %v1590, %v1366
        %v1592 = vmul.f32 %v1586, %v1586
        %v1593 = vsub.f32 %v1591, %v1592
        %v1594 = vmax.f32 %v1593, 0.0
        %v1595 = vsub.f32 %v1582, %v1586
        %v1596 = vadd.f32 %v1594, 1e-05
        %v1597 = vrsqrt.pop %v1596
        %v1598 = vmul.f32 %v1595, %v1597
        %v1599 = vmul.f32 %v1598, %v1384
        %v1600 = vadd.f32 %v1599, %v1391
        %1601 = vst.msk [vmem:[%s690] sm:$0xff] %vm720, %v1600
        %s1602 = sand.u32 %s366, 1
        %s1603 = scalar_lea.sflag [#allocation4], %s1602
        %s1604 = sand.u32 %s366, 1
        %s1605 = smul.addr %s1604, 8
        %s1606 = scalar_lea.vmem [#allocation25], %s1605
        // Predicated region
        $region133: #{tpu_custom_call.1} parent=75 // pred_check
          %p1607 = pneg %p376
        $region134: #{tpu_custom_call.1} parent=75 // pred_check_branch
          %1609 = sbr.rel (%p1607) target = $region136
        $region135: #{tpu_custom_call.1} parent=75 // pred_region
          %s1611 = ssub.s32 128, 128
          %1612 = vsyncadd %s1603, %s1611
          %s1613 = sadd.s32 %s45, %s44
          %s1614 = smul.addr %s1613, 128
          %s1615 = scalar_lea.hbm %s14, %s1614
          %s1617 = sshll.u32 %s1606, 4
          %s1618 = int_to_ptr.vmem [resolvable:$true] %s1617
          %1620 = dma.vmem_to_hbm [thread:$0]  %s1618, 128, %s1615, %s1603
        $region136: #{tpu_custom_call.1} parent=75 // pred_fallthru
          _
      $region76: #{tpu_custom_call.1} parent=5 // pred_fallthru
        _
      %p1621 = scmp.le.s32.totalorder 2, %s35
      // Predicated region
      $region137: #{tpu_custom_call.1} parent=5 // pred_check
        %p1622 = pneg %p1621
      $region138: #{tpu_custom_call.1} parent=5 // pred_check_branch
        %1624 = sbr.rel (%p1622) target = $region140
      $region139: #{tpu_custom_call.1} parent=5 // pred_region
        %s1625 = ssub.s32 %s35, 2
        // Predicated region
        $region141: #{tpu_custom_call.1} parent=139 // pred_check
          %p1626 = pneg %p382
        $region142: #{tpu_custom_call.1} parent=139 // pred_check_branch
          %1628 = sbr.rel (%p1626) target = $region144
        $region143: #{tpu_custom_call.1} parent=139 // pred_region
          %s1629 = sand.u32 %s367, 1
          %s1630 = scalar_lea.sflag [#allocation4], %s1629
          %s1631 = sand.u32 %s367, 1
          %s1632 = smul.addr %s1631, 8
          %s1633 = scalar_lea.vmem [#allocation25], %s1632
          %1634 = dma.done %s1630, 128
        $region144: #{tpu_custom_call.1} parent=139 // pred_fallthru
          _
      $region140: #{tpu_custom_call.1} parent=5 // pred_fallthru
        _
    $region6: #{tpu_custom_call.1} parent=1 // loop_footer
      %s39 = sadd.s32 1, %s35
    $region7: #{tpu_custom_call.1} parent=1 // loop_footer_branch
      %34 = sbr.rel target = $region3
    $region8: #{tpu_custom_call.1} parent=1 // loop_exit
      _
    %1635 = vsyncpa [#allocation3], 1
    %s1636 = scalar_lea.sflag [#allocation3], 1
    %1637 = vsyncpa %s1636, 1
    %1638 = vsyncpa [#allocation6], 1
    %s1639 = scalar_lea.sflag [#allocation6], 1
    %1640 = vsyncpa %s1639, 1
    %1641 = vsyncpa [#allocation9], 1
    %1642 = vsyncpa [#allocation12], 1
    %1643 = vsyncpa [#allocation15], 1
    %1644 = vsyncpa [#allocation18], 1
    %1645 = vsyncpa [#allocation21], 1
    %1646 = vsyncpa [#allocation24], 1
    %1647 = vsyncpa [#allocation4], 1
    %s1648 = scalar_lea.sflag [#allocation4], 1
    %1649 = vsyncpa %s1648, 1

// kernel: tpu_custom_call.1
$region0: #{tpu_custom_call.1}
  #allocation0 [shape = 'u32[]', space=smem, size = 0x4, offset = 0x4, fixed_abs, tag = 'smem constant byte address 0x4 - core index']
  #allocation1 [shape = 'u32[144,128]{1,0:T(1,128)}', space=vmem, size = 0x12000, scoped, tag = 'internal scratch']
  %s0 = inlined_call_operand.hbm [shape: f32[2,8,32], index: 0, kind: input, shape index: {}]
  %s1 = inlined_call_operand.hbm [shape: f32[2,1,8], index: 1, kind: input, shape index: {}]
  %s2 = inlined_call_operand.hbm [shape: bf16[32,32], index: 2, kind: input, shape index: {}]
  %s3 = inlined_call_operand.hbm [shape: f32[1,32], index: 3, kind: input, shape index: {}]
  %s4 = inlined_call_operand.hbm [shape: bf16[32,64], index: 4, kind: input, shape index: {}]
  %s5 = inlined_call_operand.hbm [shape: f32[1,64], index: 5, kind: input, shape index: {}]
  %s6 = inlined_call_operand.hbm [shape: bf16[32,32], index: 6, kind: input, shape index: {}]
  %s7 = inlined_call_operand.hbm [shape: f32[1,32], index: 7, kind: input, shape index: {}]
  %s8 = inlined_call_operand.hbm [shape: f32[1,32], index: 8, kind: input, shape index: {}]
  %s9 = inlined_call_operand.hbm [shape: f32[1,32], index: 9, kind: input, shape index: {}]
  %s10 = inlined_call_operand.hbm [shape: bf16[32,128], index: 10, kind: input, shape index: {}]
  %s11 = inlined_call_operand.hbm [shape: f32[1,128], index: 11, kind: input, shape index: {}]
  %s12 = inlined_call_operand.hbm [shape: bf16[128,32], index: 12, kind: input, shape index: {}]
  %s13 = inlined_call_operand.hbm [shape: f32[1,32], index: 13, kind: input, shape index: {}]
  %s14 = inlined_call_operand.hbm [shape: f32[2,8,32], index: 14, kind: output, shape index: {}]
  %s15 = sld [smem:[#allocation0]]
  $region145: #{tpu_custom_call.1} parent=0
    _
  %s17 = ssub.s32 1, %s15
  %s18 = scalar_select 0, %s17, %s15
  $region1: #{tpu_custom_call.1} parent=0
    #allocation2 [shape = 'u8[8192]{0}', space=vmem, size = 0x2000, scoped, tag = 'input window, operand 0']
    #allocation3 [shape = 's32[2]{0}', space=sflag, size = 0x8, scoped, tag = 'scoped memory for tpu_custom_call.1']
    #allocation4 [shape = 's32[2]{0}', space=sflag, size = 0x8, scoped, tag = 'scoped memory for tpu_custom_call.1']
    #allocation5 [shape = 'u8[1024]{0}', space=vmem, size = 0x400, scoped, tag = 'input window, operand 1']
    #allocation6 [shape = 's32[2]{0}', space=sflag, size = 0x8, scoped, tag = 'scoped memory for tpu_custom_call.1']
    #allocation7 [shape = 'u8[8192]{0}', space=vmem, size = 0x2000, scoped, tag = 'input window, operand 2, single buffered']
    #allocation8 [shape = 'u8[512]{0}', space=vmem, size = 0x400, scoped, tag = 'input window, operand 3, single buffered']
    #allocation9 [shape = 's32[1]{0}', space=sflag, size = 0x4, scoped, tag = 'scoped memory for tpu_custom_call.1']
    #allocation10 [shape = 'u8[8192]{0}', space=vmem, size = 0x2000, scoped, tag = 'input window, operand 4, single buffered']
    #allocation11 [shape = 'u8[512]{0}', space=vmem, size = 0x400, scoped, tag = 'input window, operand 5, single buffered']
    #allocation12 [shape = 's32[1]{0}', space=sflag, size = 0x4, scoped, tag = 'scoped memory for tpu_custom_call.1']
    #allocation13 [shape = 'u8[8192]{0}', space=vmem, size = 0x2000, scoped, tag = 'input window, operand 6, single buffered']
    #allocation14 [shape = 'u8[512]{0}', space=vmem, size = 0x400, scoped, tag = 'input window, operand 7, single buffered']
    #allocation15 [shape = 's32[1]{0}', space=sflag, size = 0x4, scoped, tag = 'scoped memory for tpu_custom_call.1']
    #allocation16 [shape = 'u8[512]{0}', space=vmem, size = 0x400, scoped, tag = 'input window, operand 8, single buffered']
    #allocation17 [shape = 'u8[512]{0}', space=vmem, size = 0x400, scoped, tag = 'input window, operand 9, single buffered']
    #allocation18 [shape = 's32[1]{0}', space=sflag, size = 0x4, scoped, tag = 'scoped memory for tpu_custom_call.1']
    #allocation19 [shape = 'u8[8192]{0}', space=vmem, size = 0x2000, scoped, tag = 'input window, operand 10, single buffered']
    #allocation20 [shape = 'u8[512]{0}', space=vmem, size = 0x400, scoped, tag = 'input window, operand 11, single buffered']
    #allocation21 [shape = 's32[1]{0}', space=sflag, size = 0x4, scoped, tag = 'scoped memory for tpu_custom_call.1']
    #allocation22 [shape = 'u8[32768]{0}', space=vmem, size = 0x8000, scoped, tag = 'input window, operand 12, single buffered']
    #allocation23 [shape = 'u8[512]{0}', space=vmem, size = 0x400, scoped, tag = 'input window, operand 13, single buffered']
    #allocation24 [shape = 's32[1]{0}', space=sflag, size = 0x4, scoped, tag = 'scoped memory for tpu_custom_call.1']
    #allocation25 [shape = 'u8[8192]{0}', space=vmem, size = 0x2000, scoped, tag = 'output window, operand 0']
    %19 = vsyncpa [#allocation3], 0
    %s20 = scalar_lea.sflag [#allocation3], 1
    %21 = vsyncpa %s20, 0
    %22 = vsyncpa [#allocation6], 0
    %s23 = scalar_lea.sflag [#allocation6], 1
    %24 = vsyncpa %s23, 0
    %25 = vsyncpa [#allocation9], 0
    %26 = vsyncpa [#allocation12], 0
    %27 = vsyncpa [#allocation15], 0
    %28 = vsyncpa [#allocation18], 0
    %29 = vsyncpa [#allocation21], 0
    %30 = vsyncpa [#allocation24], 0
    %31 = vsyncpa [#allocation4], 0
    %s32 = scalar_lea.sflag [#allocation4], 1
    %33 = vsyncpa %s32, 0
    loop: start=0, step=1, limit=4
    $region2: #{tpu_custom_call.1} parent=1 // loop_pre_header
      _
    $region3: #{tpu_custom_call.1} parent=1 // loop_header
      %s35 = sphi 0, %s39
      %p36 = scmp.ge.s32.totalorder %s35, 4
      %s42 = sphi 0, %s54
      %s43 = sphi 0, %s50
      %s44 = sphi 0, %s42
      %s45 = sphi 0, %s43
      %s46 = sphi 0, %s44
      %s47 = sphi 0, %s45
      %s57 = sphi 0, %s59
      %s60 = sphi 0, %s57
      %s61 = sphi 0, %s60
      %s77 = sphi 0, %s61
      %s83 = sphi 0, %s85
      %s86 = sphi 0, %s83
      %s87 = sphi 0, %s86
      %s103 = sphi 0, %s87
      %s107 = sphi 0, %s107
      %s109 = sphi 0, %s107
      %s110 = sphi 0, %s109
      %s124 = sphi 0, %s110
      %s128 = sphi 0, %s128
      %s130 = sphi 0, %s128
      %s131 = sphi 0, %s130
      %s145 = sphi 0, %s131
      %s149 = sphi 0, %s149
      %s151 = sphi 0, %s149
      %s152 = sphi 0, %s151
      %s166 = sphi 0, %s152
      %s170 = sphi 0, %s170
      %s172 = sphi 0, %s170
      %s173 = sphi 0, %s172
      %s187 = sphi 0, %s173
      %s191 = sphi 0, %s191
      %s193 = sphi 0, %s191
      %s194 = sphi 0, %s193
      %s208 = sphi 0, %s194
      %s212 = sphi 0, %s212
      %s214 = sphi 0, %s212
      %s215 = sphi 0, %s214
      %s229 = sphi 0, %s215
      %s233 = sphi 0, %s233
      %s235 = sphi 0, %s233
      %s236 = sphi 0, %s235
      %s250 = sphi 0, %s236
      %s254 = sphi 0, %s254
      %s256 = sphi 0, %s254
      %s257 = sphi 0, %s256
      %s271 = sphi 0, %s257
      %s275 = sphi 0, %s275
      %s277 = sphi 0, %s275
      %s278 = sphi 0, %s277
      %s292 = sphi 0, %s278
      %s296 = sphi 0, %s296
      %s298 = sphi 0, %s296
      %s299 = sphi 0, %s298
      %s313 = sphi 0, %s299
      %s317 = sphi 0, %s317
      %s319 = sphi 0, %s317
      %s320 = sphi 0, %s319
      %s334 = sphi 0, %s320
      %s338 = sphi 0, %s338
      %s340 = sphi 0, %s338
      %s341 = sphi 0, %s340
      %s355 = sphi 0, %s341
      %s363 = sphi 0, %s365
      %s366 = sphi 0, %s363
      %s367 = sphi 0, %s366
      %s383 = sphi 0, %s367
    $region4: #{tpu_custom_call.1} parent=1 // loop_header_branch
      %38 = sbr.rel (%p36) target = $region8
    $region5: #{tpu_custom_call.1} parent=1 // loop_body
      %s40 = ssub.s32 %s35, 1
      %s41 = ssub.s32 %s35, 2
      %s48 = sadd.s32 1, %s43
      %p49 = scmp.ge.s32.totalorder %s48, 1
      %s50 = scalar_select %p49, 0, %s48
      %s51 = sadd.s32 1, %s42
      %s52 = scalar_select %p49, %s51, %s42
      %p53 = scmp.ge.s32.totalorder %s52, 2
      %s54 = scalar_select %p53, 0, %s52
      %s55 = ssub.s32 %s42, %s54
      %p56 = scmp.eq.s32.totalorder %s55, 0
      %s58 = sadd.s32 %s57, 1
      %s59 = scalar_select %p56, %s57, %s58
      %p62 = pneg %p56
      %p63 = scmp.eq.s32.totalorder %s35, 1
      %p64 = por %p62, %p63
      %p65 = scmp.ne.s32.totalorder %s57, %s60
      %p66 = scmp.eq.s32.totalorder %s35, 0
      %p67 = por %p65, %p66
      %p68 = scmp.ne.s32.totalorder %s57, %s60
      %p69 = scmp.eq.s32.totalorder %s40, 1
      %p70 = por %p68, %p69
      %p71 = scmp.ne.s32.totalorder %s60, %s61
      %p72 = scmp.eq.s32.totalorder %s40, 0
      %p73 = por %p71, %p72
      %p74 = scmp.ne.s32.totalorder %s60, %s61
      %p75 = scmp.eq.s32.totalorder %s41, 1
      %p76 = por %p74, %p75
      %p78 = scmp.ne.s32.totalorder %s61, %s77
      %p79 = scmp.eq.s32.totalorder %s41, 0
      %p80 = por %p78, %p79
      %s81 = ssub.s32 %s42, %s54
      %p82 = scmp.eq.s32.totalorder %s81, 0
      %s84 = sadd.s32 %s83, 1
      %s85 = scalar_select %p82, %s83, %s84
      %p88 = pneg %p82
      %p89 = scmp.eq.s32.totalorder %s35, 1
      %p90 = por %p88, %p89
      %p91 = scmp.ne.s32.totalorder %s83, %s86
      %p92 = scmp.eq.s32.totalorder %s35, 0
      %p93 = por %p91, %p92
      %p94 = scmp.ne.s32.totalorder %s83, %s86
      %p95 = scmp.eq.s32.totalorder %s40, 1
      %p96 = por %p94, %p95
      %p97 = scmp.ne.s32.totalorder %s86, %s87
      %p98 = scmp.eq.s32.totalorder %s40, 0
      %p99 = por %p97, %p98
      %p100 = scmp.ne.s32.totalorder %s86, %s87
      %p101 = scmp.eq.s32.totalorder %s41, 1
      %p102 = por %p100, %p101
      %p104 = scmp.ne.s32.totalorder %s87, %s103
      %p105 = scmp.eq.s32.totalorder %s41, 0
      %p106 = por %p104, %p105
      %s108 = sadd.s32 %s107, 1
      %p111 = scmp.eq.s32.totalorder %s35, 1
      %p112 = scmp.ne.s32.totalorder %s107, %s109
      %p113 = scmp.eq.s32.totalorder %s35, 0
      %p114 = por %p112, %p113
      %p115 = scmp.ne.s32.totalorder %s107, %s109
      %p116 = scmp.eq.s32.totalorder %s40, 1
      %p117 = por %p115, %p116
      %p118 = scmp.ne.s32.totalorder %s109, %s110
      %p119 = scmp.eq.s32.totalorder %s40, 0
      %p120 = por %p118, %p119
      %p121 = scmp.ne.s32.totalorder %s109, %s110
      %p122 = scmp.eq.s32.totalorder %s41, 1
      %p123 = por %p121, %p122
      %p125 = scmp.ne.s32.totalorder %s110, %s124
      %p126 = scmp.eq.s32.totalorder %s41, 0
      %p127 = por %p125, %p126
      %s129 = sadd.s32 %s128, 1
      %p132 = scmp.eq.s32.totalorder %s35, 1
      %p133 = scmp.ne.s32.totalorder %s128, %s130
      %p134 = scmp.eq.s32.totalorder %s35, 0
      %p135 = por %p133, %p134
      %p136 = scmp.ne.s32.totalorder %s128, %s130
      %p137 = scmp.eq.s32.totalorder %s40, 1
      %p138 = por %p136, %p137
      %p139 = scmp.ne.s32.totalorder %s130, %s131
      %p140 = scmp.eq.s32.totalorder %s40, 0
      %p141 = por %p139, %p140
      %p142 = scmp.ne.s32.totalorder %s130, %s131
      %p143 = scmp.eq.s32.totalorder %s41, 1
      %p144 = por %p142, %p143
      %p146 = scmp.ne.s32.totalorder %s131, %s145
      %p147 = scmp.eq.s32.totalorder %s41, 0
      %p148 = por %p146, %p147
      %s150 = sadd.s32 %s149, 1
      %p153 = scmp.eq.s32.totalorder %s35, 1
      %p154 = scmp.ne.s32.totalorder %s149, %s151
      %p155 = scmp.eq.s32.totalorder %s35, 0
      %p156 = por %p154, %p155
      %p157 = scmp.ne.s32.totalorder %s149, %s151
      %p158 = scmp.eq.s32.totalorder %s40, 1
      %p159 = por %p157, %p158
      %p160 = scmp.ne.s32.totalorder %s151, %s152
      %p161 = scmp.eq.s32.totalorder %s40, 0
      %p162 = por %p160, %p161
      %p163 = scmp.ne.s32.totalorder %s151, %s152
      %p164 = scmp.eq.s32.totalorder %s41, 1
      %p165 = por %p163, %p164
      %p167 = scmp.ne.s32.totalorder %s152, %s166
      %p168 = scmp.eq.s32.totalorder %s41, 0
      %p169 = por %p167, %p168
      %s171 = sadd.s32 %s170, 1
      %p174 = scmp.eq.s32.totalorder %s35, 1
      %p175 = scmp.ne.s32.totalorder %s170, %s172
      %p176 = scmp.eq.s32.totalorder %s35, 0
      %p177 = por %p175, %p176
      %p178 = scmp.ne.s32.totalorder %s170, %s172
      %p179 = scmp.eq.s32.totalorder %s40, 1
      %p180 = por %p178, %p179
      %p181 = scmp.ne.s32.totalorder %s172, %s173
      %p182 = scmp.eq.s32.totalorder %s40, 0
      %p183 = por %p181, %p182
      %p184 = scmp.ne.s32.totalorder %s172, %s173
      %p185 = scmp.eq.s32.totalorder %s41, 1
      %p186 = por %p184, %p185
      %p188 = scmp.ne.s32.totalorder %s173, %s187
      %p189 = scmp.eq.s32.totalorder %s41, 0
      %p190 = por %p188, %p189
      %s192 = sadd.s32 %s191, 1
      %p195 = scmp.eq.s32.totalorder %s35, 1
      %p196 = scmp.ne.s32.totalorder %s191, %s193
      %p197 = scmp.eq.s32.totalorder %s35, 0
      %p198 = por %p196, %p197
      %p199 = scmp.ne.s32.totalorder %s191, %s193
      %p200 = scmp.eq.s32.totalorder %s40, 1
      %p201 = por %p199, %p200
      %p202 = scmp.ne.s32.totalorder %s193, %s194
      %p203 = scmp.eq.s32.totalorder %s40, 0
      %p204 = por %p202, %p203
      %p205 = scmp.ne.s32.totalorder %s193, %s194
      %p206 = scmp.eq.s32.totalorder %s41, 1
      %p207 = por %p205, %p206
      %p209 = scmp.ne.s32.totalorder %s194, %s208
      %p210 = scmp.eq.s32.totalorder %s41, 0
      %p211 = por %p209, %p210
      %s213 = sadd.s32 %s212, 1
      %p216 = scmp.eq.s32.totalorder %s35, 1
      %p217 = scmp.ne.s32.totalorder %s212, %s214
      %p218 = scmp.eq.s32.totalorder %s35, 0
      %p219 = por %p217, %p218
      %p220 = scmp.ne.s32.totalorder %s212, %s214
      %p221 = scmp.eq.s32.totalorder %s40, 1
      %p222 = por %p220, %p221
      %p223 = scmp.ne.s32.totalorder %s214, %s215
      %p224 = scmp.eq.s32.totalorder %s40, 0
      %p225 = por %p223, %p224
      %p226 = scmp.ne.s32.totalorder %s214, %s215
      %p227 = scmp.eq.s32.totalorder %s41, 1
      %p228 = por %p226, %p227
      %p230 = scmp.ne.s32.totalorder %s215, %s229
      %p231 = scmp.eq.s32.totalorder %s41, 0
      %p232 = por %p230, %p231
      %s234 = sadd.s32 %s233, 1
      %p237 = scmp.eq.s32.totalorder %s35, 1
      %p238 = scmp.ne.s32.totalorder %s233, %s235
      %p239 = scmp.eq.s32.totalorder %s35, 0
      %p240 = por %p238, %p239
      %p241 = scmp.ne.s32.totalorder %s233, %s235
      %p242 = scmp.eq.s32.totalorder %s40, 1
      %p243 = por %p241, %p242
      %p244 = scmp.ne.s32.totalorder %s235, %s236
      %p245 = scmp.eq.s32.totalorder %s40, 0
      %p246 = por %p244, %p245
      %p247 = scmp.ne.s32.totalorder %s235, %s236
      %p248 = scmp.eq.s32.totalorder %s41, 1
      %p249 = por %p247, %p248
      %p251 = scmp.ne.s32.totalorder %s236, %s250
      %p252 = scmp.eq.s32.totalorder %s41, 0
      %p253 = por %p251, %p252
      %s255 = sadd.s32 %s254, 1
      %p258 = scmp.eq.s32.totalorder %s35, 1
      %p259 = scmp.ne.s32.totalorder %s254, %s256
      %p260 = scmp.eq.s32.totalorder %s35, 0
      %p261 = por %p259, %p260
      %p262 = scmp.ne.s32.totalorder %s254, %s256
      %p263 = scmp.eq.s32.totalorder %s40, 1
      %p264 = por %p262, %p263
      %p265 = scmp.ne.s32.totalorder %s256, %s257
      %p266 = scmp.eq.s32.totalorder %s40, 0
      %p267 = por %p265, %p266
      %p268 = scmp.ne.s32.totalorder %s256, %s257
      %p269 = scmp.eq.s32.totalorder %s41, 1
      %p270 = por %p268, %p269
      %p272 = scmp.ne.s32.totalorder %s257, %s271
      %p273 = scmp.eq.s32.totalorder %s41, 0
      %p274 = por %p272, %p273
      %s276 = sadd.s32 %s275, 1
      %p279 = scmp.eq.s32.totalorder %s35, 1
      %p280 = scmp.ne.s32.totalorder %s275, %s277
      %p281 = scmp.eq.s32.totalorder %s35, 0
      %p282 = por %p280, %p281
      %p283 = scmp.ne.s32.totalorder %s275, %s277
      %p284 = scmp.eq.s32.totalorder %s40, 1
      %p285 = por %p283, %p284
      %p286 = scmp.ne.s32.totalorder %s277, %s278
      %p287 = scmp.eq.s32.totalorder %s40, 0
      %p288 = por %p286, %p287
      %p289 = scmp.ne.s32.totalorder %s277, %s278
      %p290 = scmp.eq.s32.totalorder %s41, 1
      %p291 = por %p289, %p290
      %p293 = scmp.ne.s32.totalorder %s278, %s292
      %p294 = scmp.eq.s32.totalorder %s41, 0
      %p295 = por %p293, %p294
      %s297 = sadd.s32 %s296, 1
      %p300 = scmp.eq.s32.totalorder %s35, 1
      %p301 = scmp.ne.s32.totalorder %s296, %s298
      %p302 = scmp.eq.s32.totalorder %s35, 0
      %p303 = por %p301, %p302
      %p304 = scmp.ne.s32.totalorder %s296, %s298
      %p305 = scmp.eq.s32.totalorder %s40, 1
      %p306 = por %p304, %p305
      %p307 = scmp.ne.s32.totalorder %s298, %s299
      %p308 = scmp.eq.s32.totalorder %s40, 0
      %p309 = por %p307, %p308
      %p310 = scmp.ne.s32.totalorder %s298, %s299
      %p311 = scmp.eq.s32.totalorder %s41, 1
      %p312 = por %p310, %p311
      %p314 = scmp.ne.s32.totalorder %s299, %s313
      %p315 = scmp.eq.s32.totalorder %s41, 0
      %p316 = por %p314, %p315
      %s318 = sadd.s32 %s317, 1
      %p321 = scmp.eq.s32.totalorder %s35, 1
      %p322 = scmp.ne.s32.totalorder %s317, %s319
      %p323 = scmp.eq.s32.totalorder %s35, 0
      %p324 = por %p322, %p323
      %p325 = scmp.ne.s32.totalorder %s317, %s319
      %p326 = scmp.eq.s32.totalorder %s40, 1
      %p327 = por %p325, %p326
      %p328 = scmp.ne.s32.totalorder %s319, %s320
      %p329 = scmp.eq.s32.totalorder %s40, 0
      %p330 = por %p328, %p329
      %p331 = scmp.ne.s32.totalorder %s319, %s320
      %p332 = scmp.eq.s32.totalorder %s41, 1
      %p333 = por %p331, %p332
      %p335 = scmp.ne.s32.totalorder %s320, %s334
      %p336 = scmp.eq.s32.totalorder %s41, 0
      %p337 = por %p335, %p336
      %s339 = sadd.s32 %s338, 1
      %p342 = scmp.eq.s32.totalorder %s35, 1
      %p343 = scmp.ne.s32.totalorder %s338, %s340
      %p344 = scmp.eq.s32.totalorder %s35, 0
      %p345 = por %p343, %p344
      %p346 = scmp.ne.s32.totalorder %s338, %s340
      %p347 = scmp.eq.s32.totalorder %s40, 1
      %p348 = por %p346, %p347
      %p349 = scmp.ne.s32.totalorder %s340, %s341
      %p350 = scmp.eq.s32.totalorder %s40, 0
      %p351 = por %p349, %p350
      %p352 = scmp.ne.s32.totalorder %s340, %s341
      %p353 = scmp.eq.s32.totalorder %s41, 1
      %p354 = por %p352, %p353
      %p356 = scmp.ne.s32.totalorder %s341, %s355
      %p357 = scmp.eq.s32.totalorder %s41, 0
      %p358 = por %p356, %p357
      %s359 = ssub.s32 %s42, %s54
      %s360 = ssub.s32 %s43, %s50
      %s361 = sor.u32 %s359, %s360
      %p362 = scmp.eq.s32.totalorder %s361, 0
      %s364 = sadd.s32 %s363, 1
      %s365 = scalar_select %p362, %s363, %s364
      %p368 = pneg %p362
      %p369 = scmp.eq.s32.totalorder %s35, 1
      %p370 = por %p368, %p369
      %p371 = scmp.ne.s32.totalorder %s363, %s366
      %p372 = scmp.eq.s32.totalorder %s35, 0
      %p373 = por %p371, %p372
      %p374 = scmp.ne.s32.totalorder %s363, %s366
      %p375 = scmp.eq.s32.totalorder %s40, 1
      %p376 = por %p374, %p375
      %p377 = scmp.ne.s32.totalorder %s366, %s367
      %p378 = scmp.eq.s32.totalorder %s40, 0
      %p379 = por %p377, %p378
      %p380 = scmp.ne.s32.totalorder %s366, %s367
      %p381 = scmp.eq.s32.totalorder %s41, 1
      %p382 = por %p380, %p381
      %p384 = scmp.ne.s32.totalorder %s367, %s383
      %p385 = scmp.eq.s32.totalorder %s41, 0
      %p386 = por %p384, %p385
      %p387 = scmp.le.s32.totalorder 1, %s35
      %p388 = scmp.lt.s32.totalorder %s35, 3
      %p389 = pnand %p387, %p388
      %p390 = pneg %p389
      // Predicated region
      $region9: #{tpu_custom_call.1} parent=5 // pred_check
        _
      $region10: #{tpu_custom_call.1} parent=5 // pred_check_branch
        %392 = sbr.rel (%p389) target = $region12
      $region11: #{tpu_custom_call.1} parent=5 // pred_region
        %s393 = ssub.s32 %s35, 1
        // Predicated region
        $region13: #{tpu_custom_call.1} parent=11 // pred_check
          %p394 = pneg %p120
        $region14: #{tpu_custom_call.1} parent=11 // pred_check_branch
          %396 = sbr.rel (%p394) target = $region16
        $region15: #{tpu_custom_call.1} parent=11 // pred_region
          %s398 = ssub.s32 256, 256
          %399 = vsyncadd [#allocation6], %s398
          %s400 = sshll.u32 [#allocation7], 4
          %s401 = int_to_ptr.vmem [resolvable:$true] %s400
          %406 = dma.hbm_to_vmem [thread:$0]  %s2, 256, %s401, [#allocation6], 64, 64, 4
        $region16: #{tpu_custom_call.1} parent=11 // pred_fallthru
          _
        // Predicated region
        $region17: #{tpu_custom_call.1} parent=11 // pred_check
          %p407 = pneg %p141
        $region18: #{tpu_custom_call.1} parent=11 // pred_check_branch
          %409 = sbr.rel (%p407) target = $region20
        $region19: #{tpu_custom_call.1} parent=11 // pred_region
          %s411 = ssub.s32 16, 16
          %412 = vsyncadd [#allocation9], %s411
          %s414 = sshll.u32 [#allocation8], 4
          %s415 = int_to_ptr.vmem [resolvable:$true] %s414
          %417 = dma.hbm_to_vmem [thread:$0]  %s3, 16, %s415, [#allocation9]
        $region20: #{tpu_custom_call.1} parent=11 // pred_fallthru
          _
        // Predicated region
        $region21: #{tpu_custom_call.1} parent=11 // pred_check
          %p418 = pneg %p162
        $region22: #{tpu_custom_call.1} parent=11 // pred_check_branch
          %420 = sbr.rel (%p418) target = $region24
        $region23: #{tpu_custom_call.1} parent=11 // pred_region
          %s422 = ssub.s32 256, 256
          %423 = vsyncadd [#allocation9], %s422
          %s424 = sshll.u32 [#allocation10], 4
          %s425 = int_to_ptr.vmem [resolvable:$true] %s424
          %430 = dma.hbm_to_vmem [thread:$0]  %s4, 256, %s425, [#allocation9], 64, 64, 4
        $region24: #{tpu_custom_call.1} parent=11 // pred_fallthru
          _
        // Predicated region
        $region25: #{tpu_custom_call.1} parent=11 // pred_check
          %p431 = pneg %p183
        $region26: #{tpu_custom_call.1} parent=11 // pred_check_branch
          %433 = sbr.rel (%p431) target = $region28
        $region27: #{tpu_custom_call.1} parent=11 // pred_region
          %s435 = ssub.s32 16, 16
          %436 = vsyncadd [#allocation12], %s435
          %s438 = sshll.u32 [#allocation11], 4
          %s439 = int_to_ptr.vmem [resolvable:$true] %s438
          %441 = dma.hbm_to_vmem [thread:$0]  %s5, 16, %s439, [#allocation12]
        $region28: #{tpu_custom_call.1} parent=11 // pred_fallthru
          _
        // Predicated region
        $region29: #{tpu_custom_call.1} parent=11 // pred_check
          %p442 = pneg %p204
        $region30: #{tpu_custom_call.1} parent=11 // pred_check_branch
          %444 = sbr.rel (%p442) target = $region32
        $region31: #{tpu_custom_call.1} parent=11 // pred_region
          %s446 = ssub.s32 256, 256
          %447 = vsyncadd [#allocation12], %s446
          %s448 = sshll.u32 [#allocation13], 4
          %s449 = int_to_ptr.vmem [resolvable:$true] %s448
          %454 = dma.hbm_to_vmem [thread:$0]  %s6, 256, %s449, [#allocation12], 64, 64, 4
        $region32: #{tpu_custom_call.1} parent=11 // pred_fallthru
          _
        // Predicated region
        $region33: #{tpu_custom_call.1} parent=11 // pred_check
          %p455 = pneg %p225
        $region34: #{tpu_custom_call.1} parent=11 // pred_check_branch
          %457 = sbr.rel (%p455) target = $region36
        $region35: #{tpu_custom_call.1} parent=11 // pred_region
          %s459 = ssub.s32 16, 16
          %460 = vsyncadd [#allocation15], %s459
          %s462 = sshll.u32 [#allocation14], 4
          %s463 = int_to_ptr.vmem [resolvable:$true] %s462
          %465 = dma.hbm_to_vmem [thread:$0]  %s7, 16, %s463, [#allocation15]
        $region36: #{tpu_custom_call.1} parent=11 // pred_fallthru
          _
        // Predicated region
        $region37: #{tpu_custom_call.1} parent=11 // pred_check
          %p466 = pneg %p246
        $region38: #{tpu_custom_call.1} parent=11 // pred_check_branch
          %468 = sbr.rel (%p466) target = $region40
        $region39: #{tpu_custom_call.1} parent=11 // pred_region
          %s470 = ssub.s32 16, 16
          %471 = vsyncadd [#allocation15], %s470
          %s473 = sshll.u32 [#allocation16], 4
          %s474 = int_to_ptr.vmem [resolvable:$true] %s473
          %476 = dma.hbm_to_vmem [thread:$0]  %s8, 16, %s474, [#allocation15]
        $region40: #{tpu_custom_call.1} parent=11 // pred_fallthru
          _
        // Predicated region
        $region41: #{tpu_custom_call.1} parent=11 // pred_check
          %p477 = pneg %p267
        $region42: #{tpu_custom_call.1} parent=11 // pred_check_branch
          %479 = sbr.rel (%p477) target = $region44
        $region43: #{tpu_custom_call.1} parent=11 // pred_region
          %s481 = ssub.s32 16, 16
          %482 = vsyncadd [#allocation18], %s481
          %s484 = sshll.u32 [#allocation17], 4
          %s485 = int_to_ptr.vmem [resolvable:$true] %s484
          %487 = dma.hbm_to_vmem [thread:$0]  %s9, 16, %s485, [#allocation18]
        $region44: #{tpu_custom_call.1} parent=11 // pred_fallthru
          _
        // Predicated region
        $region45: #{tpu_custom_call.1} parent=11 // pred_check
          %p488 = pneg %p288
        $region46: #{tpu_custom_call.1} parent=11 // pred_check_branch
          %490 = sbr.rel (%p488) target = $region48
        $region47: #{tpu_custom_call.1} parent=11 // pred_region
          %s492 = ssub.s32 256, 256
          %493 = vsyncadd [#allocation18], %s492
          %s494 = sshll.u32 [#allocation19], 4
          %s495 = int_to_ptr.vmem [resolvable:$true] %s494
          %500 = dma.hbm_to_vmem [thread:$0]  %s10, 256, %s495, [#allocation18], 64, 64, 4
        $region48: #{tpu_custom_call.1} parent=11 // pred_fallthru
          _
        // Predicated region
        $region49: #{tpu_custom_call.1} parent=11 // pred_check
          %p501 = pneg %p309
        $region50: #{tpu_custom_call.1} parent=11 // pred_check_branch
          %503 = sbr.rel (%p501) target = $region52
        $region51: #{tpu_custom_call.1} parent=11 // pred_region
          %s505 = ssub.s32 16, 16
          %506 = vsyncadd [#allocation21], %s505
          %s508 = sshll.u32 [#allocation20], 4
          %s509 = int_to_ptr.vmem [resolvable:$true] %s508
          %511 = dma.hbm_to_vmem [thread:$0]  %s11, 16, %s509, [#allocation21]
        $region52: #{tpu_custom_call.1} parent=11 // pred_fallthru
          _
        // Predicated region
        $region53: #{tpu_custom_call.1} parent=11 // pred_check
          %p512 = pneg %p330
        $region54: #{tpu_custom_call.1} parent=11 // pred_check_branch
          %514 = sbr.rel (%p512) target = $region56
        $region55: #{tpu_custom_call.1} parent=11 // pred_region
          %s516 = ssub.s32 1024, 1024
          %517 = vsyncadd [#allocation21], %s516
          %s518 = sshll.u32 [#allocation22], 4
          %s519 = int_to_ptr.vmem [resolvable:$true] %s518
          %524 = dma.hbm_to_vmem [thread:$0]  %s12, 1024, %s519, [#allocation21], 64, 64, 4
        $region56: #{tpu_custom_call.1} parent=11 // pred_fallthru
          _
        // Predicated region
        $region57: #{tpu_custom_call.1} parent=11 // pred_check
          %p525 = pneg %p351
        $region58: #{tpu_custom_call.1} parent=11 // pred_check_branch
          %527 = sbr.rel (%p525) target = $region60
        $region59: #{tpu_custom_call.1} parent=11 // pred_region
          %s529 = ssub.s32 16, 16
          %530 = vsyncadd [#allocation24], %s529
          %s532 = sshll.u32 [#allocation23], 4
          %s533 = int_to_ptr.vmem [resolvable:$true] %s532
          %535 = dma.hbm_to_vmem [thread:$0]  %s13, 16, %s533, [#allocation24]
        $region60: #{tpu_custom_call.1} parent=11 // pred_fallthru
          _
      $region12: #{tpu_custom_call.1} parent=5 // pred_fallthru
        _
      %p536 = scmp.lt.s32.totalorder %s35, 2
      // Predicated region
      $region61: #{tpu_custom_call.1} parent=5 // pred_check
        %p537 = pneg %p536
      $region62: #{tpu_custom_call.1} parent=5 // pred_check_branch
        %539 = sbr.rel (%p537) target = $region64
      $region63: #{tpu_custom_call.1} parent=5 // pred_region
        // Predicated region
        $region65: #{tpu_custom_call.1} parent=63 // pred_check
          %p540 = pneg %p67
        $region66: #{tpu_custom_call.1} parent=63 // pred_check_branch
          %542 = sbr.rel (%p540) target = $region68
        $region67: #{tpu_custom_call.1} parent=63 // pred_region
          %s543 = sand.u32 %s57, 1
          %s544 = scalar_lea.sflag [#allocation3], %s543
          %s545 = sand.u32 %s57, 1
          %s546 = smul.addr %s545, 8
          %s547 = scalar_lea.vmem [#allocation2], %s546
          %s549 = ssub.s32 128, 128
          %550 = vsyncadd %s544, %s549
          %s551 = smul.addr %s42, 128
          %s552 = scalar_lea.hbm %s0, %s551
          %s554 = sshll.u32 %s547, 4
          %s555 = int_to_ptr.vmem [resolvable:$true] %s554
          %557 = dma.hbm_to_vmem [thread:$0]  %s552, 128, %s555, %s544
        $region68: #{tpu_custom_call.1} parent=63 // pred_fallthru
          _
        // Predicated region
        $region69: #{tpu_custom_call.1} parent=63 // pred_check
          %p558 = pneg %p93
        $region70: #{tpu_custom_call.1} parent=63 // pred_check_branch
          %560 = sbr.rel (%p558) target = $region72
        $region71: #{tpu_custom_call.1} parent=63 // pred_region
          %s561 = sand.u32 %s35, 1
          %s562 = scalar_lea.sflag [#allocation6], %s561
          %s563 = sand.u32 %s83, 1
          %s564 = scalar_lea.vmem [#allocation5], %s563
          %s566 = ssub.s32 16, 16
          %567 = vsyncadd %s562, %s566
          %s568 = smul.addr %s42, 16
          %s569 = scalar_lea.hbm %s1, %s568
          %s571 = sshll.u32 %s564, 4
          %s572 = int_to_ptr.vmem [resolvable:$true] %s571
          %574 = dma.hbm_to_vmem [thread:$0]  %s569, 16, %s572, %s562
        $region72: #{tpu_custom_call.1} parent=63 // pred_fallthru
          _
      $region64: #{tpu_custom_call.1} parent=5 // pred_fallthru
        _
      %p575 = scmp.le.s32.totalorder 1, %s35
      %p576 = scmp.lt.s32.totalorder %s35, 3
      %p577 = pnand %p575, %p576
      %p578 = pneg %p577
      // Predicated region
      $region73: #{tpu_custom_call.1} parent=5 // pred_check
        _
      $region74: #{tpu_custom_call.1} parent=5 // pred_check_branch
        %580 = sbr.rel (%p577) target = $region76
      $region75: #{tpu_custom_call.1} parent=5 // pred_region
        %s581 = ssub.s32 %s35, 1
        %s582 = sand.u32 %s60, 1
        %s583 = scalar_lea.sflag [#allocation3], %s582
        %s584 = sand.u32 %s60, 1
        %s585 = smul.addr %s584, 8
        %s586 = scalar_lea.vmem [#allocation2], %s585
        // Predicated region
        $region77: #{tpu_custom_call.1} parent=75 // pred_check
          %p587 = pneg %p73
        $region78: #{tpu_custom_call.1} parent=75 // pred_check_branch
          %589 = sbr.rel (%p587) target = $region80
        $region79: #{tpu_custom_call.1} parent=75 // pred_region
          %590 = dma.done %s583, 128
        $region80: #{tpu_custom_call.1} parent=75 // pred_fallthru
          _
        %s591 = sand.u32 %s40, 1
        %s592 = scalar_lea.sflag [#allocation6], %s591
        %s593 = sand.u32 %s86, 1
        %s594 = scalar_lea.vmem [#allocation5], %s593
        // Predicated region
        $region81: #{tpu_custom_call.1} parent=75 // pred_check
          %p595 = pneg %p99
        $region82: #{tpu_custom_call.1} parent=75 // pred_check_branch
          %597 = sbr.rel (%p595) target = $region84
        $region83: #{tpu_custom_call.1} parent=75 // pred_region
          %598 = dma.done %s592, 16
        $region84: #{tpu_custom_call.1} parent=75 // pred_fallthru
          _
        // Predicated region
        $region85: #{tpu_custom_call.1} parent=75 // pred_check
          %p599 = pneg %p120
        $region86: #{tpu_custom_call.1} parent=75 // pred_check_branch
          %601 = sbr.rel (%p599) target = $region88
        $region87: #{tpu_custom_call.1} parent=75 // pred_region
          %602 = dma.done [#allocation6], 256
        $region88: #{tpu_custom_call.1} parent=75 // pred_fallthru
          _
        // Predicated region
        $region89: #{tpu_custom_call.1} parent=75 // pred_check
          %p603 = pneg %p141
        $region90: #{tpu_custom_call.1} parent=75 // pred_check_branch
          %605 = sbr.rel (%p603) target = $region92
        $region91: #{tpu_custom_call.1} parent=75 // pred_region
          %606 = dma.done [#allocation9], 16
        $region92: #{tpu_custom_call.1} parent=75 // pred_fallthru
          _
        // Predicated region
        $region93: #{tpu_custom_call.1} parent=75 // pred_check
          %p607 = pneg %p162
        $region94: #{tpu_custom_call.1} parent=75 // pred_check_branch
          %609 = sbr.rel (%p607) target = $region96
        $region95: #{tpu_custom_call.1} parent=75 // pred_region
          %610 = dma.done [#allocation9], 256
        $region96: #{tpu_custom_call.1} parent=75 // pred_fallthru
          _
        // Predicated region
        $region97: #{tpu_custom_call.1} parent=75 // pred_check
          %p611 = pneg %p183
        $region98: #{tpu_custom_call.1} parent=75 // pred_check_branch
          %613 = sbr.rel (%p611) target = $region100
        $region99: #{tpu_custom_call.1} parent=75 // pred_region
          %614 = dma.done [#allocation12], 16
        $region100: #{tpu_custom_call.1} parent=75 // pred_fallthru
          _
        // Predicated region
        $region101: #{tpu_custom_call.1} parent=75 // pred_check
          %p615 = pneg %p204
        $region102: #{tpu_custom_call.1} parent=75 // pred_check_branch
          %617 = sbr.rel (%p615) target = $region104
        $region103: #{tpu_custom_call.1} parent=75 // pred_region
          %618 = dma.done [#allocation12], 256
        $region104: #{tpu_custom_call.1} parent=75 // pred_fallthru
          _
        // Predicated region
        $region105: #{tpu_custom_call.1} parent=75 // pred_check
          %p619 = pneg %p225
        $region106: #{tpu_custom_call.1} parent=75 // pred_check_branch
          %621 = sbr.rel (%p619) target = $region108
        $region107: #{tpu_custom_call.1} parent=75 // pred_region
          %622 = dma.done [#allocation15], 16
        $region108: #{tpu_custom_call.1} parent=75 // pred_fallthru
          _
        // Predicated region
        $region109: #{tpu_custom_call.1} parent=75 // pred_check
          %p623 = pneg %p246
        $region110: #{tpu_custom_call.1} parent=75 // pred_check_branch
          %625 = sbr.rel (%p623) target = $region112
        $region111: #{tpu_custom_call.1} parent=75 // pred_region
          %626 = dma.done [#allocation15], 16
        $region112: #{tpu_custom_call.1} parent=75 // pred_fallthru
          _
        // Predicated region
        $region113: #{tpu_custom_call.1} parent=75 // pred_check
          %p627 = pneg %p267
        $region114: #{tpu_custom_call.1} parent=75 // pred_check_branch
          %629 = sbr.rel (%p627) target = $region116
        $region115: #{tpu_custom_call.1} parent=75 // pred_region
          %630 = dma.done [#allocation18], 16
        $region116: #{tpu_custom_call.1} parent=75 // pred_fallthru
          _
        // Predicated region
        $region117: #{tpu_custom_call.1} parent=75 // pred_check
          %p631 = pneg %p288
        $region118: #{tpu_custom_call.1} parent=75 // pred_check_branch
          %633 = sbr.rel (%p631) target = $region120
        $region119: #{tpu_custom_call.1} parent=75 // pred_region
          %634 = dma.done [#allocation18], 256
        $region120: #{tpu_custom_call.1} parent=75 // pred_fallthru
          _
        // Predicated region
        $region121: #{tpu_custom_call.1} parent=75 // pred_check
          %p635 = pneg %p309
        $region122: #{tpu_custom_call.1} parent=75 // pred_check_branch
          %637 = sbr.rel (%p635) target = $region124
        $region123: #{tpu_custom_call.1} parent=75 // pred_region
          %638 = dma.done [#allocation21], 16
        $region124: #{tpu_custom_call.1} parent=75 // pred_fallthru
          _
        // Predicated region
        $region125: #{tpu_custom_call.1} parent=75 // pred_check
          %p639 = pneg %p330
        $region126: #{tpu_custom_call.1} parent=75 // pred_check_branch
          %641 = sbr.rel (%p639) target = $region128
        $region127: #{tpu_custom_call.1} parent=75 // pred_region
          %642 = dma.done [#allocation21], 1024
        $region128: #{tpu_custom_call.1} parent=75 // pred_fallthru
          _
        // Predicated region
        $region129: #{tpu_custom_call.1} parent=75 // pred_check
          %p643 = pneg %p351
        $region130: #{tpu_custom_call.1} parent=75 // pred_check_branch
          %645 = sbr.rel (%p643) target = $region132
        $region131: #{tpu_custom_call.1} parent=75 // pred_region
          %646 = dma.done [#allocation24], 16
        $region132: #{tpu_custom_call.1} parent=75 // pred_fallthru
          _
        %s647 = sand.u32 %s60, 1
        %s648 = scalar_lea.sflag [#allocation3], %s647
        %s649 = sand.u32 %s60, 1
        %s650 = smul.addr %s649, 8
        %s651 = scalar_lea.vmem [#allocation2], %s650
        %p652 = pneg %p73
        %p653 = pneg %p70
        %s654 = sand.u32 %s40, 1
        %s655 = scalar_lea.sflag [#allocation6], %s654
        %s656 = sand.u32 %s86, 1
        %s657 = scalar_lea.vmem [#allocation5], %s656
        %p658 = pneg %p99
        %p659 = pneg %p96
        %p660 = pneg %p120
        %p661 = pneg %p117
        %p662 = pneg %p141
        %p663 = pneg %p138
        %p664 = pneg %p162
        %p665 = pneg %p159
        %p666 = pneg %p183
        %p667 = pneg %p180
        %p668 = pneg %p204
        %p669 = pneg %p201
        %p670 = pneg %p225
        %p671 = pneg %p222
        %p672 = pneg %p246
        %p673 = pneg %p243
        %p674 = pneg %p267
        %p675 = pneg %p264
        %p676 = pneg %p288
        %p677 = pneg %p285
        %p678 = pneg %p309
        %p679 = pneg %p306
        %p680 = pneg %p330
        %p681 = pneg %p327
        %p682 = pneg %p351
        %p683 = pneg %p348
        %p684 = pneg %p379
        %p685 = pneg %p376
        %s686 = sand.u32 %s366, 1
        %s687 = scalar_lea.sflag [#allocation4], %s686
        %s688 = sand.u32 %s366, 1
        %s689 = smul.addr %s688, 8
        %s690 = scalar_lea.vmem [#allocation25], %s689
        %v692 = vld [vmem:[%s586] sm:$0xff]
        %v693 = vld [vmem:[%s594] sm:$0x1]
        %vm694 = vcmp.eq.f32.partialorder %v693, 0.0
        %v695 = vsel %vm694, -1e+30, 0.0
        %v696 = vpack.c.bf16 %v692, %v692
        %v697 = vld [vmem:[#allocation7] sm:$0xf]
        %v698 = vld [vmem:[#allocation7 + $0x4] sm:$0xf]
        %v699 = vld [vmem:[#allocation7 + $0x8] sm:$0xf]
        %v700 = vld [vmem:[#allocation7 + $0xc] sm:$0xf]
        %v701 = vld [vmem:[#allocation8] sm:$0x1]
        %v703 = vlaneseq
        %v704 = vshrl.u32 %v703, 7
        %v705 = vsub.s32 0, %v704
        %v706 = vrot.slane %v701, %v705
        %v712 = vunpack.c.l.b16 %v697
        %v713 = vunpack.c.l.b16 %v698
        %v714 = vunpack.c.l.b16 %v699
        %v715 = vunpack.c.l.b16 %v700
        %v716 = vpack.c.b16 %v713, %v712
        %v717 = vpack.c.b16 %v715, %v714
        %vm720 = vcmask 261120
        %v722 = vsel %vm720, %v696, 0
        %724 = vmatprep.subr.bf16.mxu0 0
        %725 = vmatpush1.bf16.msra.mxu0 %v716
        %726 = vmatprep.subr.bf16.mxu0 0
        %727 = vmatpush1.bf16.msra.mxu0 %v717
        %728 = vmatprep.subr.bf16.mxu0 0
        %729 = vmatpush1.bf16.msra.mxu0 0
        %730 = vmatprep.subr.bf16.mxu0 0
        %731 = vmatpush1.bf16.msra.mxu0 0
        %732 = vmatprep.subr.bf16.mxu0 0
        %733 = vmatpush1.bf16.msra.mxu0 0
        %734 = vmatprep.subr.bf16.mxu0 0
        %735 = vmatpush1.bf16.msra.mxu0 0
        %736 = vmatprep.subr.bf16.mxu0 0
        %737 = vmatpush1.bf16.msra.mxu0 0
        %738 = vmatprep.subr.bf16.mxu0 0
        %739 = vmatpush1.bf16.msra.mxu0 0
        %740 = vmatprep.subr.bf16.mxu0 0
        %741 = vmatpush1.bf16.msra.mxu0 0
        %742 = vmatprep.subr.bf16.mxu0 0
        %743 = vmatpush1.bf16.msra.mxu0 0
        %744 = vmatprep.subr.bf16.mxu0 0
        %745 = vmatpush1.bf16.msra.mxu0 0
        %746 = vmatprep.subr.bf16.mxu0 0
        %747 = vmatpush1.bf16.msra.mxu0 0
        %748 = vmatprep.subr.bf16.mxu0 0
        %749 = vmatpush1.bf16.msra.mxu0 0
        %750 = vmatprep.subr.bf16.mxu0 0
        %751 = vmatpush1.bf16.msra.mxu0 0
        %752 = vmatprep.subr.bf16.mxu0 0
        %753 = vmatpush1.bf16.msra.mxu0 0
        %754 = vmatprep.subr.bf16.mxu0 0
        %755 = vmatpush1.bf16.msra.mxu0 0
        %756 = vmatprep.mubr.bf16.mxu0 0
        %757 = vmatmul.mubr.bf16.gmra.mrb[0].mxu0 %v722
        %v758 = vpop.f32.mrb[0].mxu0
        %v759 = vadd.f32 %v706, %v758
        %v760 = vpop.f32.mrb[0].mxu0
        %v761 = vpop.f32.mrb[0].mxu0
        %v762 = vpop.f32.mrb[0].mxu0
        %763 = vdwg.mxu0
        %v764 = vmul.f32 %v759, 0.35355338
        %v765 = vpack.c.bf16 %v764, %v764
        %v766 = vld [vmem:[#allocation10] sm:$0xf]
        %v767 = vld [vmem:[#allocation10 + $0x4] sm:$0xf]
        %v768 = vld [vmem:[#allocation10 + $0x8] sm:$0xf]
        %v769 = vld [vmem:[#allocation10 + $0xc] sm:$0xf]
        %v770 = vld [vmem:[#allocation11] sm:$0x1]
        %v772 = vlaneseq
        %v773 = vshrl.u32 %v772, 7
        %v774 = vsub.s32 0, %v773
        %v775 = vrot.slane %v770, %v774
        %v781 = vunpack.c.l.b16 %v766
        %v782 = vunpack.c.l.b16 %v767
        %v783 = vunpack.c.l.b16 %v768
        %v784 = vunpack.c.l.b16 %v769
        %v785 = vpack.c.b16 %v782, %v781
        %v786 = vpack.c.b16 %v784, %v783
        %789 = vmatprep.subr.bf16.mxu0 0
        %790 = vmatpush1.bf16.msra.mxu0 %v785
        %791 = vmatprep.subr.bf16.mxu0 0
        %792 = vmatpush1.bf16.msra.mxu0 %v786
        %793 = vmatprep.subr.bf16.mxu0 0
        %794 = vmatpush1.bf16.msra.mxu0 0
        %795 = vmatprep.subr.bf16.mxu0 0
        %796 = vmatpush1.bf16.msra.mxu0 0
        %797 = vmatprep.subr.bf16.mxu0 0
        %798 = vmatpush1.bf16.msra.mxu0 0
        %799 = vmatprep.subr.bf16.mxu0 0
        %800 = vmatpush1.bf16.msra.mxu0 0
        %801 = vmatprep.subr.bf16.mxu0 0
        %802 = vmatpush1.bf16.msra.mxu0 0
        %803 = vmatprep.subr.bf16.mxu0 0
        %804 = vmatpush1.bf16.msra.mxu0 0
        %805 = vmatprep.subr.bf16.mxu0 0
        %806 = vmatpush1.bf16.msra.mxu0 0
        %807 = vmatprep.subr.bf16.mxu0 0
        %808 = vmatpush1.bf16.msra.mxu0 0
        %809 = vmatprep.subr.bf16.mxu0 0
        %810 = vmatpush1.bf16.msra.mxu0 0
        %811 = vmatprep.subr.bf16.mxu0 0
        %812 = vmatpush1.bf16.msra.mxu0 0
        %813 = vmatprep.subr.bf16.mxu0 0
        %814 = vmatpush1.bf16.msra.mxu0 0
        %815 = vmatprep.subr.bf16.mxu0 0
        %816 = vmatpush1.bf16.msra.mxu0 0
        %817 = vmatprep.subr.bf16.mxu0 0
        %818 = vmatpush1.bf16.msra.mxu0 0
        %819 = vmatprep.subr.bf16.mxu0 0
        %820 = vmatpush1.bf16.msra.mxu0 0
        %821 = vmatprep.mubr.bf16.mxu0 0
        %822 = vmatmul.mubr.bf16.gmra.mrb[0].mxu0 %v722
        %v823 = vpop.f32.mrb[0].mxu0
        %v824 = vadd.f32 %v775, %v823
        %v825 = vpop.f32.mrb[0].mxu0
        %v826 = vpop.f32.mrb[0].mxu0
        %v827 = vpop.f32.mrb[0].mxu0
        %828 = vdwg.mxu0
        %v829 = vpack.c.bf16 %v824, %v824
        %v831 = vlaneseq
        %v832 = vshrl.u32 %v831, 7
        %v833 = vsub.s32 0, %v832
        %v834 = vrot.slane %v695, %v833
        %vm836 = vcmask 64512
        %v838 = vsel %vm836, %v765, 0
        %v841 = vsel %vm836, %v829, 0
        %843 = vmatprep.subr.bf16.mxu0 0
        %844 = vmatpush1.bf16.xpose.msra.mxu0 %v841
        %845 = vmatprep.subr.bf16.mxu0 0
        %846 = vmatpush1.bf16.xpose.msra.mxu0 0
        %847 = vmatprep.subr.bf16.mxu0 0
        %848 = vmatpush1.bf16.xpose.msra.mxu0 0
        %849 = vmatprep.subr.bf16.mxu0 0
        %850 = vmatpush1.bf16.xpose.msra.mxu0 0
        %851 = vmatprep.subr.bf16.mxu0 0
        %852 = vmatpush1.bf16.xpose.msra.mxu0 0
        %853 = vmatprep.subr.bf16.mxu0 0
        %854 = vmatpush1.bf16.xpose.msra.mxu0 0
        %855 = vmatprep.subr.bf16.mxu0 0
        %856 = vmatpush1.bf16.xpose.msra.mxu0 0
        %857 = vmatprep.subr.bf16.mxu0 0
        %858 = vmatpush1.bf16.xpose.msra.mxu0 0
        %859 = vmatprep.subr.bf16.mxu0 0
        %860 = vmatpush1.bf16.xpose.msra.mxu0 0
        %861 = vmatprep.subr.bf16.mxu0 0
        %862 = vmatpush1.bf16.xpose.msra.mxu0 0
        %863 = vmatprep.subr.bf16.mxu0 0
        %864 = vmatpush1.bf16.xpose.msra.mxu0 0
        %865 = vmatprep.subr.bf16.mxu0 0
        %866 = vmatpush1.bf16.xpose.msra.mxu0 0
        %867 = vmatprep.subr.bf16.mxu0 0
        %868 = vmatpush1.bf16.xpose.msra.mxu0 0
        %869 = vmatprep.subr.bf16.mxu0 0
        %870 = vmatpush1.bf16.xpose.msra.mxu0 0
        %871 = vmatprep.subr.bf16.mxu0 0
        %872 = vmatpush1.bf16.xpose.msra.mxu0 0
        %873 = vmatprep.subr.bf16.mxu0 0
        %874 = vmatpush1.bf16.xpose.msra.mxu0 0
        %875 = vmatprep.mubr.bf16.mxu0 0
        %876 = vmatmul.mubr.bf16.gmra.mrb[0].mxu0 %v838
        %v877 = vpop.f32.mrb[0].mxu0
        %v878 = vadd.f32 %v834, %v877
        %v879 = vpop.f32.mrb[0].mxu0
        %v880 = vpop.f32.mrb[0].mxu0
        %v881 = vpop.f32.mrb[0].mxu0
        %882 = vdwg.mxu0
        %v883 = vsel %vm836, %v878, -inf
        %884 = vmax.xlane.f32.xlu0 %v883
        %v885 = vpop.xlane.xlu0 %884
        %v886 = vsub.f32 %v878, %v885
        %v887 = vmul.f32 %v886, 1.442695
        %v888 = vpow.pop %v887
        %v889 = vsel %vm836, %v888, 0.0
        %890 = vadd.xlane.f32.xlu0 %v889
        %v891 = vpop.xlane.xlu0 %890
        %v892 = vrcp.pop %v891
        %v893 = vmul.f32 %v888, %v892
        %v894 = vpack.c.bf16 %v893, %v893
        %896 = vrot.lane.b32.xlu0 %v829, 96
        %v897 = vpop.permute.xlu0 %896
        %v899 = vsel %vm836, %v894, 0
        %vm901 = vcmask 1043456
        %v903 = vsel %vm901, %v897, 0
        %905 = vmatprep.subr.bf16.mxu0 0
        %906 = vmatpush1.bf16.msra.mxu0 %v903
        %907 = vmatprep.subr.bf16.mxu0 0
        %908 = vmatpush1.bf16.msra.mxu0 0
        %909 = vmatprep.subr.bf16.mxu0 0
        %910 = vmatpush1.bf16.msra.mxu0 0
        %911 = vmatprep.subr.bf16.mxu0 0
        %912 = vmatpush1.bf16.msra.mxu0 0
        %913 = vmatprep.subr.bf16.mxu0 0
        %914 = vmatpush1.bf16.msra.mxu0 0
        %915 = vmatprep.subr.bf16.mxu0 0
        %916 = vmatpush1.bf16.msra.mxu0 0
        %917 = vmatprep.subr.bf16.mxu0 0
        %918 = vmatpush1.bf16.msra.mxu0 0
        %919 = vmatprep.subr.bf16.mxu0 0
        %920 = vmatpush1.bf16.msra.mxu0 0
        %921 = vmatprep.subr.bf16.mxu0 0
        %922 = vmatpush1.bf16.msra.mxu0 0
        %923 = vmatprep.subr.bf16.mxu0 0
        %924 = vmatpush1.bf16.msra.mxu0 0
        %925 = vmatprep.subr.bf16.mxu0 0
        %926 = vmatpush1.bf16.msra.mxu0 0
        %927 = vmatprep.subr.bf16.mxu0 0
        %928 = vmatpush1.bf16.msra.mxu0 0
        %929 = vmatprep.subr.bf16.mxu0 0
        %930 = vmatpush1.bf16.msra.mxu0 0
        %931 = vmatprep.subr.bf16.mxu0 0
        %932 = vmatpush1.bf16.msra.mxu0 0
        %933 = vmatprep.subr.bf16.mxu0 0
        %934 = vmatpush1.bf16.msra.mxu0 0
        %935 = vmatprep.subr.bf16.mxu0 0
        %936 = vmatpush1.bf16.msra.mxu0 0
        %937 = vmatprep.mubr.bf16.mxu0 0
        %938 = vmatmul.mubr.bf16.gmra.mrb[0].mxu0 %v899
        %v939 = vpop.f32.mrb[0].mxu0
        %v940 = vadd.f32 0.0, %v939
        %v941 = vpop.f32.mrb[0].mxu0
        %v942 = vpop.f32.mrb[0].mxu0
        %v943 = vpop.f32.mrb[0].mxu0
        %944 = vdwg.mxu0
        %946 = vrot.lane.b32.xlu0 %v765, 120
        %v947 = vpop.permute.xlu0 %946
        %948 = vrot.lane.b32.xlu0 %v829, 120
        %v949 = vpop.permute.xlu0 %948
        %v951 = vsel %vm836, %v947, 0
        %v954 = vsel %vm836, %v949, 0
        %956 = vmatprep.subr.bf16.mxu0 0
        %957 = vmatpush1.bf16.xpose.msra.mxu0 %v954
        %958 = vmatprep.subr.bf16.mxu0 0
        %959 = vmatpush1.bf16.xpose.msra.mxu0 0
        %960 = vmatprep.subr.bf16.mxu0 0
        %961 = vmatpush1.bf16.xpose.msra.mxu0 0
        %962 = vmatprep.subr.bf16.mxu0 0
        %963 = vmatpush1.bf16.xpose.msra.mxu0 0
        %964 = vmatprep.subr.bf16.mxu0 0
        %965 = vmatpush1.bf16.xpose.msra.mxu0 0
        %966 = vmatprep.subr.bf16.mxu0 0
        %967 = vmatpush1.bf16.xpose.msra.mxu0 0
        %968 = vmatprep.subr.bf16.mxu0 0
        %969 = vmatpush1.bf16.xpose.msra.mxu0 0
        %970 = vmatprep.subr.bf16.mxu0 0
        %971 = vmatpush1.bf16.xpose.msra.mxu0 0
        %972 = vmatprep.subr.bf16.mxu0 0
        %973 = vmatpush1.bf16.xpose.msra.mxu0 0
        %974 = vmatprep.subr.bf16.mxu0 0
        %975 = vmatpush1.bf16.xpose.msra.mxu0 0
        %976 = vmatprep.subr.bf16.mxu0 0
        %977 = vmatpush1.bf16.xpose.msra.mxu0 0
        %978 = vmatprep.subr.bf16.mxu0 0
        %979 = vmatpush1.bf16.xpose.msra.mxu0 0
        %980 = vmatprep.subr.bf16.mxu0 0
        %981 = vmatpush1.bf16.xpose.msra.mxu0 0
        %982 = vmatprep.subr.bf16.mxu0 0
        %983 = vmatpush1.bf16.xpose.msra.mxu0 0
        %984 = vmatprep.subr.bf16.mxu0 0
        %985 = vmatpush1.bf16.xpose.msra.mxu0 0
        %986 = vmatprep.subr.bf16.mxu0 0
        %987 = vmatpush1.bf16.xpose.msra.mxu0 0
        %988 = vmatprep.mubr.bf16.mxu0 0
        %989 = vmatmul.mubr.bf16.gmra.mrb[0].mxu0 %v951
        %v990 = vpop.f32.mrb[0].mxu0
        %v991 = vadd.f32 %v834, %v990
        %v992 = vpop.f32.mrb[0].mxu0
        %v993 = vpop.f32.mrb[0].mxu0
        %v994 = vpop.f32.mrb[0].mxu0
        %995 = vdwg.mxu0
        %v996 = vsel %vm836, %v991, -inf
        %997 = vmax.xlane.f32.xlu0 %v996
        %v998 = vpop.xlane.xlu0 %997
        %v999 = vsub.f32 %v991, %v998
        %v1000 = vmul.f32 %v999, 1.442695
        %v1001 = vpow.pop %v1000
        %v1002 = vsel %vm836, %v1001, 0.0
        %1003 = vadd.xlane.f32.xlu0 %v1002
        %v1004 = vpop.xlane.xlu0 %1003
        %v1005 = vrcp.pop %v1004
        %v1006 = vmul.f32 %v1001, %v1005
        %v1007 = vpack.c.bf16 %v1006, %v1006
        %1008 = vrot.lane.b32.xlu0 %v829, 88
        %v1009 = vpop.permute.xlu0 %1008
        %v1011 = vsel %vm836, %v1007, 0
        %v1014 = vsel %vm901, %v1009, 0
        %1016 = vmatprep.subr.bf16.mxu0 0
        %1017 = vmatpush1.bf16.msra.mxu0 %v1014
        %1018 = vmatprep.subr.bf16.mxu0 0
        %1019 = vmatpush1.bf16.msra.mxu0 0
        %1020 = vmatprep.subr.bf16.mxu0 0
        %1021 = vmatpush1.bf16.msra.mxu0 0
        %1022 = vmatprep.subr.bf16.mxu0 0
        %1023 = vmatpush1.bf16.msra.mxu0 0
        %1024 = vmatprep.subr.bf16.mxu0 0
        %1025 = vmatpush1.bf16.msra.mxu0 0
        %1026 = vmatprep.subr.bf16.mxu0 0
        %1027 = vmatpush1.bf16.msra.mxu0 0
        %1028 = vmatprep.subr.bf16.mxu0 0
        %1029 = vmatpush1.bf16.msra.mxu0 0
        %1030 = vmatprep.subr.bf16.mxu0 0
        %1031 = vmatpush1.bf16.msra.mxu0 0
        %1032 = vmatprep.subr.bf16.mxu0 0
        %1033 = vmatpush1.bf16.msra.mxu0 0
        %1034 = vmatprep.subr.bf16.mxu0 0
        %1035 = vmatpush1.bf16.msra.mxu0 0
        %1036 = vmatprep.subr.bf16.mxu0 0
        %1037 = vmatpush1.bf16.msra.mxu0 0
        %1038 = vmatprep.subr.bf16.mxu0 0
        %1039 = vmatpush1.bf16.msra.mxu0 0
        %1040 = vmatprep.subr.bf16.mxu0 0
        %1041 = vmatpush1.bf16.msra.mxu0 0
        %1042 = vmatprep.subr.bf16.mxu0 0
        %1043 = vmatpush1.bf16.msra.mxu0 0
        %1044 = vmatprep.subr.bf16.mxu0 0
        %1045 = vmatpush1.bf16.msra.mxu0 0
        %1046 = vmatprep.subr.bf16.mxu0 0
        %1047 = vmatpush1.bf16.msra.mxu0 0
        %1048 = vmatprep.mubr.bf16.mxu0 0
        %1049 = vmatmul.mubr.bf16.gmra.mrb[0].mxu0 %v1011
        %v1050 = vpop.f32.mrb[0].mxu0
        %v1051 = vadd.f32 0.0, %v1050
        %v1052 = vpop.f32.mrb[0].mxu0
        %v1053 = vpop.f32.mrb[0].mxu0
        %v1054 = vpop.f32.mrb[0].mxu0
        %1055 = vdwg.mxu0
        %1056 = vrot.lane.b32.xlu0 %v765, 112
        %v1057 = vpop.permute.xlu0 %1056
        %1058 = vrot.lane.b32.xlu0 %v829, 112
        %v1059 = vpop.permute.xlu0 %1058
        %v1061 = vsel %vm836, %v1057, 0
        %v1064 = vsel %vm836, %v1059, 0
        %1066 = vmatprep.subr.bf16.mxu0 0
        %1067 = vmatpush1.bf16.xpose.msra.mxu0 %v1064
        %1068 = vmatprep.subr.bf16.mxu0 0
        %1069 = vmatpush1.bf16.xpose.msra.mxu0 0
        %1070 = vmatprep.subr.bf16.mxu0 0
        %1071 = vmatpush1.bf16.xpose.msra.mxu0 0
        %1072 = vmatprep.subr.bf16.mxu0 0
        %1073 = vmatpush1.bf16.xpose.msra.mxu0 0
        %1074 = vmatprep.subr.bf16.mxu0 0
        %1075 = vmatpush1.bf16.xpose.msra.mxu0 0
        %1076 = vmatprep.subr.bf16.mxu0 0
        %1077 = vmatpush1.bf16.xpose.msra.mxu0 0
        %1078 = vmatprep.subr.bf16.mxu0 0
        %1079 = vmatpush1.bf16.xpose.msra.mxu0 0
        %1080 = vmatprep.subr.bf16.mxu0 0
        %1081 = vmatpush1.bf16.xpose.msra.mxu0 0
        %1082 = vmatprep.subr.bf16.mxu0 0
        %1083 = vmatpush1.bf16.xpose.msra.mxu0 0
        %1084 = vmatprep.subr.bf16.mxu0 0
        %1085 = vmatpush1.bf16.xpose.msra.mxu0 0
        %1086 = vmatprep.subr.bf16.mxu0 0
        %1087 = vmatpush1.bf16.xpose.msra.mxu0 0
        %1088 = vmatprep.subr.bf16.mxu0 0
        %1089 = vmatpush1.bf16.xpose.msra.mxu0 0
        %1090 = vmatprep.subr.bf16.mxu0 0
        %1091 = vmatpush1.bf16.xpose.msra.mxu0 0
        %1092 = vmatprep.subr.bf16.mxu0 0
        %1093 = vmatpush1.bf16.xpose.msra.mxu0 0
        %1094 = vmatprep.subr.bf16.mxu0 0
        %1095 = vmatpush1.bf16.xpose.msra.mxu0 0
        %1096 = vmatprep.subr.bf16.mxu0 0
        %1097 = vmatpush1.bf16.xpose.msra.mxu0 0
        %1098 = vmatprep.mubr.bf16.mxu0 0
        %1099 = vmatmul.mubr.bf16.gmra.mrb[0].mxu0 %v1061
        %v1100 = vpop.f32.mrb[0].mxu0
        %v1101 = vadd.f32 %v834, %v1100
        %v1102 = vpop.f32.mrb[0].mxu0
        %v1103 = vpop.f32.mrb[0].mxu0
        %v1104 = vpop.f32.mrb[0].mxu0
        %1105 = vdwg.mxu0
        %v1106 = vsel %vm836, %v1101, -inf
        %1107 = vmax.xlane.f32.xlu0 %v1106
        %v1108 = vpop.xlane.xlu0 %1107
        %v1109 = vsub.f32 %v1101, %v1108
        %v1110 = vmul.f32 %v1109, 1.442695
        %v1111 = vpow.pop %v1110
        %v1112 = vsel %vm836, %v1111, 0.0
        %1113 = vadd.xlane.f32.xlu0 %v1112
        %v1114 = vpop.xlane.xlu0 %1113
        %v1115 = vrcp.pop %v1114
        %v1116 = vmul.f32 %v1111, %v1115
        %v1117 = vpack.c.bf16 %v1116, %v1116
        %1118 = vrot.lane.b32.xlu0 %v829, 80
        %v1119 = vpop.permute.xlu0 %1118
        %v1121 = vsel %vm836, %v1117, 0
        %v1124 = vsel %vm901, %v1119, 0
        %1126 = vmatprep.subr.bf16.mxu0 0
        %1127 = vmatpush1.bf16.msra.mxu0 %v1124
        %1128 = vmatprep.subr.bf16.mxu0 0
        %1129 = vmatpush1.bf16.msra.mxu0 0
        %1130 = vmatprep.subr.bf16.mxu0 0
        %1131 = vmatpush1.bf16.msra.mxu0 0
        %1132 = vmatprep.subr.bf16.mxu0 0
        %1133 = vmatpush1.bf16.msra.mxu0 0
        %1134 = vmatprep.subr.bf16.mxu0 0
        %1135 = vmatpush1.bf16.msra.mxu0 0
        %1136 = vmatprep.subr.bf16.mxu0 0
        %1137 = vmatpush1.bf16.msra.mxu0 0
        %1138 = vmatprep.subr.bf16.mxu0 0
        %1139 = vmatpush1.bf16.msra.mxu0 0
        %1140 = vmatprep.subr.bf16.mxu0 0
        %1141 = vmatpush1.bf16.msra.mxu0 0
        %1142 = vmatprep.subr.bf16.mxu0 0
        %1143 = vmatpush1.bf16.msra.mxu0 0
        %1144 = vmatprep.subr.bf16.mxu0 0
        %1145 = vmatpush1.bf16.msra.mxu0 0
        %1146 = vmatprep.subr.bf16.mxu0 0
        %1147 = vmatpush1.bf16.msra.mxu0 0
        %1148 = vmatprep.subr.bf16.mxu0 0
        %1149 = vmatpush1.bf16.msra.mxu0 0
        %1150 = vmatprep.subr.bf16.mxu0 0
        %1151 = vmatpush1.bf16.msra.mxu0 0
        %1152 = vmatprep.subr.bf16.mxu0 0
        %1153 = vmatpush1.bf16.msra.mxu0 0
        %1154 = vmatprep.subr.bf16.mxu0 0
        %1155 = vmatpush1.bf16.msra.mxu0 0
        %1156 = vmatprep.subr.bf16.mxu0 0
        %1157 = vmatpush1.bf16.msra.mxu0 0
        %1158 = vmatprep.mubr.bf16.mxu0 0
        %1159 = vmatmul.mubr.bf16.gmra.mrb[0].mxu0 %v1121
        %v1160 = vpop.f32.mrb[0].mxu0
        %v1161 = vadd.f32 0.0, %v1160
        %v1162 = vpop.f32.mrb[0].mxu0
        %v1163 = vpop.f32.mrb[0].mxu0
        %v1164 = vpop.f32.mrb[0].mxu0
        %1165 = vdwg.mxu0
        %1166 = vrot.lane.b32.xlu0 %v765, 104
        %v1167 = vpop.permute.xlu0 %1166
        %1168 = vrot.lane.b32.xlu0 %v829, 104
        %v1169 = vpop.permute.xlu0 %1168
        %v1171 = vsel %vm836, %v1167, 0
        %v1174 = vsel %vm836, %v1169, 0
        %1176 = vmatprep.subr.bf16.mxu0 0
        %1177 = vmatpush1.bf16.xpose.msra.mxu0 %v1174
        %1178 = vmatprep.subr.bf16.mxu0 0
        %1179 = vmatpush1.bf16.xpose.msra.mxu0 0
        %1180 = vmatprep.subr.bf16.mxu0 0
        %1181 = vmatpush1.bf16.xpose.msra.mxu0 0
        %1182 = vmatprep.subr.bf16.mxu0 0
        %1183 = vmatpush1.bf16.xpose.msra.mxu0 0
        %1184 = vmatprep.subr.bf16.mxu0 0
        %1185 = vmatpush1.bf16.xpose.msra.mxu0 0
        %1186 = vmatprep.subr.bf16.mxu0 0
        %1187 = vmatpush1.bf16.xpose.msra.mxu0 0
        %1188 = vmatprep.subr.bf16.mxu0 0
        %1189 = vmatpush1.bf16.xpose.msra.mxu0 0
        %1190 = vmatprep.subr.bf16.mxu0 0
        %1191 = vmatpush1.bf16.xpose.msra.mxu0 0
        %1192 = vmatprep.subr.bf16.mxu0 0
        %1193 = vmatpush1.bf16.xpose.msra.mxu0 0
        %1194 = vmatprep.subr.bf16.mxu0 0
        %1195 = vmatpush1.bf16.xpose.msra.mxu0 0
        %1196 = vmatprep.subr.bf16.mxu0 0
        %1197 = vmatpush1.bf16.xpose.msra.mxu0 0
        %1198 = vmatprep.subr.bf16.mxu0 0
        %1199 = vmatpush1.bf16.xpose.msra.mxu0 0
        %1200 = vmatprep.subr.bf16.mxu0 0
        %1201 = vmatpush1.bf16.xpose.msra.mxu0 0
        %1202 = vmatprep.subr.bf16.mxu0 0
        %1203 = vmatpush1.bf16.xpose.msra.mxu0 0
        %1204 = vmatprep.subr.bf16.mxu0 0
        %1205 = vmatpush1.bf16.xpose.msra.mxu0 0
        %1206 = vmatprep.subr.bf16.mxu0 0
        %1207 = vmatpush1.bf16.xpose.msra.mxu0 0
        %1208 = vmatprep.mubr.bf16.mxu0 0
        %1209 = vmatmul.mubr.bf16.gmra.mrb[0].mxu0 %v1171
        %v1210 = vpop.f32.mrb[0].mxu0
        %v1211 = vadd.f32 %v834, %v1210
        %v1212 = vpop.f32.mrb[0].mxu0
        %v1213 = vpop.f32.mrb[0].mxu0
        %v1214 = vpop.f32.mrb[0].mxu0
        %1215 = vdwg.mxu0
        %v1216 = vsel %vm836, %v1211, -inf
        %1217 = vmax.xlane.f32.xlu0 %v1216
        %v1218 = vpop.xlane.xlu0 %1217
        %v1219 = vsub.f32 %v1211, %v1218
        %v1220 = vmul.f32 %v1219, 1.442695
        %v1221 = vpow.pop %v1220
        %v1222 = vsel %vm836, %v1221, 0.0
        %1223 = vadd.xlane.f32.xlu0 %v1222
        %v1224 = vpop.xlane.xlu0 %1223
        %v1225 = vrcp.pop %v1224
        %v1226 = vmul.f32 %v1221, %v1225
        %v1227 = vpack.c.bf16 %v1226, %v1226
        %1228 = vrot.lane.b32.xlu0 %v829, 72
        %v1229 = vpop.permute.xlu0 %1228
        %v1231 = vsel %vm836, %v1227, 0
        %v1234 = vsel %vm901, %v1229, 0
        %1236 = vmatprep.subr.bf16.mxu0 0
        %1237 = vmatpush1.bf16.msra.mxu0 %v1234
        %1238 = vmatprep.subr.bf16.mxu0 0
        %1239 = vmatpush1.bf16.msra.mxu0 0
        %1240 = vmatprep.subr.bf16.mxu0 0
        %1241 = vmatpush1.bf16.msra.mxu0 0
        %1242 = vmatprep.subr.bf16.mxu0 0
        %1243 = vmatpush1.bf16.msra.mxu0 0
        %1244 = vmatprep.subr.bf16.mxu0 0
        %1245 = vmatpush1.bf16.msra.mxu0 0
        %1246 = vmatprep.subr.bf16.mxu0 0
        %1247 = vmatpush1.bf16.msra.mxu0 0
        %1248 = vmatprep.subr.bf16.mxu0 0
        %1249 = vmatpush1.bf16.msra.mxu0 0
        %1250 = vmatprep.subr.bf16.mxu0 0
        %1251 = vmatpush1.bf16.msra.mxu0 0
        %1252 = vmatprep.subr.bf16.mxu0 0
        %1253 = vmatpush1.bf16.msra.mxu0 0
        %1254 = vmatprep.subr.bf16.mxu0 0
        %1255 = vmatpush1.bf16.msra.mxu0 0
        %1256 = vmatprep.subr.bf16.mxu0 0
        %1257 = vmatpush1.bf16.msra.mxu0 0
        %1258 = vmatprep.subr.bf16.mxu0 0
        %1259 = vmatpush1.bf16.msra.mxu0 0
        %1260 = vmatprep.subr.bf16.mxu0 0
        %1261 = vmatpush1.bf16.msra.mxu0 0
        %1262 = vmatprep.subr.bf16.mxu0 0
        %1263 = vmatpush1.bf16.msra.mxu0 0
        %1264 = vmatprep.subr.bf16.mxu0 0
        %1265 = vmatpush1.bf16.msra.mxu0 0
        %1266 = vmatprep.subr.bf16.mxu0 0
        %1267 = vmatpush1.bf16.msra.mxu0 0
        %1268 = vmatprep.mubr.bf16.mxu0 0
        %1269 = vmatmul.mubr.bf16.gmra.mrb[0].mxu0 %v1231
        %v1270 = vpop.f32.mrb[0].mxu0
        %v1271 = vadd.f32 0.0, %v1270
        %v1272 = vpop.f32.mrb[0].mxu0
        %v1273 = vpop.f32.mrb[0].mxu0
        %v1274 = vpop.f32.mrb[0].mxu0
        %1275 = vdwg.mxu0
        %1277 = vrot.lane.b32.xlu0 %v1051, 8
        %v1278 = vpop.permute.xlu0 %1277
        %1281 = vrot.lane.b32.xlu0 %v1161, 16
        %v1282 = vpop.permute.xlu0 %1281
        %1285 = vrot.lane.b32.xlu0 %v1271, 24
        %v1286 = vpop.permute.xlu0 %1285
        %v1288 = vsel %vm836, %v940, %v1278
        %vm1289 = vcmask 130048
        %v1290 = vsel %vm1289, %v1288, %v1282
        %vm1291 = vcmask 195584
        %v1292 = vsel %vm1291, %v1290, %v1286
        %v1293 = vpack.c.bf16 %v1292, %v1292
        %v1294 = vld [vmem:[#allocation13] sm:$0xf]
        %v1295 = vld [vmem:[#allocation13 + $0x4] sm:$0xf]
        %v1296 = vld [vmem:[#allocation13 + $0x8] sm:$0xf]
        %v1297 = vld [vmem:[#allocation13 + $0xc] sm:$0xf]
        %v1298 = vld [vmem:[#allocation14] sm:$0x1]
        %v1300 = vlaneseq
        %v1301 = vshrl.u32 %v1300, 7
        %v1302 = vsub.s32 0, %v1301
        %v1303 = vrot.slane %v1298, %v1302
        %v1309 = vunpack.c.l.b16 %v1294
        %v1310 = vunpack.c.l.b16 %v1295
        %v1311 = vunpack.c.l.b16 %v1296
        %v1312 = vunpack.c.l.b16 %v1297
        %v1313 = vpack.c.b16 %v1310, %v1309
        %v1314 = vpack.c.b16 %v1312, %v1311
        %v1318 = vsel %vm720, %v1293, 0
        %1320 = vmatprep.subr.bf16.mxu0 0
        %1321 = vmatpush1.bf16.msra.mxu0 %v1313
        %1322 = vmatprep.subr.bf16.mxu0 0
        %1323 = vmatpush1.bf16.msra.mxu0 %v1314
        %1324 = vmatprep.subr.bf16.mxu0 0
        %1325 = vmatpush1.bf16.msra.mxu0 0
        %1326 = vmatprep.subr.bf16.mxu0 0
        %1327 = vmatpush1.bf16.msra.mxu0 0
        %1328 = vmatprep.subr.bf16.mxu0 0
        %1329 = vmatpush1.bf16.msra.mxu0 0
        %1330 = vmatprep.subr.bf16.mxu0 0
        %1331 = vmatpush1.bf16.msra.mxu0 0
        %1332 = vmatprep.subr.bf16.mxu0 0
        %1333 = vmatpush1.bf16.msra.mxu0 0
        %1334 = vmatprep.subr.bf16.mxu0 0
        %1335 = vmatpush1.bf16.msra.mxu0 0
        %1336 = vmatprep.subr.bf16.mxu0 0
        %1337 = vmatpush1.bf16.msra.mxu0 0
        %1338 = vmatprep.subr.bf16.mxu0 0
        %1339 = vmatpush1.bf16.msra.mxu0 0
        %1340 = vmatprep.subr.bf16.mxu0 0
        %1341 = vmatpush1.bf16.msra.mxu0 0
        %1342 = vmatprep.subr.bf16.mxu0 0
        %1343 = vmatpush1.bf16.msra.mxu0 0
        %1344 = vmatprep.subr.bf16.mxu0 0
        %1345 = vmatpush1.bf16.msra.mxu0 0
        %1346 = vmatprep.subr.bf16.mxu0 0
        %1347 = vmatpush1.bf16.msra.mxu0 0
        %1348 = vmatprep.subr.bf16.mxu0 0
        %1349 = vmatpush1.bf16.msra.mxu0 0
        %1350 = vmatprep.subr.bf16.mxu0 0
        %1351 = vmatpush1.bf16.msra.mxu0 0
        %1352 = vmatprep.mubr.bf16.mxu0 0
        %1353 = vmatmul.mubr.bf16.gmra.mrb[0].mxu0 %v1318
        %v1354 = vpop.f32.mrb[0].mxu0
        %v1355 = vadd.f32 %v1303, %v1354
        %v1356 = vpop.f32.mrb[0].mxu0
        %v1357 = vpop.f32.mrb[0].mxu0
        %v1358 = vpop.f32.mrb[0].mxu0
        %1359 = vdwg.mxu0
        %v1360 = vld [vmem:[#allocation16] sm:$0x1]
        %v1361 = vld [vmem:[#allocation17] sm:$0x1]
        %v1362 = vadd.f32 %v1355, %v692
        %v1363 = vsel %vm720, %v1362, 0.0
        %1364 = vadd.xlane.f32.xlu0 %v1363
        %v1365 = vpop.xlane.xlu0 %1364
        %v1366 = vrcp.pop 32.0
        %v1367 = vmul.f32 %v1365, %v1366
        %v1368 = vmul.f32 %v1362, %v1362
        %v1369 = vsel %vm720, %v1368, 0.0
        %1370 = vadd.xlane.f32.xlu0 %v1369
        %v1371 = vpop.xlane.xlu0 %1370
        %v1372 = vmul.f32 %v1371, %v1366
        %v1373 = vmul.f32 %v1367, %v1367
        %v1374 = vsub.f32 %v1372, %v1373
        %v1375 = vmax.f32 %v1374, 0.0
        %v1376 = vsub.f32 %v1362, %v1367
        %v1377 = vadd.f32 %v1375, 1e-05
        %v1378 = vrsqrt.pop %v1377
        %v1379 = vmul.f32 %v1376, %v1378
        %v1381 = vlaneseq
        %v1382 = vshrl.u32 %v1381, 7
        %v1383 = vsub.s32 0, %v1382
        %v1384 = vrot.slane %v1360, %v1383
        %v1386 = vmul.f32 %v1379, %v1384
        %v1388 = vlaneseq
        %v1389 = vshrl.u32 %v1388, 7
        %v1390 = vsub.s32 0, %v1389
        %v1391 = vrot.slane %v1361, %v1390
        %v1393 = vadd.f32 %v1386, %v1391
        %v1394 = vpack.c.bf16 %v1393, %v1393
        %v1395 = vld [vmem:[#allocation19] sm:$0xf]
        %v1396 = vld [vmem:[#allocation19 + $0x4] sm:$0xf]
        %v1397 = vld [vmem:[#allocation19 + $0x8] sm:$0xf]
        %v1398 = vld [vmem:[#allocation19 + $0xc] sm:$0xf]
        %v1399 = vld [vmem:[#allocation20] sm:$0x1]
        %v1401 = vlaneseq
        %v1402 = vshrl.u32 %v1401, 7
        %v1403 = vsub.s32 0, %v1402
        %v1404 = vrot.slane %v1399, %v1403
        %v1410 = vunpack.c.l.b16 %v1395
        %v1411 = vunpack.c.l.b16 %v1396
        %v1412 = vunpack.c.l.b16 %v1397
        %v1413 = vunpack.c.l.b16 %v1398
        %v1414 = vpack.c.b16 %v1411, %v1410
        %v1415 = vpack.c.b16 %v1413, %v1412
        %v1419 = vsel %vm720, %v1394, 0
        %1421 = vmatprep.subr.bf16.mxu0 0
        %1422 = vmatpush1.bf16.msra.mxu0 %v1414
        %1423 = vmatprep.subr.bf16.mxu0 0
        %1424 = vmatpush1.bf16.msra.mxu0 %v1415
        %1425 = vmatprep.subr.bf16.mxu0 0
        %1426 = vmatpush1.bf16.msra.mxu0 0
        %1427 = vmatprep.subr.bf16.mxu0 0
        %1428 = vmatpush1.bf16.msra.mxu0 0
        %1429 = vmatprep.subr.bf16.mxu0 0
        %1430 = vmatpush1.bf16.msra.mxu0 0
        %1431 = vmatprep.subr.bf16.mxu0 0
        %1432 = vmatpush1.bf16.msra.mxu0 0
        %1433 = vmatprep.subr.bf16.mxu0 0
        %1434 = vmatpush1.bf16.msra.mxu0 0
        %1435 = vmatprep.subr.bf16.mxu0 0
        %1436 = vmatpush1.bf16.msra.mxu0 0
        %1437 = vmatprep.subr.bf16.mxu0 0
        %1438 = vmatpush1.bf16.msra.mxu0 0
        %1439 = vmatprep.subr.bf16.mxu0 0
        %1440 = vmatpush1.bf16.msra.mxu0 0
        %1441 = vmatprep.subr.bf16.mxu0 0
        %1442 = vmatpush1.bf16.msra.mxu0 0
        %1443 = vmatprep.subr.bf16.mxu0 0
        %1444 = vmatpush1.bf16.msra.mxu0 0
        %1445 = vmatprep.subr.bf16.mxu0 0
        %1446 = vmatpush1.bf16.msra.mxu0 0
        %1447 = vmatprep.subr.bf16.mxu0 0
        %1448 = vmatpush1.bf16.msra.mxu0 0
        %1449 = vmatprep.subr.bf16.mxu0 0
        %1450 = vmatpush1.bf16.msra.mxu0 0
        %1451 = vmatprep.subr.bf16.mxu0 0
        %1452 = vmatpush1.bf16.msra.mxu0 0
        %1453 = vmatprep.mubr.bf16.mxu0 0
        %1454 = vmatmul.mubr.bf16.gmra.mrb[0].mxu0 %v1419
        %v1455 = vpop.f32.mrb[0].mxu0
        %v1456 = vadd.f32 %v1404, %v1455
        %v1457 = vpop.f32.mrb[0].mxu0
        %v1458 = vpop.f32.mrb[0].mxu0
        %v1459 = vpop.f32.mrb[0].mxu0
        %1460 = vdwg.mxu0
        %v1461 = vmul.f32 %v1456, %v1456
        %v1462 = vmul.f32 %v1456, %v1461
        %v1463 = vmul.f32 %v1462, 0.044715
        %v1464 = vadd.f32 %v1456, %v1463
        %v1465 = vmul.f32 %v1464, 0.7978846
        %v1466 = vtanh.pop %v1465
        %v1467 = vadd.f32 %v1466, 1.0
        %v1468 = vmul.f32 %v1467, 0.5
        %v1469 = vmul.f32 %v1456, %v1468
        %v1470 = vpack.c.bf16 %v1469, %v1469
        %v1471 = vld [vmem:[#allocation22] sm:$0xf]
        %v1472 = vld [vmem:[#allocation22 + $0x4] sm:$0xf]
        %v1473 = vld [vmem:[#allocation22 + $0x8] sm:$0xf]
        %v1474 = vld [vmem:[#allocation22 + $0xc] sm:$0xf]
        %v1475 = vld [vmem:[#allocation22 + $0x10] sm:$0xf]
        %v1476 = vld [vmem:[#allocation22 + $0x14] sm:$0xf]
        %v1477 = vld [vmem:[#allocation22 + $0x18] sm:$0xf]
        %v1478 = vld [vmem:[#allocation22 + $0x1c] sm:$0xf]
        %v1479 = vld [vmem:[#allocation22 + $0x20] sm:$0xf]
        %v1480 = vld [vmem:[#allocation22 + $0x24] sm:$0xf]
        %v1481 = vld [vmem:[#allocation22 + $0x28] sm:$0xf]
        %v1482 = vld [vmem:[#allocation22 + $0x2c] sm:$0xf]
        %v1483 = vld [vmem:[#allocation22 + $0x30] sm:$0xf]
        %v1484 = vld [vmem:[#allocation22 + $0x34] sm:$0xf]
        %v1485 = vld [vmem:[#allocation22 + $0x38] sm:$0xf]
        %v1486 = vld [vmem:[#allocation22 + $0x3c] sm:$0xf]
        %v1487 = vld [vmem:[#allocation23] sm:$0x1]
        %v1489 = vlaneseq
        %v1490 = vshrl.u32 %v1489, 7
        %v1491 = vsub.s32 0, %v1490
        %v1492 = vrot.slane %v1487, %v1491
        %v1510 = vunpack.c.l.b16 %v1471
        %v1511 = vunpack.c.l.b16 %v1472
        %v1512 = vunpack.c.l.b16 %v1473
        %v1513 = vunpack.c.l.b16 %v1474
        %v1514 = vunpack.c.l.b16 %v1475
        %v1515 = vunpack.c.l.b16 %v1476
        %v1516 = vunpack.c.l.b16 %v1477
        %v1517 = vunpack.c.l.b16 %v1478
        %v1518 = vunpack.c.l.b16 %v1479
        %v1519 = vunpack.c.l.b16 %v1480
        %v1520 = vunpack.c.l.b16 %v1481
        %v1521 = vunpack.c.l.b16 %v1482
        %v1522 = vunpack.c.l.b16 %v1483
        %v1523 = vunpack.c.l.b16 %v1484
        %v1524 = vunpack.c.l.b16 %v1485
        %v1525 = vunpack.c.l.b16 %v1486
        %v1526 = vpack.c.b16 %v1511, %v1510
        %v1527 = vpack.c.b16 %v1513, %v1512
        %v1528 = vpack.c.b16 %v1515, %v1514
        %v1529 = vpack.c.b16 %v1517, %v1516
        %v1530 = vpack.c.b16 %v1519, %v1518
        %v1531 = vpack.c.b16 %v1521, %v1520
        %v1532 = vpack.c.b16 %v1523, %v1522
        %v1533 = vpack.c.b16 %v1525, %v1524
        %1542 = vmatprep.subr.bf16.mxu0 0
        %1543 = vmatpush1.bf16.msra.mxu0 %v1526
        %1544 = vmatprep.subr.bf16.mxu0 0
        %1545 = vmatpush1.bf16.msra.mxu0 %v1527
        %1546 = vmatprep.subr.bf16.mxu0 0
        %1547 = vmatpush1.bf16.msra.mxu0 %v1528
        %1548 = vmatprep.subr.bf16.mxu0 0
        %1549 = vmatpush1.bf16.msra.mxu0 %v1529
        %1550 = vmatprep.subr.bf16.mxu0 0
        %1551 = vmatpush1.bf16.msra.mxu0 %v1530
        %1552 = vmatprep.subr.bf16.mxu0 0
        %1553 = vmatpush1.bf16.msra.mxu0 %v1531
        %1554 = vmatprep.subr.bf16.mxu0 0
        %1555 = vmatpush1.bf16.msra.mxu0 %v1532
        %1556 = vmatprep.subr.bf16.mxu0 0
        %1557 = vmatpush1.bf16.msra.mxu0 %v1533
        %1558 = vmatprep.subr.bf16.mxu0 0
        %1559 = vmatpush1.bf16.msra.mxu0 0
        %1560 = vmatprep.subr.bf16.mxu0 0
        %1561 = vmatpush1.bf16.msra.mxu0 0
        %1562 = vmatprep.subr.bf16.mxu0 0
        %1563 = vmatpush1.bf16.msra.mxu0 0
        %1564 = vmatprep.subr.bf16.mxu0 0
        %1565 = vmatpush1.bf16.msra.mxu0 0
        %1566 = vmatprep.subr.bf16.mxu0 0
        %1567 = vmatpush1.bf16.msra.mxu0 0
        %1568 = vmatprep.subr.bf16.mxu0 0
        %1569 = vmatpush1.bf16.msra.mxu0 0
        %1570 = vmatprep.subr.bf16.mxu0 0
        %1571 = vmatpush1.bf16.msra.mxu0 0
        %1572 = vmatprep.subr.bf16.mxu0 0
        %1573 = vmatpush1.bf16.msra.mxu0 0
        %1574 = vmatprep.mubr.bf16.mxu0 0
        %1575 = vmatmul.mubr.bf16.gmra.mrb[0].mxu0 %v1470
        %v1576 = vpop.f32.mrb[0].mxu0
        %v1577 = vadd.f32 %v1492, %v1576
        %v1578 = vpop.f32.mrb[0].mxu0
        %v1579 = vpop.f32.mrb[0].mxu0
        %v1580 = vpop.f32.mrb[0].mxu0
        %1581 = vdwg.mxu0
        %v1582 = vadd.f32 %v1577, %v1393
        %v1583 = vsel %vm720, %v1582, 0.0
        %1584 = vadd.xlane.f32.xlu0 %v1583
        %v1585 = vpop.xlane.xlu0 %1584
        %v1586 = vmul.f32 %v1585, %v1366
        %v1587 = vmul.f32 %v1582, %v1582
        %v1588 = vsel %vm720, %v1587, 0.0
        %1589 = vadd.xlane.f32.xlu0 %v1588
        %v1590 = vpop.xlane.xlu0 %1589
        %v1591 = vmul.f32 %v1590, %v1366
        %v1592 = vmul.f32 %v1586, %v1586
        %v1593 = vsub.f32 %v1591, %v1592
        %v1594 = vmax.f32 %v1593, 0.0
        %v1595 = vsub.f32 %v1582, %v1586
        %v1596 = vadd.f32 %v1594, 1e-05
        %v1597 = vrsqrt.pop %v1596
        %v1598 = vmul.f32 %v1595, %v1597
        %v1599 = vmul.f32 %v1598, %v1384
        %v1600 = vadd.f32 %v1599, %v1391
        %1601 = vst.msk [vmem:[%s690] sm:$0xff] %vm720, %v1600
        %s1602 = sand.u32 %s366, 1
        %s1603 = scalar_lea.sflag [#allocation4], %s1602
        %s1604 = sand.u32 %s366, 1
        %s1605 = smul.addr %s1604, 8
        %s1606 = scalar_lea.vmem [#allocation25], %s1605
        // Predicated region
        $region133: #{tpu_custom_call.1} parent=75 // pred_check
          %p1607 = pneg %p376
        $region134: #{tpu_custom_call.1} parent=75 // pred_check_branch
          %1609 = sbr.rel (%p1607) target = $region136
        $region135: #{tpu_custom_call.1} parent=75 // pred_region
          %s1611 = ssub.s32 128, 128
          %1612 = vsyncadd %s1603, %s1611
          %s1613 = sadd.s32 %s45, %s44
          %s1614 = smul.addr %s1613, 128
          %s1615 = scalar_lea.hbm %s14, %s1614
          %s1617 = sshll.u32 %s1606, 4
          %s1618 = int_to_ptr.vmem [resolvable:$true] %s1617
          %1620 = dma.vmem_to_hbm [thread:$0]  %s1618, 128, %s1615, %s1603
        $region136: #{tpu_custom_call.1} parent=75 // pred_fallthru
          _
      $region76: #{tpu_custom_call.1} parent=5 // pred_fallthru
        _
      %p1621 = scmp.le.s32.totalorder 2, %s35
      // Predicated region
      $region137: #{tpu_custom_call.1} parent=5 // pred_check
        %p1622 = pneg %p1621
      $region138: #{tpu_custom_call.1} parent=5 // pred_check_branch
        %1624 = sbr.rel (%p1622) target = $region140
      $region139: #{tpu_custom_call.1} parent=5 // pred_region
        %s1625 = ssub.s32 %s35, 2
        // Predicated region
        $region141: #{tpu_custom_call.1} parent=139 // pred_check
          %p1626 = pneg %p382
        $region142: #{tpu_custom_call.1} parent=139 // pred_check_branch
          %1628 = sbr.rel (%p1626) target = $region144
        $region143: #{tpu_custom_call.1} parent=139 // pred_region
          %s1629 = sand.u32 %s367, 1
          %s1630 = scalar_lea.sflag [#allocation4], %s1629
          %s1631 = sand.u32 %s367, 1
          %s1632 = smul.addr %s1631, 8
          %s1633 = scalar_lea.vmem [#allocation25], %s1632
          %1634 = dma.done %s1630, 128
        $region144: #{tpu_custom_call.1} parent=139 // pred_fallthru
          _
      $region140: #{tpu_custom_call.1} parent=5 // pred_fallthru
        _
    $region6: #{tpu_custom_call.1} parent=1 // loop_footer
      %s39 = sadd.s32 1, %s35
    $region7: #{tpu_custom_call.1} parent=1 // loop_footer_branch
      %34 = sbr.rel target = $region3
    $region8: #{tpu_custom_call.1} parent=1 // loop_exit
      _
    %1635 = vsyncpa [#allocation3], 1
    %s1636 = scalar_lea.sflag [#allocation3], 1
    %1637 = vsyncpa %s1636, 1
    %1638 = vsyncpa [#allocation6], 1
    %s1639 = scalar_lea.sflag [#allocation6], 1
    %1640 = vsyncpa %s1639, 1
    %1641 = vsyncpa [#allocation9], 1
    %1642 = vsyncpa [#allocation12], 1
    %1643 = vsyncpa [#allocation15], 1
    %1644 = vsyncpa [#allocation18], 1
    %1645 = vsyncpa [#allocation21], 1
    %1646 = vsyncpa [#allocation24], 1
    %1647 = vsyncpa [#allocation4], 1
    %s1648 = scalar_lea.sflag [#allocation4], 1
    %1649 = vsyncpa %s1648, 1

</llo_original>
